<compile_context>
chip_gen: v5e
topology: v5e:2x2
jax: 0.10.0
libtpu: 0.0.40
codegen_flags: <defaults>
</compile_context>

<pallas_src>
import math

import jax
import jax.numpy as jnp
import numpy as np
from jax.experimental import pallas as pl
from jax.experimental.pallas import tpu as pltpu


# ----------------------------------------------------------------------------
# Fused Pallas kernel (whole BiRNN forward)
# ----------------------------------------------------------------------------
def _make_birnn_kernel(T, B, H, num_layers):
    """Build the fused kernel for static (T, B, H, num_layers)."""
    H3 = 3 * H
    H4 = 4 * H

    def kernel(*refs):
        # inputs: x, then per layer (w_ih, w_hh, b), then w_out, b_out
        x_ref = refs[0]
        layer_refs = [refs[1 + 3 * l: 4 + 3 * l] for l in range(num_layers)]
        wout_ref = refs[1 + 3 * num_layers]
        bout_ref = refs[2 + 3 * num_layers]
        out_ref = refs[3 + 3 * num_layers]        # (T*B, O) output (lane-contiguous 2-D slab)
        gx_ref = refs[4 + 3 * num_layers]         # scratch (T, B, 8H): staged input projection
        hs_ref = refs[5 + 3 * num_layers]         # scratch (T, B, 2H): fwd ([:H]) + bwd ([H:]) hidden

        for l, (wih_ref, whh_ref, b_ref) in enumerate(layer_refs):
            # ---- hoisted input projection for BOTH directions (one wide matmul),
            #      staged straight into VMEM scratch so it is not live in vregs.
            if l == 0:
                inp2d = x_ref[...].astype(jnp.float32).reshape(T * B, -1)
            else:
                inp2d = hs_ref[...].reshape(T * B, 2 * H)
            gx_ref[...] = (jnp.dot(inp2d, wih_ref[...],
                                   preferred_element_type=jnp.float32)
                           + b_ref[...]).reshape(T, B, 8 * H)

            # ---- serial recurrence: carry only (h_f, c_f, h_b, c_b)
            def step(t, carry, whh_ref=whh_ref):
                h_f, c_f, h_b, c_b = carry
                s = T - 1 - t

                # per-direction recurrent dots: (B,H) @ (H,4H), no zero block, no concat
                gates_f = gx_ref[t, :, :H4] + jnp.dot(
                    h_f, whh_ref[0], preferred_element_type=jnp.float32)
                gates_b = gx_ref[s, :, H4:] + jnp.dot(
                    h_b, whh_ref[1], preferred_element_type=jnp.float32)

                # gate order [i, f, o, g]: sigmoid on first 3H, tanh only on last H
                sf = jax.nn.sigmoid(gates_f[:, :H3])
                gf = jnp.tanh(gates_f[:, H3:])
                sb = jax.nn.sigmoid(gates_b[:, :H3])
                gb = jnp.tanh(gates_b[:, H3:])

                c_f = sf[:, H:2 * H] * c_f + sf[:, :H] * gf
                h_f = sf[:, 2 * H:H3] * jnp.tanh(c_f)
                c_b = sb[:, H:2 * H] * c_b + sb[:, :H] * gb
                h_b = sb[:, 2 * H:H3] * jnp.tanh(c_b)

                hs_ref[t, :, :H] = h_f            # forward half of row t
                hs_ref[s, :, H:] = h_b            # backward half of row T-1-t
                return (h_f, c_f, h_b, c_b)

            z = jnp.zeros((B, H), jnp.float32)
            jax.lax.fori_loop(0, T, step, (z, z, z, z), unroll=True)

        # ---- output Linear + LeakyReLU(0.01), fused, written as a (T*B, O) slab
        y = (jnp.dot(hs_ref[...].reshape(T * B, 2 * H), wout_ref[...],
                     preferred_element_type=jnp.float32) + bout_ref[...])
        out_ref[...] = jnp.where(y >= 0.0, y, 0.01 * y).astype(out_ref.dtype)

    return kernel


# ----------------------------------------------------------------------------
# Wrapper: one pallas_call for the whole forward pass
# ----------------------------------------------------------------------------
def birnn_forward(x_btd, params):
    """Full BiRNN forward. x_btd: (B, T, input_size) -> (B, T, output_dim)."""
    B, T, Din = x_btd.shape
    H = params["w_out"].shape[0] // 2
    O = params["w_out"].shape[1]
    num_layers = len(params["lstm"])

    x_tbd = jnp.transpose(x_btd, (1, 0, 2))       # time-major (T, B, Din)

    inputs = [x_tbd]
    for layer in params["lstm"]:
        inputs += [layer["w_ih"], layer["w_hh"], layer["b"]]
    inputs += [params["w_out"], params["b_out"]]

    # Advisory cost estimate (scheduling hint for XLA around the custom call).
    flops = 0
    din = Din
    for _ in range(num_layers):
        flops += 2 * T * B * din * 8 * H          # hoisted input projection (both dirs)
        flops += 2 * 2 * T * B * H * 4 * H        # recurrent dots (both dirs)
        din = 2 * H
    flops += 2 * T * B * 2 * H * O                # output linear
    transcendentals = num_layers * 2 * T * B * 5 * H
    bytes_accessed = 4 * (int(x_btd.size)
                          + sum(int(a.size) for a in inputs[1:])
                          + T * B * O)

    out2d = pl.pallas_call(
        _make_birnn_kernel(T, B, H, num_layers),
        out_shape=jax.ShapeDtypeStruct((T * B, O), jnp.float32),
        in_specs=[pl.BlockSpec(memory_space=pltpu.MemorySpace.VMEM)] * len(inputs),
        out_specs=pl.BlockSpec(memory_space=pltpu.MemorySpace.VMEM),
        scratch_shapes=[
            pltpu.VMEM((T, B, 8 * H), jnp.float32),   # staged input-projection gates
            pltpu.VMEM((T, B, 2 * H), jnp.float32),   # merged fwd/bwd hidden states
        ],
        compiler_params=pltpu.CompilerParams(
            vmem_limit_bytes=32 * 1024 * 1024),        # safe on v5e/v6e/v7x (v7x: 64 MiB phys)
        cost_estimate=pl.CostEstimate(flops=flops,
                                      transcendentals=transcendentals,
                                      bytes_accessed=bytes_accessed),
    )(*inputs)

    return jnp.transpose(out2d.reshape(T, B, O), (1, 0, 2))   # back to batch_first (B, T, O)


# ----------------------------------------------------------------------------
# Deterministic parameter init (mirrors nn.LSTM / nn.Linear uniform init),
# packed into the fused layout the kernel expects:
#   gate order inside every 4H block is [i, f, o, g]  (repacked from PyTorch's [i,f,g,o])
#   w_ih : (Din, 8H)   = [W_ih_fwd^T | W_ih_bwd^T]
#   w_hh : (2, H, 4H)  = stack(W_hh_fwd^T, W_hh_bwd^T)   (per-direction recurrent dots)
#   b    : (1, 8H)     = [b_ih_fwd + b_hh_fwd | b_ih_bwd + b_hh_bwd]
# ----------------------------------------------------------------------------
def _pt_to_packed_gate_order(w):
    """Reorder PyTorch gate blocks [i, f, g, o] -> kernel order [i, f, o, g] (axis 0)."""
    H = w.shape[0] // 4
    return jnp.concatenate([w[:2 * H], w[3 * H:], w[2 * H:3 * H]], axis=0)


def init_params(key, input_size, hidden_size, output_dim, num_layers):
    H = hidden_size
    stdv = 1.0 / math.sqrt(H)
    layers = []
    for l in range(num_layers):
        din = input_size if l == 0 else 2 * H
        per_dir = []
        for _ in range(2):  # fwd, bwd
            key, k1, k2, k3, k4 = jax.random.split(key, 5)
            w_ih = jax.random.uniform(k1, (4 * H, din),
                                      minval=-stdv, maxval=stdv, dtype=jnp.float32)
            w_hh = jax.random.uniform(k2, (4 * H, H),
                                      minval=-stdv, maxval=stdv, dtype=jnp.float32)
            b_ih = jax.random.uniform(k3, (4 * H,),
                                      minval=-stdv, maxval=stdv, dtype=jnp.float32)
            b_hh = jax.random.uniform(k4, (4 * H,),
                                      minval=-stdv, maxval=stdv, dtype=jnp.float32)
            per_dir.append((_pt_to_packed_gate_order(w_ih),
                            _pt_to_packed_gate_order(w_hh),
                            _pt_to_packed_gate_order(b_ih),
                            _pt_to_packed_gate_order(b_hh)))
        (wf, uf, bif, bhf), (wb, ub, bib, bhb) = per_dir

        w_ih_cat = jnp.concatenate([wf.T, wb.T], axis=1)                # (din, 8H)
        w_hh_stk = jnp.stack([uf.T, ub.T], axis=0)                      # (2, H, 4H)
        b_cat = jnp.concatenate([bif + bhf, bib + bhb])[None, :]        # (1, 8H)
        layers.append({"w_ih": w_ih_cat, "w_hh": w_hh_stk, "b": b_cat})

    fan_in = 2 * H
    bound = 1.0 / math.sqrt(fan_in)
    key, k1, k2 = jax.random.split(key, 3)
    w_out = jax.random.uniform(k1, (fan_in, output_dim),
                               minval=-bound, maxval=bound, dtype=jnp.float32)
    b_out = jax.random.uniform(k2, (1, output_dim),
                               minval=-bound, maxval=bound, dtype=jnp.float32)
    return {"lstm": layers, "w_out": w_out, "b_out": b_out}


# ----------------------------------------------------------------------------
# Pure-JAX reference (independent per-direction lax.scan formulation using the
# same packed weights; validates the [i,f,o,g] packing and the fused kernel).
# ----------------------------------------------------------------------------
def _ref_lstm_direction(x_tbd, w_ih_t, w_hh_t, b, *, reverse):
    T, B, _ = x_tbd.shape
    H = w_hh_t.shape[0]
    xs = x_tbd[::-1] if reverse else x_tbd

    def step(carry, x_t):
        h, c = carry
        gates = x_t @ w_ih_t + h @ w_hh_t + b      # gate order [i, f, o, g]
        i = jax.nn.sigmoid(gates[:, 0 * H:1 * H])
        f = jax.nn.sigmoid(gates[:, 1 * H:2 * H])
        o = jax.nn.sigmoid(gates[:, 2 * H:3 * H])
        g = jnp.tanh(gates[:, 3 * H:4 * H])
        c = f * c + i * g
        h = o * jnp.tanh(c)
        return (h, c), h

    init = (jnp.zeros((B, H), jnp.float32), jnp.zeros((B, H), jnp.float32))
    _, hs = jax.lax.scan(step, init, xs)
    return hs[::-1] if reverse else hs


def birnn_ref(x_btd, params):
    H = params["w_out"].shape[0] // 2
    x = jnp.transpose(x_btd, (1, 0, 2))
    layer_in = x
    for layer in params["lstm"]:
        wih, whh, b = layer["w_ih"], layer["w_hh"], layer["b"]
        fwd = _ref_lstm_direction(layer_in, wih[:, :4 * H], whh[0],
                                  b[:, :4 * H], reverse=False)
        bwd = _ref_lstm_direction(layer_in, wih[:, 4 * H:], whh[1],
                                  b[:, 4 * H:], reverse=True)
        layer_in = jnp.concatenate([fwd, bwd], axis=-1)
    y = layer_in @ params["w_out"] + params["b_out"]
    y = jnp.where(y >= 0, y, 0.01 * y)
    return jnp.transpose(y, (1, 0, 2))


# ----------------------------------------------------------------------------
if __name__ == "__main__":
    # BiRNN(input_size=16, hidden_size=32, output_dim=8, num_layers=2)
    B, T = 2, 8
    input_size, hidden_size, output_dim, num_layers = 16, 32, 8, 2

    key = jax.random.PRNGKey(0)
    key, kx, kp = jax.random.split(key, 3)
    x = jax.random.normal(kx, (B, T, input_size), dtype=jnp.float32)
    params = init_params(kp, input_size, hidden_size, output_dim, num_layers)

    fwd = jax.jit(birnn_forward)
    out = jax.block_until_ready(fwd(x, params))
    assert out.shape == (B, T, output_dim), out.shape

    ref = jax.block_until_ready(birnn_ref(x, params))
    np.testing.assert_allclose(np.asarray(out), np.asarray(ref),
                               rtol=1e-4, atol=1e-4)

    print("KERNEL_OK")
</pallas_src>

<mosaic_0001>
module attributes {stable_mosaic.version = 11 : i64} {
  func.func @kernel(%arg0: memref<8x2x16xf32, #tpu.memory_space<vmem>>, %arg1: memref<16x256xf32, #tpu.memory_space<vmem>>, %arg2: memref<2x32x128xf32, #tpu.memory_space<vmem>>, %arg3: memref<1x256xf32, #tpu.memory_space<vmem>>, %arg4: memref<64x256xf32, #tpu.memory_space<vmem>>, %arg5: memref<2x32x128xf32, #tpu.memory_space<vmem>>, %arg6: memref<1x256xf32, #tpu.memory_space<vmem>>, %arg7: memref<64x8xf32, #tpu.memory_space<vmem>>, %arg8: memref<1x8xf32, #tpu.memory_space<vmem>>, %arg9: memref<16x8xf32, #tpu.memory_space<vmem>>, %arg10: memref<8x2x256xf32, #tpu.memory_space<vmem>>, %arg11: memref<8x2x64xf32, #tpu.memory_space<vmem>>) attributes {dimension_semantics = [], scalar_prefetch = 0 : i64, scratch_operands = 2 : i64, tpu.core_type = #tpu.core_type<tc>} {
    %c0 = arith.constant 0 : index
    %c0_0 = arith.constant 0 : index
    %c0_1 = arith.constant 0 : index
    %0 = vector.load %arg0[%c0, %c0_0, %c0_1] : memref<8x2x16xf32, #tpu.memory_space<vmem>>, vector<8x2x16xf32>
    %1 = vector.shape_cast %0 : vector<8x2x16xf32> to vector<16x16xf32>
    %c0_2 = arith.constant 0 : index
    %c0_3 = arith.constant 0 : index
    %2 = vector.load %arg1[%c0_2, %c0_3] : memref<16x256xf32, #tpu.memory_space<vmem>>, vector<16x256xf32>
    %cst = arith.constant dense<0.000000e+00> : vector<16x256xf32>
    %3 = tpu.matmul %1, %2, %cst {dimension_numbers = #tpu.dot_dimension_numbers<[1], [0], [0], [1], [0, 0, 1, 1], [], []>} : vector<16x16xf32>, vector<16x256xf32>, vector<16x256xf32> -> vector<16x256xf32>
    %c0_4 = arith.constant 0 : index
    %c0_5 = arith.constant 0 : index
    %4 = vector.load %arg3[%c0_4, %c0_5] : memref<1x256xf32, #tpu.memory_space<vmem>>, vector<1x256xf32>
    %5 = vector.broadcast %4 : vector<1x256xf32> to vector<16x256xf32>
    %6 = arith.addf %3, %5 : vector<16x256xf32>
    %7 = vector.shape_cast %6 : vector<16x256xf32> to vector<8x2x256xf32>
    %c0_6 = arith.constant 0 : index
    %c0_7 = arith.constant 0 : index
    %c0_8 = arith.constant 0 : index
    %8 = vector.load %arg10[%c0_6, %c0_7, %c0_8] : memref<8x2x256xf32, #tpu.memory_space<vmem>>, vector<8x2x256xf32>
    tpu.vector_store %arg10[%c0_6, %c0_7, %c0_8], %7 {strides = array<i32>} : memref<8x2x256xf32, #tpu.memory_space<vmem>>, vector<8x2x256xf32>,
    %cst_9 = arith.constant 0.000000e+00 : f32
    %9 = vector.broadcast %cst_9 : f32 to vector<2x32xf32>
    %c0_i32 = arith.constant 0 : i32
    %c7_i32 = arith.constant 7 : i32
    %10 = arith.subi %c7_i32, %c0_i32 : i32
    %11 = arith.index_cast %c0_i32 : i32 to index
    %c0_10 = arith.constant 0 : index
    %c0_11 = arith.constant 0 : index
    %12 = vector.load %arg10[%11, %c0_10, %c0_11] : memref<8x2x256xf32, #tpu.memory_space<vmem>>, vector<1x2x128xf32>
    %13 = vector.shape_cast %12 : vector<1x2x128xf32> to vector<2x128xf32>
    %c0_12 = arith.constant 0 : index
    %c0_13 = arith.constant 0 : index
    %c0_14 = arith.constant 0 : index
    %14 = vector.load %arg2[%c0_12, %c0_13, %c0_14] : memref<2x32x128xf32, #tpu.memory_space<vmem>>, vector<1x32x128xf32>
    %15 = vector.shape_cast %14 : vector<1x32x128xf32> to vector<32x128xf32>
    %cst_15 = arith.constant dense<0.000000e+00> : vector<2x128xf32>
    %16 = tpu.matmul %9, %15, %cst_15 {dimension_numbers = #tpu.dot_dimension_numbers<[1], [0], [0], [1], [0, 0, 1, 1], [], []>} : vector<2x32xf32>, vector<32x128xf32>, vector<2x128xf32> -> vector<2x128xf32>
    %17 = arith.addf %13, %16 : vector<2x128xf32>
    %18 = arith.index_cast %10 : i32 to index
    %c0_16 = arith.constant 0 : index
    %c128 = arith.constant 128 : index
    %19 = vector.load %arg10[%18, %c0_16, %c128] : memref<8x2x256xf32, #tpu.memory_space<vmem>>, vector<1x2x128xf32>
    %20 = vector.shape_cast %19 : vector<1x2x128xf32> to vector<2x128xf32>
    %c1 = arith.constant 1 : index
    %c0_17 = arith.constant 0 : index
    %c0_18 = arith.constant 0 : index
    %21 = vector.load %arg2[%c1, %c0_17, %c0_18] : memref<2x32x128xf32, #tpu.memory_space<vmem>>, vector<1x32x128xf32>
    %22 = vector.shape_cast %21 : vector<1x32x128xf32> to vector<32x128xf32>
    %cst_19 = arith.constant dense<0.000000e+00> : vector<2x128xf32>
    %23 = tpu.matmul %9, %22, %cst_19 {dimension_numbers = #tpu.dot_dimension_numbers<[1], [0], [0], [1], [0, 0, 1, 1], [], []>} : vector<2x32xf32>, vector<32x128xf32>, vector<2x128xf32> -> vector<2x128xf32>
    %24 = arith.addf %20, %23 : vector<2x128xf32>
    %25 = vector.extract_strided_slice %17 {offsets = [0, 0], sizes = [2, 96], strides = [1, 1]} : vector<2x128xf32> to vector<2x96xf32>
    %26 = arith.negf %25 : vector<2x96xf32>
    %27 = math.exp %26 : vector<2x96xf32>
    %cst_20 = arith.constant 1.000000e+00 : f32
    %28 = vector.broadcast %cst_20 : f32 to vector<2x96xf32>
    %29 = arith.addf %28, %27 : vector<2x96xf32>
    %30 = arith.divf %28, %29 : vector<2x96xf32>
    %31 = vector.extract_strided_slice %17 {offsets = [0, 96], sizes = [2, 32], strides = [1, 1]} : vector<2x128xf32> to vector<2x32xf32>
    %32 = math.tanh %31 : vector<2x32xf32>
    %33 = vector.extract_strided_slice %24 {offsets = [0, 0], sizes = [2, 96], strides = [1, 1]} : vector<2x128xf32> to vector<2x96xf32>
    %34 = arith.negf %33 : vector<2x96xf32>
    %35 = math.exp %34 : vector<2x96xf32>
    %cst_21 = arith.constant 1.000000e+00 : f32
    %36 = vector.broadcast %cst_21 : f32 to vector<2x96xf32>
    %37 = arith.addf %36, %35 : vector<2x96xf32>
    %38 = arith.divf %36, %37 : vector<2x96xf32>
    %39 = vector.extract_strided_slice %24 {offsets = [0, 96], sizes = [2, 32], strides = [1, 1]} : vector<2x128xf32> to vector<2x32xf32>
    %40 = math.tanh %39 : vector<2x32xf32>
    %41 = vector.extract_strided_slice %30 {offsets = [0, 32], sizes = [2, 32], strides = [1, 1]} : vector<2x96xf32> to vector<2x32xf32>
    %42 = arith.mulf %41, %9 : vector<2x32xf32>
    %43 = vector.extract_strided_slice %30 {offsets = [0, 0], sizes = [2, 32], strides = [1, 1]} : vector<2x96xf32> to vector<2x32xf32>
    %44 = arith.mulf %43, %32 : vector<2x32xf32>
    %45 = arith.addf %42, %44 : vector<2x32xf32>
    %46 = vector.extract_strided_slice %30 {offsets = [0, 64], sizes = [2, 32], strides = [1, 1]} : vector<2x96xf32> to vector<2x32xf32>
    %47 = math.tanh %45 : vector<2x32xf32>
    %48 = arith.mulf %46, %47 : vector<2x32xf32>
    %49 = vector.extract_strided_slice %38 {offsets = [0, 32], sizes = [2, 32], strides = [1, 1]} : vector<2x96xf32> to vector<2x32xf32>
    %50 = arith.mulf %49, %9 : vector<2x32xf32>
    %51 = vector.extract_strided_slice %38 {offsets = [0, 0], sizes = [2, 32], strides = [1, 1]} : vector<2x96xf32> to vector<2x32xf32>
    %52 = arith.mulf %51, %40 : vector<2x32xf32>
    %53 = arith.addf %50, %52 : vector<2x32xf32>
    %54 = vector.extract_strided_slice %38 {offsets = [0, 64], sizes = [2, 32], strides = [1, 1]} : vector<2x96xf32> to vector<2x32xf32>
    %55 = math.tanh %53 : vector<2x32xf32>
    %56 = arith.mulf %54, %55 : vector<2x32xf32>
    %57 = arith.index_cast %c0_i32 : i32 to index
    %c0_22 = arith.constant 0 : index
    %c0_23 = arith.constant 0 : index
    %58 = vector.load %arg11[%57, %c0_22, %c0_23] : memref<8x2x64xf32, #tpu.memory_space<vmem>>, vector<1x2x32xf32>
    %59 = vector.shape_cast %58 : vector<1x2x32xf32> to vector<2x32xf32>
    %60 = vector.shape_cast %48 : vector<2x32xf32> to vector<1x2x32xf32>
    tpu.vector_store %arg11[%57, %c0_22, %c0_23], %60 {strides = array<i32>} : memref<8x2x64xf32, #tpu.memory_space<vmem>>, vector<1x2x32xf32>,
    %61 = arith.index_cast %10 : i32 to index
    %c0_24 = arith.constant 0 : index
    %c32 = arith.constant 32 : index
    %62 = vector.load %arg11[%61, %c0_24, %c32] : memref<8x2x64xf32, #tpu.memory_space<vmem>>, vector<1x2x32xf32>
    %63 = vector.shape_cast %62 : vector<1x2x32xf32> to vector<2x32xf32>
    %64 = vector.shape_cast %56 : vector<2x32xf32> to vector<1x2x32xf32>
    tpu.vector_store %arg11[%61, %c0_24, %c32], %64 {strides = array<i32>} : memref<8x2x64xf32, #tpu.memory_space<vmem>>, vector<1x2x32xf32>,
    %c1_i32 = arith.constant 1 : i32
    %c7_i32_25 = arith.constant 7 : i32
    %65 = arith.subi %c7_i32_25, %c1_i32 : i32
    %66 = arith.index_cast %c1_i32 : i32 to index
    %c0_26 = arith.constant 0 : index
    %c0_27 = arith.constant 0 : index
    %67 = vector.load %arg10[%66, %c0_26, %c0_27] : memref<8x2x256xf32, #tpu.memory_space<vmem>>, vector<1x2x128xf32>
    %68 = vector.shape_cast %67 : vector<1x2x128xf32> to vector<2x128xf32>
    %c0_28 = arith.constant 0 : index
    %c0_29 = arith.constant 0 : index
    %c0_30 = arith.constant 0 : index
    %69 = vector.load %arg2[%c0_28, %c0_29, %c0_30] : memref<2x32x128xf32, #tpu.memory_space<vmem>>, vector<1x32x128xf32>
    %70 = vector.shape_cast %69 : vector<1x32x128xf32> to vector<32x128xf32>
    %cst_31 = arith.constant dense<0.000000e+00> : vector<2x128xf32>
    %71 = tpu.matmul %48, %70, %cst_31 {dimension_numbers = #tpu.dot_dimension_numbers<[1], [0], [0], [1], [0, 0, 1, 1], [], []>} : vector<2x32xf32>, vector<32x128xf32>, vector<2x128xf32> -> vector<2x128xf32>
    %72 = arith.addf %68, %71 : vector<2x128xf32>
    %73 = arith.index_cast %65 : i32 to index
    %c0_32 = arith.constant 0 : index
    %c128_33 = arith.constant 128 : index
    %74 = vector.load %arg10[%73, %c0_32, %c128_33] : memref<8x2x256xf32, #tpu.memory_space<vmem>>, vector<1x2x128xf32>
    %75 = vector.shape_cast %74 : vector<1x2x128xf32> to vector<2x128xf32>
    %c1_34 = arith.constant 1 : index
    %c0_35 = arith.constant 0 : index
    %c0_36 = arith.constant 0 : index
    %76 = vector.load %arg2[%c1_34, %c0_35, %c0_36] : memref<2x32x128xf32, #tpu.memory_space<vmem>>, vector<1x32x128xf32>
    %77 = vector.shape_cast %76 : vector<1x32x128xf32> to vector<32x128xf32>
    %cst_37 = arith.constant dense<0.000000e+00> : vector<2x128xf32>
    %78 = tpu.matmul %56, %77, %cst_37 {dimension_numbers = #tpu.dot_dimension_numbers<[1], [0], [0], [1], [0, 0, 1, 1], [], []>} : vector<2x32xf32>, vector<32x128xf32>, vector<2x128xf32> -> vector<2x128xf32>
    %79 = arith.addf %75, %78 : vector<2x128xf32>
    %80 = vector.extract_strided_slice %72 {offsets = [0, 0], sizes = [2, 96], strides = [1, 1]} : vector<2x128xf32> to vector<2x96xf32>
    %81 = arith.negf %80 : vector<2x96xf32>
    %82 = math.exp %81 : vector<2x96xf32>
    %cst_38 = arith.constant 1.000000e+00 : f32
    %83 = vector.broadcast %cst_38 : f32 to vector<2x96xf32>
    %84 = arith.addf %83, %82 : vector<2x96xf32>
    %85 = arith.divf %83, %84 : vector<2x96xf32>
    %86 = vector.extract_strided_slice %72 {offsets = [0, 96], sizes = [2, 32], strides = [1, 1]} : vector<2x128xf32> to vector<2x32xf32>
    %87 = math.tanh %86 : vector<2x32xf32>
    %88 = vector.extract_strided_slice %79 {offsets = [0, 0], sizes = [2, 96], strides = [1, 1]} : vector<2x128xf32> to vector<2x96xf32>
    %89 = arith.negf %88 : vector<2x96xf32>
    %90 = math.exp %89 : vector<2x96xf32>
    %cst_39 = arith.constant 1.000000e+00 : f32
    %91 = vector.broadcast %cst_39 : f32 to vector<2x96xf32>
    %92 = arith.addf %91, %90 : vector<2x96xf32>
    %93 = arith.divf %91, %92 : vector<2x96xf32>
    %94 = vector.extract_strided_slice %79 {offsets = [0, 96], sizes = [2, 32], strides = [1, 1]} : vector<2x128xf32> to vector<2x32xf32>
    %95 = math.tanh %94 : vector<2x32xf32>
    %96 = vector.extract_strided_slice %85 {offsets = [0, 32], sizes = [2, 32], strides = [1, 1]} : vector<2x96xf32> to vector<2x32xf32>
    %97 = arith.mulf %96, %45 : vector<2x32xf32>
    %98 = vector.extract_strided_slice %85 {offsets = [0, 0], sizes = [2, 32], strides = [1, 1]} : vector<2x96xf32> to vector<2x32xf32>
    %99 = arith.mulf %98, %87 : vector<2x32xf32>
    %100 = arith.addf %97, %99 : vector<2x32xf32>
    %101 = vector.extract_strided_slice %85 {offsets = [0, 64], sizes = [2, 32], strides = [1, 1]} : vector<2x96xf32> to vector<2x32xf32>
    %102 = math.tanh %100 : vector<2x32xf32>
    %103 = arith.mulf %101, %102 : vector<2x32xf32>
    %104 = vector.extract_strided_slice %93 {offsets = [0, 32], sizes = [2, 32], strides = [1, 1]} : vector<2x96xf32> to vector<2x32xf32>
    %105 = arith.mulf %104, %53 : vector<2x32xf32>
    %106 = vector.extract_strided_slice %93 {offsets = [0, 0], sizes = [2, 32], strides = [1, 1]} : vector<2x96xf32> to vector<2x32xf32>
    %107 = arith.mulf %106, %95 : vector<2x32xf32>
    %108 = arith.addf %105, %107 : vector<2x32xf32>
    %109 = vector.extract_strided_slice %93 {offsets = [0, 64], sizes = [2, 32], strides = [1, 1]} : vector<2x96xf32> to vector<2x32xf32>
    %110 = math.tanh %108 : vector<2x32xf32>
    %111 = arith.mulf %109, %110 : vector<2x32xf32>
    %112 = arith.index_cast %c1_i32 : i32 to index
    %c0_40 = arith.constant 0 : index
    %c0_41 = arith.constant 0 : index
    %113 = vector.load %arg11[%112, %c0_40, %c0_41] : memref<8x2x64xf32, #tpu.memory_space<vmem>>, vector<1x2x32xf32>
    %114 = vector.shape_cast %113 : vector<1x2x32xf32> to vector<2x32xf32>
    %115 = vector.shape_cast %103 : vector<2x32xf32> to vector<1x2x32xf32>
    tpu.vector_store %arg11[%112, %c0_40, %c0_41], %115 {strides = array<i32>} : memref<8x2x64xf32, #tpu.memory_space<vmem>>, vector<1x2x32xf32>,
    %116 = arith.index_cast %65 : i32 to index
    %c0_42 = arith.constant 0 : index
    %c32_43 = arith.constant 32 : index
    %117 = vector.load %arg11[%116, %c0_42, %c32_43] : memref<8x2x64xf32, #tpu.memory_space<vmem>>, vector<1x2x32xf32>
    %118 = vector.shape_cast %117 : vector<1x2x32xf32> to vector<2x32xf32>
    %119 = vector.shape_cast %111 : vector<2x32xf32> to vector<1x2x32xf32>
    tpu.vector_store %arg11[%116, %c0_42, %c32_43], %119 {strides = array<i32>} : memref<8x2x64xf32, #tpu.memory_space<vmem>>, vector<1x2x32xf32>,
    %c2_i32 = arith.constant 2 : i32
    %c7_i32_44 = arith.constant 7 : i32
    %120 = arith.subi %c7_i32_44, %c2_i32 : i32
    %121 = arith.index_cast %c2_i32 : i32 to index
    %c0_45 = arith.constant 0 : index
    %c0_46 = arith.constant 0 : index
    %122 = vector.load %arg10[%121, %c0_45, %c0_46] : memref<8x2x256xf32, #tpu.memory_space<vmem>>, vector<1x2x128xf32>
    %123 = vector.shape_cast %122 : vector<1x2x128xf32> to vector<2x128xf32>
    %c0_47 = arith.constant 0 : index
    %c0_48 = arith.constant 0 : index
    %c0_49 = arith.constant 0 : index
    %124 = vector.load %arg2[%c0_47, %c0_48, %c0_49] : memref<2x32x128xf32, #tpu.memory_space<vmem>>, vector<1x32x128xf32>
    %125 = vector.shape_cast %124 : vector<1x32x128xf32> to vector<32x128xf32>
    %cst_50 = arith.constant dense<0.000000e+00> : vector<2x128xf32>
    %126 = tpu.matmul %103, %125, %cst_50 {dimension_numbers = #tpu.dot_dimension_numbers<[1], [0], [0], [1], [0, 0, 1, 1], [], []>} : vector<2x32xf32>, vector<32x128xf32>, vector<2x128xf32> -> vector<2x128xf32>
    %127 = arith.addf %123, %126 : vector<2x128xf32>
    %128 = arith.index_cast %120 : i32 to index
    %c0_51 = arith.constant 0 : index
    %c128_52 = arith.constant 128 : index
    %129 = vector.load %arg10[%128, %c0_51, %c128_52] : memref<8x2x256xf32, #tpu.memory_space<vmem>>, vector<1x2x128xf32>
    %130 = vector.shape_cast %129 : vector<1x2x128xf32> to vector<2x128xf32>
    %c1_53 = arith.constant 1 : index
    %c0_54 = arith.constant 0 : index
    %c0_55 = arith.constant 0 : index
    %131 = vector.load %arg2[%c1_53, %c0_54, %c0_55] : memref<2x32x128xf32, #tpu.memory_space<vmem>>, vector<1x32x128xf32>
    %132 = vector.shape_cast %131 : vector<1x32x128xf32> to vector<32x128xf32>
    %cst_56 = arith.constant dense<0.000000e+00> : vector<2x128xf32>
    %133 = tpu.matmul %111, %132, %cst_56 {dimension_numbers = #tpu.dot_dimension_numbers<[1], [0], [0], [1], [0, 0, 1, 1], [], []>} : vector<2x32xf32>, vector<32x128xf32>, vector<2x128xf32> -> vector<2x128xf32>
    %134 = arith.addf %130, %133 : vector<2x128xf32>
    %135 = vector.extract_strided_slice %127 {offsets = [0, 0], sizes = [2, 96], strides = [1, 1]} : vector<2x128xf32> to vector<2x96xf32>
    %136 = arith.negf %135 : vector<2x96xf32>
    %137 = math.exp %136 : vector<2x96xf32>
    %cst_57 = arith.constant 1.000000e+00 : f32
    %138 = vector.broadcast %cst_57 : f32 to vector<2x96xf32>
    %139 = arith.addf %138, %137 : vector<2x96xf32>
    %140 = arith.divf %138, %139 : vector<2x96xf32>
    %141 = vector.extract_strided_slice %127 {offsets = [0, 96], sizes = [2, 32], strides = [1, 1]} : vector<2x128xf32> to vector<2x32xf32>
    %142 = math.tanh %141 : vector<2x32xf32>
    %143 = vector.extract_strided_slice %134 {offsets = [0, 0], sizes = [2, 96], strides = [1, 1]} : vector<2x128xf32> to vector<2x96xf32>
    %144 = arith.negf %143 : vector<2x96xf32>
    %145 = math.exp %144 : vector<2x96xf32>
    %cst_58 = arith.constant 1.000000e+00 : f32
    %146 = vector.broadcast %cst_58 : f32 to vector<2x96xf32>
    %147 = arith.addf %146, %145 : vector<2x96xf32>
    %148 = arith.divf %146, %147 : vector<2x96xf32>
    %149 = vector.extract_strided_slice %134 {offsets = [0, 96], sizes = [2, 32], strides = [1, 1]} : vector<2x128xf32> to vector<2x32xf32>
    %150 = math.tanh %149 : vector<2x32xf32>
    %151 = vector.extract_strided_slice %140 {offsets = [0, 32], sizes = [2, 32], strides = [1, 1]} : vector<2x96xf32> to vector<2x32xf32>
    %152 = arith.mulf %151, %100 : vector<2x32xf32>
    %153 = vector.extract_strided_slice %140 {offsets = [0, 0], sizes = [2, 32], strides = [1, 1]} : vector<2x96xf32> to vector<2x32xf32>
    %154 = arith.mulf %153, %142 : vector<2x32xf32>
    %155 = arith.addf %152, %154 : vector<2x32xf32>
    %156 = vector.extract_strided_slice %140 {offsets = [0, 64], sizes = [2, 32], strides = [1, 1]} : vector<2x96xf32> to vector<2x32xf32>
    %157 = math.tanh %155 : vector<2x32xf32>
    %158 = arith.mulf %156, %157 : vector<2x32xf32>
    %159 = vector.extract_strided_slice %148 {offsets = [0, 32], sizes = [2, 32], strides = [1, 1]} : vector<2x96xf32> to vector<2x32xf32>
    %160 = arith.mulf %159, %108 : vector<2x32xf32>
    %161 = vector.extract_strided_slice %148 {offsets = [0, 0], sizes = [2, 32], strides = [1, 1]} : vector<2x96xf32> to vector<2x32xf32>
    %162 = arith.mulf %161, %150 : vector<2x32xf32>
    %163 = arith.addf %160, %162 : vector<2x32xf32>
    %164 = vector.extract_strided_slice %148 {offsets = [0, 64], sizes = [2, 32], strides = [1, 1]} : vector<2x96xf32> to vector<2x32xf32>
    %165 = math.tanh %163 : vector<2x32xf32>
    %166 = arith.mulf %164, %165 : vector<2x32xf32>
    %167 = arith.index_cast %c2_i32 : i32 to index
    %c0_59 = arith.constant 0 : index
    %c0_60 = arith.constant 0 : index
    %168 = vector.load %arg11[%167, %c0_59, %c0_60] : memref<8x2x64xf32, #tpu.memory_space<vmem>>, vector<1x2x32xf32>
    %169 = vector.shape_cast %168 : vector<1x2x32xf32> to vector<2x32xf32>
    %170 = vector.shape_cast %158 : vector<2x32xf32> to vector<1x2x32xf32>
    tpu.vector_store %arg11[%167, %c0_59, %c0_60], %170 {strides = array<i32>} : memref<8x2x64xf32, #tpu.memory_space<vmem>>, vector<1x2x32xf32>,
    %171 = arith.index_cast %120 : i32 to index
    %c0_61 = arith.constant 0 : index
    %c32_62 = arith.constant 32 : index
    %172 = vector.load %arg11[%171, %c0_61, %c32_62] : memref<8x2x64xf32, #tpu.memory_space<vmem>>, vector<1x2x32xf32>
    %173 = vector.shape_cast %172 : vector<1x2x32xf32> to vector<2x32xf32>
    %174 = vector.shape_cast %166 : vector<2x32xf32> to vector<1x2x32xf32>
    tpu.vector_store %arg11[%171, %c0_61, %c32_62], %174 {strides = array<i32>} : memref<8x2x64xf32, #tpu.memory_space<vmem>>, vector<1x2x32xf32>,
    %c3_i32 = arith.constant 3 : i32
    %c7_i32_63 = arith.constant 7 : i32
    %175 = arith.subi %c7_i32_63, %c3_i32 : i32
    %176 = arith.index_cast %c3_i32 : i32 to index
    %c0_64 = arith.constant 0 : index
    %c0_65 = arith.constant 0 : index
    %177 = vector.load %arg10[%176, %c0_64, %c0_65] : memref<8x2x256xf32, #tpu.memory_space<vmem>>, vector<1x2x128xf32>
    %178 = vector.shape_cast %177 : vector<1x2x128xf32> to vector<2x128xf32>
    %c0_66 = arith.constant 0 : index
    %c0_67 = arith.constant 0 : index
    %c0_68 = arith.constant 0 : index
    %179 = vector.load %arg2[%c0_66, %c0_67, %c0_68] : memref<2x32x128xf32, #tpu.memory_space<vmem>>, vector<1x32x128xf32>
    %180 = vector.shape_cast %179 : vector<1x32x128xf32> to vector<32x128xf32>
    %cst_69 = arith.constant dense<0.000000e+00> : vector<2x128xf32>
    %181 = tpu.matmul %158, %180, %cst_69 {dimension_numbers = #tpu.dot_dimension_numbers<[1], [0], [0], [1], [0, 0, 1, 1], [], []>} : vector<2x32xf32>, vector<32x128xf32>, vector<2x128xf32> -> vector<2x128xf32>
    %182 = arith.addf %178, %181 : vector<2x128xf32>
    %183 = arith.index_cast %175 : i32 to index
    %c0_70 = arith.constant 0 : index
    %c128_71 = arith.constant 128 : index
    %184 = vector.load %arg10[%183, %c0_70, %c128_71] : memref<8x2x256xf32, #tpu.memory_space<vmem>>, vector<1x2x128xf32>
    %185 = vector.shape_cast %184 : vector<1x2x128xf32> to vector<2x128xf32>
    %c1_72 = arith.constant 1 : index
    %c0_73 = arith.constant 0 : index
    %c0_74 = arith.constant 0 : index
    %186 = vector.load %arg2[%c1_72, %c0_73, %c0_74] : memref<2x32x128xf32, #tpu.memory_space<vmem>>, vector<1x32x128xf32>
    %187 = vector.shape_cast %186 : vector<1x32x128xf32> to vector<32x128xf32>
    %cst_75 = arith.constant dense<0.000000e+00> : vector<2x128xf32>
    %188 = tpu.matmul %166, %187, %cst_75 {dimension_numbers = #tpu.dot_dimension_numbers<[1], [0], [0], [1], [0, 0, 1, 1], [], []>} : vector<2x32xf32>, vector<32x128xf32>, vector<2x128xf32> -> vector<2x128xf32>
    %189 = arith.addf %185, %188 : vector<2x128xf32>
    %190 = vector.extract_strided_slice %182 {offsets = [0, 0], sizes = [2, 96], strides = [1, 1]} : vector<2x128xf32> to vector<2x96xf32>
    %191 = arith.negf %190 : vector<2x96xf32>
    %192 = math.exp %191 : vector<2x96xf32>
    %cst_76 = arith.constant 1.000000e+00 : f32
    %193 = vector.broadcast %cst_76 : f32 to vector<2x96xf32>
    %194 = arith.addf %193, %192 : vector<2x96xf32>
    %195 = arith.divf %193, %194 : vector<2x96xf32>
    %196 = vector.extract_strided_slice %182 {offsets = [0, 96], sizes = [2, 32], strides = [1, 1]} : vector<2x128xf32> to vector<2x32xf32>
    %197 = math.tanh %196 : vector<2x32xf32>
    %198 = vector.extract_strided_slice %189 {offsets = [0, 0], sizes = [2, 96], strides = [1, 1]} : vector<2x128xf32> to vector<2x96xf32>
    %199 = arith.negf %198 : vector<2x96xf32>
    %200 = math.exp %199 : vector<2x96xf32>
    %cst_77 = arith.constant 1.000000e+00 : f32
    %201 = vector.broadcast %cst_77 : f32 to vector<2x96xf32>
    %202 = arith.addf %201, %200 : vector<2x96xf32>
    %203 = arith.divf %201, %202 : vector<2x96xf32>
    %204 = vector.extract_strided_slice %189 {offsets = [0, 96], sizes = [2, 32], strides = [1, 1]} : vector<2x128xf32> to vector<2x32xf32>
    %205 = math.tanh %204 : vector<2x32xf32>
    %206 = vector.extract_strided_slice %195 {offsets = [0, 32], sizes = [2, 32], strides = [1, 1]} : vector<2x96xf32> to vector<2x32xf32>
    %207 = arith.mulf %206, %155 : vector<2x32xf32>
    %208 = vector.extract_strided_slice %195 {offsets = [0, 0], sizes = [2, 32], strides = [1, 1]} : vector<2x96xf32> to vector<2x32xf32>
    %209 = arith.mulf %208, %197 : vector<2x32xf32>
    %210 = arith.addf %207, %209 : vector<2x32xf32>
    %211 = vector.extract_strided_slice %195 {offsets = [0, 64], sizes = [2, 32], strides = [1, 1]} : vector<2x96xf32> to vector<2x32xf32>
    %212 = math.tanh %210 : vector<2x32xf32>
    %213 = arith.mulf %211, %212 : vector<2x32xf32>
    %214 = vector.extract_strided_slice %203 {offsets = [0, 32], sizes = [2, 32], strides = [1, 1]} : vector<2x96xf32> to vector<2x32xf32>
    %215 = arith.mulf %214, %163 : vector<2x32xf32>
    %216 = vector.extract_strided_slice %203 {offsets = [0, 0], sizes = [2, 32], strides = [1, 1]} : vector<2x96xf32> to vector<2x32xf32>
    %217 = arith.mulf %216, %205 : vector<2x32xf32>
    %218 = arith.addf %215, %217 : vector<2x32xf32>
    %219 = vector.extract_strided_slice %203 {offsets = [0, 64], sizes = [2, 32], strides = [1, 1]} : vector<2x96xf32> to vector<2x32xf32>
    %220 = math.tanh %218 : vector<2x32xf32>
    %221 = arith.mulf %219, %220 : vector<2x32xf32>
    %222 = arith.index_cast %c3_i32 : i32 to index
    %c0_78 = arith.constant 0 : index
    %c0_79 = arith.constant 0 : index
    %223 = vector.load %arg11[%222, %c0_78, %c0_79] : memref<8x2x64xf32, #tpu.memory_space<vmem>>, vector<1x2x32xf32>
    %224 = vector.shape_cast %223 : vector<1x2x32xf32> to vector<2x32xf32>
    %225 = vector.shape_cast %213 : vector<2x32xf32> to vector<1x2x32xf32>
    tpu.vector_store %arg11[%222, %c0_78, %c0_79], %225 {strides = array<i32>} : memref<8x2x64xf32, #tpu.memory_space<vmem>>, vector<1x2x32xf32>,
    %226 = arith.index_cast %175 : i32 to index
    %c0_80 = arith.constant 0 : index
    %c32_81 = arith.constant 32 : index
    %227 = vector.load %arg11[%226, %c0_80, %c32_81] : memref<8x2x64xf32, #tpu.memory_space<vmem>>, vector<1x2x32xf32>
    %228 = vector.shape_cast %227 : vector<1x2x32xf32> to vector<2x32xf32>
    %229 = vector.shape_cast %221 : vector<2x32xf32> to vector<1x2x32xf32>
    tpu.vector_store %arg11[%226, %c0_80, %c32_81], %229 {strides = array<i32>} : memref<8x2x64xf32, #tpu.memory_space<vmem>>, vector<1x2x32xf32>,
    %c4_i32 = arith.constant 4 : i32
    %c7_i32_82 = arith.constant 7 : i32
    %230 = arith.subi %c7_i32_82, %c4_i32 : i32
    %231 = arith.index_cast %c4_i32 : i32 to index
    %c0_83 = arith.constant 0 : index
    %c0_84 = arith.constant 0 : index
    %232 = vector.load %arg10[%231, %c0_83, %c0_84] : memref<8x2x256xf32, #tpu.memory_space<vmem>>, vector<1x2x128xf32>
    %233 = vector.shape_cast %232 : vector<1x2x128xf32> to vector<2x128xf32>
    %c0_85 = arith.constant 0 : index
    %c0_86 = arith.constant 0 : index
    %c0_87 = arith.constant 0 : index
    %234 = vector.load %arg2[%c0_85, %c0_86, %c0_87] : memref<2x32x128xf32, #tpu.memory_space<vmem>>, vector<1x32x128xf32>
    %235 = vector.shape_cast %234 : vector<1x32x128xf32> to vector<32x128xf32>
    %cst_88 = arith.constant dense<0.000000e+00> : vector<2x128xf32>
    %236 = tpu.matmul %213, %235, %cst_88 {dimension_numbers = #tpu.dot_dimension_numbers<[1], [0], [0], [1], [0, 0, 1, 1], [], []>} : vector<2x32xf32>, vector<32x128xf32>, vector<2x128xf32> -> vector<2x128xf32>
    %237 = arith.addf %233, %236 : vector<2x128xf32>
    %238 = arith.index_cast %230 : i32 to index
    %c0_89 = arith.constant 0 : index
    %c128_90 = arith.constant 128 : index
    %239 = vector.load %arg10[%238, %c0_89, %c128_90] : memref<8x2x256xf32, #tpu.memory_space<vmem>>, vector<1x2x128xf32>
    %240 = vector.shape_cast %239 : vector<1x2x128xf32> to vector<2x128xf32>
    %c1_91 = arith.constant 1 : index
    %c0_92 = arith.constant 0 : index
    %c0_93 = arith.constant 0 : index
    %241 = vector.load %arg2[%c1_91, %c0_92, %c0_93] : memref<2x32x128xf32, #tpu.memory_space<vmem>>, vector<1x32x128xf32>
    %242 = vector.shape_cast %241 : vector<1x32x128xf32> to vector<32x128xf32>
    %cst_94 = arith.constant dense<0.000000e+00> : vector<2x128xf32>
    %243 = tpu.matmul %221, %242, %cst_94 {dimension_numbers = #tpu.dot_dimension_numbers<[1], [0], [0], [1], [0, 0, 1, 1], [], []>} : vector<2x32xf32>, vector<32x128xf32>, vector<2x128xf32> -> vector<2x128xf32>
    %244 = arith.addf %240, %243 : vector<2x128xf32>
    %245 = vector.extract_strided_slice %237 {offsets = [0, 0], sizes = [2, 96], strides = [1, 1]} : vector<2x128xf32> to vector<2x96xf32>
    %246 = arith.negf %245 : vector<2x96xf32>
    %247 = math.exp %246 : vector<2x96xf32>
    %cst_95 = arith.constant 1.000000e+00 : f32
    %248 = vector.broadcast %cst_95 : f32 to vector<2x96xf32>
    %249 = arith.addf %248, %247 : vector<2x96xf32>
    %250 = arith.divf %248, %249 : vector<2x96xf32>
    %251 = vector.extract_strided_slice %237 {offsets = [0, 96], sizes = [2, 32], strides = [1, 1]} : vector<2x128xf32> to vector<2x32xf32>
    %252 = math.tanh %251 : vector<2x32xf32>
    %253 = vector.extract_strided_slice %244 {offsets = [0, 0], sizes = [2, 96], strides = [1, 1]} : vector<2x128xf32> to vector<2x96xf32>
    %254 = arith.negf %253 : vector<2x96xf32>
    %255 = math.exp %254 : vector<2x96xf32>
    %cst_96 = arith.constant 1.000000e+00 : f32
    %256 = vector.broadcast %cst_96 : f32 to vector<2x96xf32>
    %257 = arith.addf %256, %255 : vector<2x96xf32>
    %258 = arith.divf %256, %257 : vector<2x96xf32>
    %259 = vector.extract_strided_slice %244 {offsets = [0, 96], sizes = [2, 32], strides = [1, 1]} : vector<2x128xf32> to vector<2x32xf32>
    %260 = math.tanh %259 : vector<2x32xf32>
    %261 = vector.extract_strided_slice %250 {offsets = [0, 32], sizes = [2, 32], strides = [1, 1]} : vector<2x96xf32> to vector<2x32xf32>
    %262 = arith.mulf %261, %210 : vector<2x32xf32>
    %263 = vector.extract_strided_slice %250 {offsets = [0, 0], sizes = [2, 32], strides = [1, 1]} : vector<2x96xf32> to vector<2x32xf32>
    %264 = arith.mulf %263, %252 : vector<2x32xf32>
    %265 = arith.addf %262, %264 : vector<2x32xf32>
    %266 = vector.extract_strided_slice %250 {offsets = [0, 64], sizes = [2, 32], strides = [1, 1]} : vector<2x96xf32> to vector<2x32xf32>
    %267 = math.tanh %265 : vector<2x32xf32>
    %268 = arith.mulf %266, %267 : vector<2x32xf32>
    %269 = vector.extract_strided_slice %258 {offsets = [0, 32], sizes = [2, 32], strides = [1, 1]} : vector<2x96xf32> to vector<2x32xf32>
    %270 = arith.mulf %269, %218 : vector<2x32xf32>
    %271 = vector.extract_strided_slice %258 {offsets = [0, 0], sizes = [2, 32], strides = [1, 1]} : vector<2x96xf32> to vector<2x32xf32>
    %272 = arith.mulf %271, %260 : vector<2x32xf32>
    %273 = arith.addf %270, %272 : vector<2x32xf32>
    %274 = vector.extract_strided_slice %258 {offsets = [0, 64], sizes = [2, 32], strides = [1, 1]} : vector<2x96xf32> to vector<2x32xf32>
    %275 = math.tanh %273 : vector<2x32xf32>
    %276 = arith.mulf %274, %275 : vector<2x32xf32>
    %277 = arith.index_cast %c4_i32 : i32 to index
    %c0_97 = arith.constant 0 : index
    %c0_98 = arith.constant 0 : index
    %278 = vector.load %arg11[%277, %c0_97, %c0_98] : memref<8x2x64xf32, #tpu.memory_space<vmem>>, vector<1x2x32xf32>
    %279 = vector.shape_cast %278 : vector<1x2x32xf32> to vector<2x32xf32>
    %280 = vector.shape_cast %268 : vector<2x32xf32> to vector<1x2x32xf32>
    tpu.vector_store %arg11[%277, %c0_97, %c0_98], %280 {strides = array<i32>} : memref<8x2x64xf32, #tpu.memory_space<vmem>>, vector<1x2x32xf32>,
    %281 = arith.index_cast %230 : i32 to index
    %c0_99 = arith.constant 0 : index
    %c32_100 = arith.constant 32 : index
    %282 = vector.load %arg11[%281, %c0_99, %c32_100] : memref<8x2x64xf32, #tpu.memory_space<vmem>>, vector<1x2x32xf32>
    %283 = vector.shape_cast %282 : vector<1x2x32xf32> to vector<2x32xf32>
    %284 = vector.shape_cast %276 : vector<2x32xf32> to vector<1x2x32xf32>
    tpu.vector_store %arg11[%281, %c0_99, %c32_100], %284 {strides = array<i32>} : memref<8x2x64xf32, #tpu.memory_space<vmem>>, vector<1x2x32xf32>,
    %c5_i32 = arith.constant 5 : i32
    %c7_i32_101 = arith.constant 7 : i32
    %285 = arith.subi %c7_i32_101, %c5_i32 : i32
    %286 = arith.index_cast %c5_i32 : i32 to index
    %c0_102 = arith.constant 0 : index
    %c0_103 = arith.constant 0 : index
    %287 = vector.load %arg10[%286, %c0_102, %c0_103] : memref<8x2x256xf32, #tpu.memory_space<vmem>>, vector<1x2x128xf32>
    %288 = vector.shape_cast %287 : vector<1x2x128xf32> to vector<2x128xf32>
    %c0_104 = arith.constant 0 : index
    %c0_105 = arith.constant 0 : index
    %c0_106 = arith.constant 0 : index
    %289 = vector.load %arg2[%c0_104, %c0_105, %c0_106] : memref<2x32x128xf32, #tpu.memory_space<vmem>>, vector<1x32x128xf32>
    %290 = vector.shape_cast %289 : vector<1x32x128xf32> to vector<32x128xf32>
    %cst_107 = arith.constant dense<0.000000e+00> : vector<2x128xf32>
    %291 = tpu.matmul %268, %290, %cst_107 {dimension_numbers = #tpu.dot_dimension_numbers<[1], [0], [0], [1], [0, 0, 1, 1], [], []>} : vector<2x32xf32>, vector<32x128xf32>, vector<2x128xf32> -> vector<2x128xf32>
    %292 = arith.addf %288, %291 : vector<2x128xf32>
    %293 = arith.index_cast %285 : i32 to index
    %c0_108 = arith.constant 0 : index
    %c128_109 = arith.constant 128 : index
    %294 = vector.load %arg10[%293, %c0_108, %c128_109] : memref<8x2x256xf32, #tpu.memory_space<vmem>>, vector<1x2x128xf32>
    %295 = vector.shape_cast %294 : vector<1x2x128xf32> to vector<2x128xf32>
    %c1_110 = arith.constant 1 : index
    %c0_111 = arith.constant 0 : index
    %c0_112 = arith.constant 0 : index
    %296 = vector.load %arg2[%c1_110, %c0_111, %c0_112] : memref<2x32x128xf32, #tpu.memory_space<vmem>>, vector<1x32x128xf32>
    %297 = vector.shape_cast %296 : vector<1x32x128xf32> to vector<32x128xf32>
    %cst_113 = arith.constant dense<0.000000e+00> : vector<2x128xf32>
    %298 = tpu.matmul %276, %297, %cst_113 {dimension_numbers = #tpu.dot_dimension_numbers<[1], [0], [0], [1], [0, 0, 1, 1], [], []>} : vector<2x32xf32>, vector<32x128xf32>, vector<2x128xf32> -> vector<2x128xf32>
    %299 = arith.addf %295, %298 : vector<2x128xf32>
    %300 = vector.extract_strided_slice %292 {offsets = [0, 0], sizes = [2, 96], strides = [1, 1]} : vector<2x128xf32> to vector<2x96xf32>
    %301 = arith.negf %300 : vector<2x96xf32>
    %302 = math.exp %301 : vector<2x96xf32>
    %cst_114 = arith.constant 1.000000e+00 : f32
    %303 = vector.broadcast %cst_114 : f32 to vector<2x96xf32>
    %304 = arith.addf %303, %302 : vector<2x96xf32>
    %305 = arith.divf %303, %304 : vector<2x96xf32>
    %306 = vector.extract_strided_slice %292 {offsets = [0, 96], sizes = [2, 32], strides = [1, 1]} : vector<2x128xf32> to vector<2x32xf32>
    %307 = math.tanh %306 : vector<2x32xf32>
    %308 = vector.extract_strided_slice %299 {offsets = [0, 0], sizes = [2, 96], strides = [1, 1]} : vector<2x128xf32> to vector<2x96xf32>
    %309 = arith.negf %308 : vector<2x96xf32>
    %310 = math.exp %309 : vector<2x96xf32>
    %cst_115 = arith.constant 1.000000e+00 : f32
    %311 = vector.broadcast %cst_115 : f32 to vector<2x96xf32>
    %312 = arith.addf %311, %310 : vector<2x96xf32>
    %313 = arith.divf %311, %312 : vector<2x96xf32>
    %314 = vector.extract_strided_slice %299 {offsets = [0, 96], sizes = [2, 32], strides = [1, 1]} : vector<2x128xf32> to vector<2x32xf32>
    %315 = math.tanh %314 : vector<2x32xf32>
    %316 = vector.extract_strided_slice %305 {offsets = [0, 32], sizes = [2, 32], strides = [1, 1]} : vector<2x96xf32> to vector<2x32xf32>
    %317 = arith.mulf %316, %265 : vector<2x32xf32>
    %318 = vector.extract_strided_slice %305 {offsets = [0, 0], sizes = [2, 32], strides = [1, 1]} : vector<2x96xf32> to vector<2x32xf32>
    %319 = arith.mulf %318, %307 : vector<2x32xf32>
    %320 = arith.addf %317, %319 : vector<2x32xf32>
    %321 = vector.extract_strided_slice %305 {offsets = [0, 64], sizes = [2, 32], strides = [1, 1]} : vector<2x96xf32> to vector<2x32xf32>
    %322 = math.tanh %320 : vector<2x32xf32>
    %323 = arith.mulf %321, %322 : vector<2x32xf32>
    %324 = vector.extract_strided_slice %313 {offsets = [0, 32], sizes = [2, 32], strides = [1, 1]} : vector<2x96xf32> to vector<2x32xf32>
    %325 = arith.mulf %324, %273 : vector<2x32xf32>
    %326 = vector.extract_strided_slice %313 {offsets = [0, 0], sizes = [2, 32], strides = [1, 1]} : vector<2x96xf32> to vector<2x32xf32>
    %327 = arith.mulf %326, %315 : vector<2x32xf32>
    %328 = arith.addf %325, %327 : vector<2x32xf32>
    %329 = vector.extract_strided_slice %313 {offsets = [0, 64], sizes = [2, 32], strides = [1, 1]} : vector<2x96xf32> to vector<2x32xf32>
    %330 = math.tanh %328 : vector<2x32xf32>
    %331 = arith.mulf %329, %330 : vector<2x32xf32>
    %332 = arith.index_cast %c5_i32 : i32 to index
    %c0_116 = arith.constant 0 : index
    %c0_117 = arith.constant 0 : index
    %333 = vector.load %arg11[%332, %c0_116, %c0_117] : memref<8x2x64xf32, #tpu.memory_space<vmem>>, vector<1x2x32xf32>
    %334 = vector.shape_cast %333 : vector<1x2x32xf32> to vector<2x32xf32>
    %335 = vector.shape_cast %323 : vector<2x32xf32> to vector<1x2x32xf32>
    tpu.vector_store %arg11[%332, %c0_116, %c0_117], %335 {strides = array<i32>} : memref<8x2x64xf32, #tpu.memory_space<vmem>>, vector<1x2x32xf32>,
    %336 = arith.index_cast %285 : i32 to index
    %c0_118 = arith.constant 0 : index
    %c32_119 = arith.constant 32 : index
    %337 = vector.load %arg11[%336, %c0_118, %c32_119] : memref<8x2x64xf32, #tpu.memory_space<vmem>>, vector<1x2x32xf32>
    %338 = vector.shape_cast %337 : vector<1x2x32xf32> to vector<2x32xf32>
    %339 = vector.shape_cast %331 : vector<2x32xf32> to vector<1x2x32xf32>
    tpu.vector_store %arg11[%336, %c0_118, %c32_119], %339 {strides = array<i32>} : memref<8x2x64xf32, #tpu.memory_space<vmem>>, vector<1x2x32xf32>,
    %c6_i32 = arith.constant 6 : i32
    %c7_i32_120 = arith.constant 7 : i32
    %340 = arith.subi %c7_i32_120, %c6_i32 : i32
    %341 = arith.index_cast %c6_i32 : i32 to index
    %c0_121 = arith.constant 0 : index
    %c0_122 = arith.constant 0 : index
    %342 = vector.load %arg10[%341, %c0_121, %c0_122] : memref<8x2x256xf32, #tpu.memory_space<vmem>>, vector<1x2x128xf32>
    %343 = vector.shape_cast %342 : vector<1x2x128xf32> to vector<2x128xf32>
    %c0_123 = arith.constant 0 : index
    %c0_124 = arith.constant 0 : index
    %c0_125 = arith.constant 0 : index
    %344 = vector.load %arg2[%c0_123, %c0_124, %c0_125] : memref<2x32x128xf32, #tpu.memory_space<vmem>>, vector<1x32x128xf32>
    %345 = vector.shape_cast %344 : vector<1x32x128xf32> to vector<32x128xf32>
    %cst_126 = arith.constant dense<0.000000e+00> : vector<2x128xf32>
    %346 = tpu.matmul %323, %345, %cst_126 {dimension_numbers = #tpu.dot_dimension_numbers<[1], [0], [0], [1], [0, 0, 1, 1], [], []>} : vector<2x32xf32>, vector<32x128xf32>, vector<2x128xf32> -> vector<2x128xf32>
    %347 = arith.addf %343, %346 : vector<2x128xf32>
    %348 = arith.index_cast %340 : i32 to index
    %c0_127 = arith.constant 0 : index
    %c128_128 = arith.constant 128 : index
    %349 = vector.load %arg10[%348, %c0_127, %c128_128] : memref<8x2x256xf32, #tpu.memory_space<vmem>>, vector<1x2x128xf32>
    %350 = vector.shape_cast %349 : vector<1x2x128xf32> to vector<2x128xf32>
    %c1_129 = arith.constant 1 : index
    %c0_130 = arith.constant 0 : index
    %c0_131 = arith.constant 0 : index
    %351 = vector.load %arg2[%c1_129, %c0_130, %c0_131] : memref<2x32x128xf32, #tpu.memory_space<vmem>>, vector<1x32x128xf32>
    %352 = vector.shape_cast %351 : vector<1x32x128xf32> to vector<32x128xf32>
    %cst_132 = arith.constant dense<0.000000e+00> : vector<2x128xf32>
    %353 = tpu.matmul %331, %352, %cst_132 {dimension_numbers = #tpu.dot_dimension_numbers<[1], [0], [0], [1], [0, 0, 1, 1], [], []>} : vector<2x32xf32>, vector<32x128xf32>, vector<2x128xf32> -> vector<2x128xf32>
    %354 = arith.addf %350, %353 : vector<2x128xf32>
    %355 = vector.extract_strided_slice %347 {offsets = [0, 0], sizes = [2, 96], strides = [1, 1]} : vector<2x128xf32> to vector<2x96xf32>
    %356 = arith.negf %355 : vector<2x96xf32>
    %357 = math.exp %356 : vector<2x96xf32>
    %cst_133 = arith.constant 1.000000e+00 : f32
    %358 = vector.broadcast %cst_133 : f32 to vector<2x96xf32>
    %359 = arith.addf %358, %357 : vector<2x96xf32>
    %360 = arith.divf %358, %359 : vector<2x96xf32>
    %361 = vector.extract_strided_slice %347 {offsets = [0, 96], sizes = [2, 32], strides = [1, 1]} : vector<2x128xf32> to vector<2x32xf32>
    %362 = math.tanh %361 : vector<2x32xf32>
    %363 = vector.extract_strided_slice %354 {offsets = [0, 0], sizes = [2, 96], strides = [1, 1]} : vector<2x128xf32> to vector<2x96xf32>
    %364 = arith.negf %363 : vector<2x96xf32>
    %365 = math.exp %364 : vector<2x96xf32>
    %cst_134 = arith.constant 1.000000e+00 : f32
    %366 = vector.broadcast %cst_134 : f32 to vector<2x96xf32>
    %367 = arith.addf %366, %365 : vector<2x96xf32>
    %368 = arith.divf %366, %367 : vector<2x96xf32>
    %369 = vector.extract_strided_slice %354 {offsets = [0, 96], sizes = [2, 32], strides = [1, 1]} : vector<2x128xf32> to vector<2x32xf32>
    %370 = math.tanh %369 : vector<2x32xf32>
    %371 = vector.extract_strided_slice %360 {offsets = [0, 32], sizes = [2, 32], strides = [1, 1]} : vector<2x96xf32> to vector<2x32xf32>
    %372 = arith.mulf %371, %320 : vector<2x32xf32>
    %373 = vector.extract_strided_slice %360 {offsets = [0, 0], sizes = [2, 32], strides = [1, 1]} : vector<2x96xf32> to vector<2x32xf32>
    %374 = arith.mulf %373, %362 : vector<2x32xf32>
    %375 = arith.addf %372, %374 : vector<2x32xf32>
    %376 = vector.extract_strided_slice %360 {offsets = [0, 64], sizes = [2, 32], strides = [1, 1]} : vector<2x96xf32> to vector<2x32xf32>
    %377 = math.tanh %375 : vector<2x32xf32>
    %378 = arith.mulf %376, %377 : vector<2x32xf32>
    %379 = vector.extract_strided_slice %368 {offsets = [0, 32], sizes = [2, 32], strides = [1, 1]} : vector<2x96xf32> to vector<2x32xf32>
    %380 = arith.mulf %379, %328 : vector<2x32xf32>
    %381 = vector.extract_strided_slice %368 {offsets = [0, 0], sizes = [2, 32], strides = [1, 1]} : vector<2x96xf32> to vector<2x32xf32>
    %382 = arith.mulf %381, %370 : vector<2x32xf32>
    %383 = arith.addf %380, %382 : vector<2x32xf32>
    %384 = vector.extract_strided_slice %368 {offsets = [0, 64], sizes = [2, 32], strides = [1, 1]} : vector<2x96xf32> to vector<2x32xf32>
    %385 = math.tanh %383 : vector<2x32xf32>
    %386 = arith.mulf %384, %385 : vector<2x32xf32>
    %387 = arith.index_cast %c6_i32 : i32 to index
    %c0_135 = arith.constant 0 : index
    %c0_136 = arith.constant 0 : index
    %388 = vector.load %arg11[%387, %c0_135, %c0_136] : memref<8x2x64xf32, #tpu.memory_space<vmem>>, vector<1x2x32xf32>
    %389 = vector.shape_cast %388 : vector<1x2x32xf32> to vector<2x32xf32>
    %390 = vector.shape_cast %378 : vector<2x32xf32> to vector<1x2x32xf32>
    tpu.vector_store %arg11[%387, %c0_135, %c0_136], %390 {strides = array<i32>} : memref<8x2x64xf32, #tpu.memory_space<vmem>>, vector<1x2x32xf32>,
    %391 = arith.index_cast %340 : i32 to index
    %c0_137 = arith.constant 0 : index
    %c32_138 = arith.constant 32 : index
    %392 = vector.load %arg11[%391, %c0_137, %c32_138] : memref<8x2x64xf32, #tpu.memory_space<vmem>>, vector<1x2x32xf32>
    %393 = vector.shape_cast %392 : vector<1x2x32xf32> to vector<2x32xf32>
    %394 = vector.shape_cast %386 : vector<2x32xf32> to vector<1x2x32xf32>
    tpu.vector_store %arg11[%391, %c0_137, %c32_138], %394 {strides = array<i32>} : memref<8x2x64xf32, #tpu.memory_space<vmem>>, vector<1x2x32xf32>,
    %c7_i32_139 = arith.constant 7 : i32
    %c7_i32_140 = arith.constant 7 : i32
    %395 = arith.subi %c7_i32_140, %c7_i32_139 : i32
    %396 = arith.index_cast %c7_i32_139 : i32 to index
    %c0_141 = arith.constant 0 : index
    %c0_142 = arith.constant 0 : index
    %397 = vector.load %arg10[%396, %c0_141, %c0_142] : memref<8x2x256xf32, #tpu.memory_space<vmem>>, vector<1x2x128xf32>
    %398 = vector.shape_cast %397 : vector<1x2x128xf32> to vector<2x128xf32>
    %c0_143 = arith.constant 0 : index
    %c0_144 = arith.constant 0 : index
    %c0_145 = arith.constant 0 : index
    %399 = vector.load %arg2[%c0_143, %c0_144, %c0_145] : memref<2x32x128xf32, #tpu.memory_space<vmem>>, vector<1x32x128xf32>
    %400 = vector.shape_cast %399 : vector<1x32x128xf32> to vector<32x128xf32>
    %cst_146 = arith.constant dense<0.000000e+00> : vector<2x128xf32>
    %401 = tpu.matmul %378, %400, %cst_146 {dimension_numbers = #tpu.dot_dimension_numbers<[1], [0], [0], [1], [0, 0, 1, 1], [], []>} : vector<2x32xf32>, vector<32x128xf32>, vector<2x128xf32> -> vector<2x128xf32>
    %402 = arith.addf %398, %401 : vector<2x128xf32>
    %403 = arith.index_cast %395 : i32 to index
    %c0_147 = arith.constant 0 : index
    %c128_148 = arith.constant 128 : index
    %404 = vector.load %arg10[%403, %c0_147, %c128_148] : memref<8x2x256xf32, #tpu.memory_space<vmem>>, vector<1x2x128xf32>
    %405 = vector.shape_cast %404 : vector<1x2x128xf32> to vector<2x128xf32>
    %c1_149 = arith.constant 1 : index
    %c0_150 = arith.constant 0 : index
    %c0_151 = arith.constant 0 : index
    %406 = vector.load %arg2[%c1_149, %c0_150, %c0_151] : memref<2x32x128xf32, #tpu.memory_space<vmem>>, vector<1x32x128xf32>
    %407 = vector.shape_cast %406 : vector<1x32x128xf32> to vector<32x128xf32>
    %cst_152 = arith.constant dense<0.000000e+00> : vector<2x128xf32>
    %408 = tpu.matmul %386, %407, %cst_152 {dimension_numbers = #tpu.dot_dimension_numbers<[1], [0], [0], [1], [0, 0, 1, 1], [], []>} : vector<2x32xf32>, vector<32x128xf32>, vector<2x128xf32> -> vector<2x128xf32>
    %409 = arith.addf %405, %408 : vector<2x128xf32>
    %410 = vector.extract_strided_slice %402 {offsets = [0, 0], sizes = [2, 96], strides = [1, 1]} : vector<2x128xf32> to vector<2x96xf32>
    %411 = arith.negf %410 : vector<2x96xf32>
    %412 = math.exp %411 : vector<2x96xf32>
    %cst_153 = arith.constant 1.000000e+00 : f32
    %413 = vector.broadcast %cst_153 : f32 to vector<2x96xf32>
    %414 = arith.addf %413, %412 : vector<2x96xf32>
    %415 = arith.divf %413, %414 : vector<2x96xf32>
    %416 = vector.extract_strided_slice %402 {offsets = [0, 96], sizes = [2, 32], strides = [1, 1]} : vector<2x128xf32> to vector<2x32xf32>
    %417 = math.tanh %416 : vector<2x32xf32>
    %418 = vector.extract_strided_slice %409 {offsets = [0, 0], sizes = [2, 96], strides = [1, 1]} : vector<2x128xf32> to vector<2x96xf32>
    %419 = arith.negf %418 : vector<2x96xf32>
    %420 = math.exp %419 : vector<2x96xf32>
    %cst_154 = arith.constant 1.000000e+00 : f32
    %421 = vector.broadcast %cst_154 : f32 to vector<2x96xf32>
    %422 = arith.addf %421, %420 : vector<2x96xf32>
    %423 = arith.divf %421, %422 : vector<2x96xf32>
    %424 = vector.extract_strided_slice %409 {offsets = [0, 96], sizes = [2, 32], strides = [1, 1]} : vector<2x128xf32> to vector<2x32xf32>
    %425 = math.tanh %424 : vector<2x32xf32>
    %426 = vector.extract_strided_slice %415 {offsets = [0, 32], sizes = [2, 32], strides = [1, 1]} : vector<2x96xf32> to vector<2x32xf32>
    %427 = arith.mulf %426, %375 : vector<2x32xf32>
    %428 = vector.extract_strided_slice %415 {offsets = [0, 0], sizes = [2, 32], strides = [1, 1]} : vector<2x96xf32> to vector<2x32xf32>
    %429 = arith.mulf %428, %417 : vector<2x32xf32>
    %430 = arith.addf %427, %429 : vector<2x32xf32>
    %431 = vector.extract_strided_slice %415 {offsets = [0, 64], sizes = [2, 32], strides = [1, 1]} : vector<2x96xf32> to vector<2x32xf32>
    %432 = math.tanh %430 : vector<2x32xf32>
    %433 = arith.mulf %431, %432 : vector<2x32xf32>
    %434 = vector.extract_strided_slice %423 {offsets = [0, 32], sizes = [2, 32], strides = [1, 1]} : vector<2x96xf32> to vector<2x32xf32>
    %435 = arith.mulf %434, %383 : vector<2x32xf32>
    %436 = vector.extract_strided_slice %423 {offsets = [0, 0], sizes = [2, 32], strides = [1, 1]} : vector<2x96xf32> to vector<2x32xf32>
    %437 = arith.mulf %436, %425 : vector<2x32xf32>
    %438 = arith.addf %435, %437 : vector<2x32xf32>
    %439 = vector.extract_strided_slice %423 {offsets = [0, 64], sizes = [2, 32], strides = [1, 1]} : vector<2x96xf32> to vector<2x32xf32>
    %440 = math.tanh %438 : vector<2x32xf32>
    %441 = arith.mulf %439, %440 : vector<2x32xf32>
    %442 = arith.index_cast %c7_i32_139 : i32 to index
    %c0_155 = arith.constant 0 : index
    %c0_156 = arith.constant 0 : index
    %443 = vector.load %arg11[%442, %c0_155, %c0_156] : memref<8x2x64xf32, #tpu.memory_space<vmem>>, vector<1x2x32xf32>
    %444 = vector.shape_cast %443 : vector<1x2x32xf32> to vector<2x32xf32>
    %445 = vector.shape_cast %433 : vector<2x32xf32> to vector<1x2x32xf32>
    tpu.vector_store %arg11[%442, %c0_155, %c0_156], %445 {strides = array<i32>} : memref<8x2x64xf32, #tpu.memory_space<vmem>>, vector<1x2x32xf32>,
    %446 = arith.index_cast %395 : i32 to index
    %c0_157 = arith.constant 0 : index
    %c32_158 = arith.constant 32 : index
    %447 = vector.load %arg11[%446, %c0_157, %c32_158] : memref<8x2x64xf32, #tpu.memory_space<vmem>>, vector<1x2x32xf32>
    %448 = vector.shape_cast %447 : vector<1x2x32xf32> to vector<2x32xf32>
    %449 = vector.shape_cast %441 : vector<2x32xf32> to vector<1x2x32xf32>
    tpu.vector_store %arg11[%446, %c0_157, %c32_158], %449 {strides = array<i32>} : memref<8x2x64xf32, #tpu.memory_space<vmem>>, vector<1x2x32xf32>,
    %c8_i32 = arith.constant 8 : i32
    %c0_159 = arith.constant 0 : index
    %c0_160 = arith.constant 0 : index
    %c0_161 = arith.constant 0 : index
    %450 = vector.load %arg11[%c0_159, %c0_160, %c0_161] : memref<8x2x64xf32, #tpu.memory_space<vmem>>, vector<8x2x64xf32>
    %451 = vector.shape_cast %450 : vector<8x2x64xf32> to vector<16x64xf32>
    %c0_162 = arith.constant 0 : index
    %c0_163 = arith.constant 0 : index
    %452 = vector.load %arg4[%c0_162, %c0_163] : memref<64x256xf32, #tpu.memory_space<vmem>>, vector<64x256xf32>
    %cst_164 = arith.constant dense<0.000000e+00> : vector<16x256xf32>
    %453 = tpu.matmul %451, %452, %cst_164 {dimension_numbers = #tpu.dot_dimension_numbers<[1], [0], [0], [1], [0, 0, 1, 1], [], []>} : vector<16x64xf32>, vector<64x256xf32>, vector<16x256xf32> -> vector<16x256xf32>
    %c0_165 = arith.constant 0 : index
    %c0_166 = arith.constant 0 : index
    %454 = vector.load %arg6[%c0_165, %c0_166] : memref<1x256xf32, #tpu.memory_space<vmem>>, vector<1x256xf32>
    %455 = vector.broadcast %454 : vector<1x256xf32> to vector<16x256xf32>
    %456 = arith.addf %453, %455 : vector<16x256xf32>
    %457 = vector.shape_cast %456 : vector<16x256xf32> to vector<8x2x256xf32>
    %c0_167 = arith.constant 0 : index
    %c0_168 = arith.constant 0 : index
    %c0_169 = arith.constant 0 : index
    %458 = vector.load %arg10[%c0_167, %c0_168, %c0_169] : memref<8x2x256xf32, #tpu.memory_space<vmem>>, vector<8x2x256xf32>
    tpu.vector_store %arg10[%c0_167, %c0_168, %c0_169], %457 {strides = array<i32>} : memref<8x2x256xf32, #tpu.memory_space<vmem>>, vector<8x2x256xf32>,
    %cst_170 = arith.constant 0.000000e+00 : f32
    %459 = vector.broadcast %cst_170 : f32 to vector<2x32xf32>
    %c0_i32_171 = arith.constant 0 : i32
    %c7_i32_172 = arith.constant 7 : i32
    %460 = arith.subi %c7_i32_172, %c0_i32_171 : i32
    %461 = arith.index_cast %c0_i32_171 : i32 to index
    %c0_173 = arith.constant 0 : index
    %c0_174 = arith.constant 0 : index
    %462 = vector.load %arg10[%461, %c0_173, %c0_174] : memref<8x2x256xf32, #tpu.memory_space<vmem>>, vector<1x2x128xf32>
    %463 = vector.shape_cast %462 : vector<1x2x128xf32> to vector<2x128xf32>
    %c0_175 = arith.constant 0 : index
    %c0_176 = arith.constant 0 : index
    %c0_177 = arith.constant 0 : index
    %464 = vector.load %arg5[%c0_175, %c0_176, %c0_177] : memref<2x32x128xf32, #tpu.memory_space<vmem>>, vector<1x32x128xf32>
    %465 = vector.shape_cast %464 : vector<1x32x128xf32> to vector<32x128xf32>
    %cst_178 = arith.constant dense<0.000000e+00> : vector<2x128xf32>
    %466 = tpu.matmul %459, %465, %cst_178 {dimension_numbers = #tpu.dot_dimension_numbers<[1], [0], [0], [1], [0, 0, 1, 1], [], []>} : vector<2x32xf32>, vector<32x128xf32>, vector<2x128xf32> -> vector<2x128xf32>
    %467 = arith.addf %463, %466 : vector<2x128xf32>
    %468 = arith.index_cast %460 : i32 to index
    %c0_179 = arith.constant 0 : index
    %c128_180 = arith.constant 128 : index
    %469 = vector.load %arg10[%468, %c0_179, %c128_180] : memref<8x2x256xf32, #tpu.memory_space<vmem>>, vector<1x2x128xf32>
    %470 = vector.shape_cast %469 : vector<1x2x128xf32> to vector<2x128xf32>
    %c1_181 = arith.constant 1 : index
    %c0_182 = arith.constant 0 : index
    %c0_183 = arith.constant 0 : index
    %471 = vector.load %arg5[%c1_181, %c0_182, %c0_183] : memref<2x32x128xf32, #tpu.memory_space<vmem>>, vector<1x32x128xf32>
    %472 = vector.shape_cast %471 : vector<1x32x128xf32> to vector<32x128xf32>
    %cst_184 = arith.constant dense<0.000000e+00> : vector<2x128xf32>
    %473 = tpu.matmul %459, %472, %cst_184 {dimension_numbers = #tpu.dot_dimension_numbers<[1], [0], [0], [1], [0, 0, 1, 1], [], []>} : vector<2x32xf32>, vector<32x128xf32>, vector<2x128xf32> -> vector<2x128xf32>
    %474 = arith.addf %470, %473 : vector<2x128xf32>
    %475 = vector.extract_strided_slice %467 {offsets = [0, 0], sizes = [2, 96], strides = [1, 1]} : vector<2x128xf32> to vector<2x96xf32>
    %476 = arith.negf %475 : vector<2x96xf32>
    %477 = math.exp %476 : vector<2x96xf32>
    %cst_185 = arith.constant 1.000000e+00 : f32
    %478 = vector.broadcast %cst_185 : f32 to vector<2x96xf32>
    %479 = arith.addf %478, %477 : vector<2x96xf32>
    %480 = arith.divf %478, %479 : vector<2x96xf32>
    %481 = vector.extract_strided_slice %467 {offsets = [0, 96], sizes = [2, 32], strides = [1, 1]} : vector<2x128xf32> to vector<2x32xf32>
    %482 = math.tanh %481 : vector<2x32xf32>
    %483 = vector.extract_strided_slice %474 {offsets = [0, 0], sizes = [2, 96], strides = [1, 1]} : vector<2x128xf32> to vector<2x96xf32>
    %484 = arith.negf %483 : vector<2x96xf32>
    %485 = math.exp %484 : vector<2x96xf32>
    %cst_186 = arith.constant 1.000000e+00 : f32
    %486 = vector.broadcast %cst_186 : f32 to vector<2x96xf32>
    %487 = arith.addf %486, %485 : vector<2x96xf32>
    %488 = arith.divf %486, %487 : vector<2x96xf32>
    %489 = vector.extract_strided_slice %474 {offsets = [0, 96], sizes = [2, 32], strides = [1, 1]} : vector<2x128xf32> to vector<2x32xf32>
    %490 = math.tanh %489 : vector<2x32xf32>
    %491 = vector.extract_strided_slice %480 {offsets = [0, 32], sizes = [2, 32], strides = [1, 1]} : vector<2x96xf32> to vector<2x32xf32>
    %492 = arith.mulf %491, %459 : vector<2x32xf32>
    %493 = vector.extract_strided_slice %480 {offsets = [0, 0], sizes = [2, 32], strides = [1, 1]} : vector<2x96xf32> to vector<2x32xf32>
    %494 = arith.mulf %493, %482 : vector<2x32xf32>
    %495 = arith.addf %492, %494 : vector<2x32xf32>
    %496 = vector.extract_strided_slice %480 {offsets = [0, 64], sizes = [2, 32], strides = [1, 1]} : vector<2x96xf32> to vector<2x32xf32>
    %497 = math.tanh %495 : vector<2x32xf32>
    %498 = arith.mulf %496, %497 : vector<2x32xf32>
    %499 = vector.extract_strided_slice %488 {offsets = [0, 32], sizes = [2, 32], strides = [1, 1]} : vector<2x96xf32> to vector<2x32xf32>
    %500 = arith.mulf %499, %459 : vector<2x32xf32>
    %501 = vector.extract_strided_slice %488 {offsets = [0, 0], sizes = [2, 32], strides = [1, 1]} : vector<2x96xf32> to vector<2x32xf32>
    %502 = arith.mulf %501, %490 : vector<2x32xf32>
    %503 = arith.addf %500, %502 : vector<2x32xf32>
    %504 = vector.extract_strided_slice %488 {offsets = [0, 64], sizes = [2, 32], strides = [1, 1]} : vector<2x96xf32> to vector<2x32xf32>
    %505 = math.tanh %503 : vector<2x32xf32>
    %506 = arith.mulf %504, %505 : vector<2x32xf32>
    %507 = arith.index_cast %c0_i32_171 : i32 to index
    %c0_187 = arith.constant 0 : index
    %c0_188 = arith.constant 0 : index
    %508 = vector.load %arg11[%507, %c0_187, %c0_188] : memref<8x2x64xf32, #tpu.memory_space<vmem>>, vector<1x2x32xf32>
    %509 = vector.shape_cast %508 : vector<1x2x32xf32> to vector<2x32xf32>
    %510 = vector.shape_cast %498 : vector<2x32xf32> to vector<1x2x32xf32>
    tpu.vector_store %arg11[%507, %c0_187, %c0_188], %510 {strides = array<i32>} : memref<8x2x64xf32, #tpu.memory_space<vmem>>, vector<1x2x32xf32>,
    %511 = arith.index_cast %460 : i32 to index
    %c0_189 = arith.constant 0 : index
    %c32_190 = arith.constant 32 : index
    %512 = vector.load %arg11[%511, %c0_189, %c32_190] : memref<8x2x64xf32, #tpu.memory_space<vmem>>, vector<1x2x32xf32>
    %513 = vector.shape_cast %512 : vector<1x2x32xf32> to vector<2x32xf32>
    %514 = vector.shape_cast %506 : vector<2x32xf32> to vector<1x2x32xf32>
    tpu.vector_store %arg11[%511, %c0_189, %c32_190], %514 {strides = array<i32>} : memref<8x2x64xf32, #tpu.memory_space<vmem>>, vector<1x2x32xf32>,
    %c1_i32_191 = arith.constant 1 : i32
    %c7_i32_192 = arith.constant 7 : i32
    %515 = arith.subi %c7_i32_192, %c1_i32_191 : i32
    %516 = arith.index_cast %c1_i32_191 : i32 to index
    %c0_193 = arith.constant 0 : index
    %c0_194 = arith.constant 0 : index
    %517 = vector.load %arg10[%516, %c0_193, %c0_194] : memref<8x2x256xf32, #tpu.memory_space<vmem>>, vector<1x2x128xf32>
    %518 = vector.shape_cast %517 : vector<1x2x128xf32> to vector<2x128xf32>
    %c0_195 = arith.constant 0 : index
    %c0_196 = arith.constant 0 : index
    %c0_197 = arith.constant 0 : index
    %519 = vector.load %arg5[%c0_195, %c0_196, %c0_197] : memref<2x32x128xf32, #tpu.memory_space<vmem>>, vector<1x32x128xf32>
    %520 = vector.shape_cast %519 : vector<1x32x128xf32> to vector<32x128xf32>
    %cst_198 = arith.constant dense<0.000000e+00> : vector<2x128xf32>
    %521 = tpu.matmul %498, %520, %cst_198 {dimension_numbers = #tpu.dot_dimension_numbers<[1], [0], [0], [1], [0, 0, 1, 1], [], []>} : vector<2x32xf32>, vector<32x128xf32>, vector<2x128xf32> -> vector<2x128xf32>
    %522 = arith.addf %518, %521 : vector<2x128xf32>
    %523 = arith.index_cast %515 : i32 to index
    %c0_199 = arith.constant 0 : index
    %c128_200 = arith.constant 128 : index
    %524 = vector.load %arg10[%523, %c0_199, %c128_200] : memref<8x2x256xf32, #tpu.memory_space<vmem>>, vector<1x2x128xf32>
    %525 = vector.shape_cast %524 : vector<1x2x128xf32> to vector<2x128xf32>
    %c1_201 = arith.constant 1 : index
    %c0_202 = arith.constant 0 : index
    %c0_203 = arith.constant 0 : index
    %526 = vector.load %arg5[%c1_201, %c0_202, %c0_203] : memref<2x32x128xf32, #tpu.memory_space<vmem>>, vector<1x32x128xf32>
    %527 = vector.shape_cast %526 : vector<1x32x128xf32> to vector<32x128xf32>
    %cst_204 = arith.constant dense<0.000000e+00> : vector<2x128xf32>
    %528 = tpu.matmul %506, %527, %cst_204 {dimension_numbers = #tpu.dot_dimension_numbers<[1], [0], [0], [1], [0, 0, 1, 1], [], []>} : vector<2x32xf32>, vector<32x128xf32>, vector<2x128xf32> -> vector<2x128xf32>
    %529 = arith.addf %525, %528 : vector<2x128xf32>
    %530 = vector.extract_strided_slice %522 {offsets = [0, 0], sizes = [2, 96], strides = [1, 1]} : vector<2x128xf32> to vector<2x96xf32>
    %531 = arith.negf %530 : vector<2x96xf32>
    %532 = math.exp %531 : vector<2x96xf32>
    %cst_205 = arith.constant 1.000000e+00 : f32
    %533 = vector.broadcast %cst_205 : f32 to vector<2x96xf32>
    %534 = arith.addf %533, %532 : vector<2x96xf32>
    %535 = arith.divf %533, %534 : vector<2x96xf32>
    %536 = vector.extract_strided_slice %522 {offsets = [0, 96], sizes = [2, 32], strides = [1, 1]} : vector<2x128xf32> to vector<2x32xf32>
    %537 = math.tanh %536 : vector<2x32xf32>
    %538 = vector.extract_strided_slice %529 {offsets = [0, 0], sizes = [2, 96], strides = [1, 1]} : vector<2x128xf32> to vector<2x96xf32>
    %539 = arith.negf %538 : vector<2x96xf32>
    %540 = math.exp %539 : vector<2x96xf32>
    %cst_206 = arith.constant 1.000000e+00 : f32
    %541 = vector.broadcast %cst_206 : f32 to vector<2x96xf32>
    %542 = arith.addf %541, %540 : vector<2x96xf32>
    %543 = arith.divf %541, %542 : vector<2x96xf32>
    %544 = vector.extract_strided_slice %529 {offsets = [0, 96], sizes = [2, 32], strides = [1, 1]} : vector<2x128xf32> to vector<2x32xf32>
    %545 = math.tanh %544 : vector<2x32xf32>
    %546 = vector.extract_strided_slice %535 {offsets = [0, 32], sizes = [2, 32], strides = [1, 1]} : vector<2x96xf32> to vector<2x32xf32>
    %547 = arith.mulf %546, %495 : vector<2x32xf32>
    %548 = vector.extract_strided_slice %535 {offsets = [0, 0], sizes = [2, 32], strides = [1, 1]} : vector<2x96xf32> to vector<2x32xf32>
    %549 = arith.mulf %548, %537 : vector<2x32xf32>
    %550 = arith.addf %547, %549 : vector<2x32xf32>
    %551 = vector.extract_strided_slice %535 {offsets = [0, 64], sizes = [2, 32], strides = [1, 1]} : vector<2x96xf32> to vector<2x32xf32>
    %552 = math.tanh %550 : vector<2x32xf32>
    %553 = arith.mulf %551, %552 : vector<2x32xf32>
    %554 = vector.extract_strided_slice %543 {offsets = [0, 32], sizes = [2, 32], strides = [1, 1]} : vector<2x96xf32> to vector<2x32xf32>
    %555 = arith.mulf %554, %503 : vector<2x32xf32>
    %556 = vector.extract_strided_slice %543 {offsets = [0, 0], sizes = [2, 32], strides = [1, 1]} : vector<2x96xf32> to vector<2x32xf32>
    %557 = arith.mulf %556, %545 : vector<2x32xf32>
    %558 = arith.addf %555, %557 : vector<2x32xf32>
    %559 = vector.extract_strided_slice %543 {offsets = [0, 64], sizes = [2, 32], strides = [1, 1]} : vector<2x96xf32> to vector<2x32xf32>
    %560 = math.tanh %558 : vector<2x32xf32>
    %561 = arith.mulf %559, %560 : vector<2x32xf32>
    %562 = arith.index_cast %c1_i32_191 : i32 to index
    %c0_207 = arith.constant 0 : index
    %c0_208 = arith.constant 0 : index
    %563 = vector.load %arg11[%562, %c0_207, %c0_208] : memref<8x2x64xf32, #tpu.memory_space<vmem>>, vector<1x2x32xf32>
    %564 = vector.shape_cast %563 : vector<1x2x32xf32> to vector<2x32xf32>
    %565 = vector.shape_cast %553 : vector<2x32xf32> to vector<1x2x32xf32>
    tpu.vector_store %arg11[%562, %c0_207, %c0_208], %565 {strides = array<i32>} : memref<8x2x64xf32, #tpu.memory_space<vmem>>, vector<1x2x32xf32>,
    %566 = arith.index_cast %515 : i32 to index
    %c0_209 = arith.constant 0 : index
    %c32_210 = arith.constant 32 : index
    %567 = vector.load %arg11[%566, %c0_209, %c32_210] : memref<8x2x64xf32, #tpu.memory_space<vmem>>, vector<1x2x32xf32>
    %568 = vector.shape_cast %567 : vector<1x2x32xf32> to vector<2x32xf32>
    %569 = vector.shape_cast %561 : vector<2x32xf32> to vector<1x2x32xf32>
    tpu.vector_store %arg11[%566, %c0_209, %c32_210], %569 {strides = array<i32>} : memref<8x2x64xf32, #tpu.memory_space<vmem>>, vector<1x2x32xf32>,
    %c2_i32_211 = arith.constant 2 : i32
    %c7_i32_212 = arith.constant 7 : i32
    %570 = arith.subi %c7_i32_212, %c2_i32_211 : i32
    %571 = arith.index_cast %c2_i32_211 : i32 to index
    %c0_213 = arith.constant 0 : index
    %c0_214 = arith.constant 0 : index
    %572 = vector.load %arg10[%571, %c0_213, %c0_214] : memref<8x2x256xf32, #tpu.memory_space<vmem>>, vector<1x2x128xf32>
    %573 = vector.shape_cast %572 : vector<1x2x128xf32> to vector<2x128xf32>
    %c0_215 = arith.constant 0 : index
    %c0_216 = arith.constant 0 : index
    %c0_217 = arith.constant 0 : index
    %574 = vector.load %arg5[%c0_215, %c0_216, %c0_217] : memref<2x32x128xf32, #tpu.memory_space<vmem>>, vector<1x32x128xf32>
    %575 = vector.shape_cast %574 : vector<1x32x128xf32> to vector<32x128xf32>
    %cst_218 = arith.constant dense<0.000000e+00> : vector<2x128xf32>
    %576 = tpu.matmul %553, %575, %cst_218 {dimension_numbers = #tpu.dot_dimension_numbers<[1], [0], [0], [1], [0, 0, 1, 1], [], []>} : vector<2x32xf32>, vector<32x128xf32>, vector<2x128xf32> -> vector<2x128xf32>
    %577 = arith.addf %573, %576 : vector<2x128xf32>
    %578 = arith.index_cast %570 : i32 to index
    %c0_219 = arith.constant 0 : index
    %c128_220 = arith.constant 128 : index
    %579 = vector.load %arg10[%578, %c0_219, %c128_220] : memref<8x2x256xf32, #tpu.memory_space<vmem>>, vector<1x2x128xf32>
    %580 = vector.shape_cast %579 : vector<1x2x128xf32> to vector<2x128xf32>
    %c1_221 = arith.constant 1 : index
    %c0_222 = arith.constant 0 : index
    %c0_223 = arith.constant 0 : index
    %581 = vector.load %arg5[%c1_221, %c0_222, %c0_223] : memref<2x32x128xf32, #tpu.memory_space<vmem>>, vector<1x32x128xf32>
    %582 = vector.shape_cast %581 : vector<1x32x128xf32> to vector<32x128xf32>
    %cst_224 = arith.constant dense<0.000000e+00> : vector<2x128xf32>
    %583 = tpu.matmul %561, %582, %cst_224 {dimension_numbers = #tpu.dot_dimension_numbers<[1], [0], [0], [1], [0, 0, 1, 1], [], []>} : vector<2x32xf32>, vector<32x128xf32>, vector<2x128xf32> -> vector<2x128xf32>
    %584 = arith.addf %580, %583 : vector<2x128xf32>
    %585 = vector.extract_strided_slice %577 {offsets = [0, 0], sizes = [2, 96], strides = [1, 1]} : vector<2x128xf32> to vector<2x96xf32>
    %586 = arith.negf %585 : vector<2x96xf32>
    %587 = math.exp %586 : vector<2x96xf32>
    %cst_225 = arith.constant 1.000000e+00 : f32
    %588 = vector.broadcast %cst_225 : f32 to vector<2x96xf32>
    %589 = arith.addf %588, %587 : vector<2x96xf32>
    %590 = arith.divf %588, %589 : vector<2x96xf32>
    %591 = vector.extract_strided_slice %577 {offsets = [0, 96], sizes = [2, 32], strides = [1, 1]} : vector<2x128xf32> to vector<2x32xf32>
    %592 = math.tanh %591 : vector<2x32xf32>
    %593 = vector.extract_strided_slice %584 {offsets = [0, 0], sizes = [2, 96], strides = [1, 1]} : vector<2x128xf32> to vector<2x96xf32>
    %594 = arith.negf %593 : vector<2x96xf32>
    %595 = math.exp %594 : vector<2x96xf32>
    %cst_226 = arith.constant 1.000000e+00 : f32
    %596 = vector.broadcast %cst_226 : f32 to vector<2x96xf32>
    %597 = arith.addf %596, %595 : vector<2x96xf32>
    %598 = arith.divf %596, %597 : vector<2x96xf32>
    %599 = vector.extract_strided_slice %584 {offsets = [0, 96], sizes = [2, 32], strides = [1, 1]} : vector<2x128xf32> to vector<2x32xf32>
    %600 = math.tanh %599 : vector<2x32xf32>
    %601 = vector.extract_strided_slice %590 {offsets = [0, 32], sizes = [2, 32], strides = [1, 1]} : vector<2x96xf32> to vector<2x32xf32>
    %602 = arith.mulf %601, %550 : vector<2x32xf32>
    %603 = vector.extract_strided_slice %590 {offsets = [0, 0], sizes = [2, 32], strides = [1, 1]} : vector<2x96xf32> to vector<2x32xf32>
    %604 = arith.mulf %603, %592 : vector<2x32xf32>
    %605 = arith.addf %602, %604 : vector<2x32xf32>
    %606 = vector.extract_strided_slice %590 {offsets = [0, 64], sizes = [2, 32], strides = [1, 1]} : vector<2x96xf32> to vector<2x32xf32>
    %607 = math.tanh %605 : vector<2x32xf32>
    %608 = arith.mulf %606, %607 : vector<2x32xf32>
    %609 = vector.extract_strided_slice %598 {offsets = [0, 32], sizes = [2, 32], strides = [1, 1]} : vector<2x96xf32> to vector<2x32xf32>
    %610 = arith.mulf %609, %558 : vector<2x32xf32>
    %611 = vector.extract_strided_slice %598 {offsets = [0, 0], sizes = [2, 32], strides = [1, 1]} : vector<2x96xf32> to vector<2x32xf32>
    %612 = arith.mulf %611, %600 : vector<2x32xf32>
    %613 = arith.addf %610, %612 : vector<2x32xf32>
    %614 = vector.extract_strided_slice %598 {offsets = [0, 64], sizes = [2, 32], strides = [1, 1]} : vector<2x96xf32> to vector<2x32xf32>
    %615 = math.tanh %613 : vector<2x32xf32>
    %616 = arith.mulf %614, %615 : vector<2x32xf32>
    %617 = arith.index_cast %c2_i32_211 : i32 to index
    %c0_227 = arith.constant 0 : index
    %c0_228 = arith.constant 0 : index
    %618 = vector.load %arg11[%617, %c0_227, %c0_228] : memref<8x2x64xf32, #tpu.memory_space<vmem>>, vector<1x2x32xf32>
    %619 = vector.shape_cast %618 : vector<1x2x32xf32> to vector<2x32xf32>
    %620 = vector.shape_cast %608 : vector<2x32xf32> to vector<1x2x32xf32>
    tpu.vector_store %arg11[%617, %c0_227, %c0_228], %620 {strides = array<i32>} : memref<8x2x64xf32, #tpu.memory_space<vmem>>, vector<1x2x32xf32>,
    %621 = arith.index_cast %570 : i32 to index
    %c0_229 = arith.constant 0 : index
    %c32_230 = arith.constant 32 : index
    %622 = vector.load %arg11[%621, %c0_229, %c32_230] : memref<8x2x64xf32, #tpu.memory_space<vmem>>, vector<1x2x32xf32>
    %623 = vector.shape_cast %622 : vector<1x2x32xf32> to vector<2x32xf32>
    %624 = vector.shape_cast %616 : vector<2x32xf32> to vector<1x2x32xf32>
    tpu.vector_store %arg11[%621, %c0_229, %c32_230], %624 {strides = array<i32>} : memref<8x2x64xf32, #tpu.memory_space<vmem>>, vector<1x2x32xf32>,
    %c3_i32_231 = arith.constant 3 : i32
    %c7_i32_232 = arith.constant 7 : i32
    %625 = arith.subi %c7_i32_232, %c3_i32_231 : i32
    %626 = arith.index_cast %c3_i32_231 : i32 to index
    %c0_233 = arith.constant 0 : index
    %c0_234 = arith.constant 0 : index
    %627 = vector.load %arg10[%626, %c0_233, %c0_234] : memref<8x2x256xf32, #tpu.memory_space<vmem>>, vector<1x2x128xf32>
    %628 = vector.shape_cast %627 : vector<1x2x128xf32> to vector<2x128xf32>
    %c0_235 = arith.constant 0 : index
    %c0_236 = arith.constant 0 : index
    %c0_237 = arith.constant 0 : index
    %629 = vector.load %arg5[%c0_235, %c0_236, %c0_237] : memref<2x32x128xf32, #tpu.memory_space<vmem>>, vector<1x32x128xf32>
    %630 = vector.shape_cast %629 : vector<1x32x128xf32> to vector<32x128xf32>
    %cst_238 = arith.constant dense<0.000000e+00> : vector<2x128xf32>
    %631 = tpu.matmul %608, %630, %cst_238 {dimension_numbers = #tpu.dot_dimension_numbers<[1], [0], [0], [1], [0, 0, 1, 1], [], []>} : vector<2x32xf32>, vector<32x128xf32>, vector<2x128xf32> -> vector<2x128xf32>
    %632 = arith.addf %628, %631 : vector<2x128xf32>
    %633 = arith.index_cast %625 : i32 to index
    %c0_239 = arith.constant 0 : index
    %c128_240 = arith.constant 128 : index
    %634 = vector.load %arg10[%633, %c0_239, %c128_240] : memref<8x2x256xf32, #tpu.memory_space<vmem>>, vector<1x2x128xf32>
    %635 = vector.shape_cast %634 : vector<1x2x128xf32> to vector<2x128xf32>
    %c1_241 = arith.constant 1 : index
    %c0_242 = arith.constant 0 : index
    %c0_243 = arith.constant 0 : index
    %636 = vector.load %arg5[%c1_241, %c0_242, %c0_243] : memref<2x32x128xf32, #tpu.memory_space<vmem>>, vector<1x32x128xf32>
    %637 = vector.shape_cast %636 : vector<1x32x128xf32> to vector<32x128xf32>
    %cst_244 = arith.constant dense<0.000000e+00> : vector<2x128xf32>
    %638 = tpu.matmul %616, %637, %cst_244 {dimension_numbers = #tpu.dot_dimension_numbers<[1], [0], [0], [1], [0, 0, 1, 1], [], []>} : vector<2x32xf32>, vector<32x128xf32>, vector<2x128xf32> -> vector<2x128xf32>
    %639 = arith.addf %635, %638 : vector<2x128xf32>
    %640 = vector.extract_strided_slice %632 {offsets = [0, 0], sizes = [2, 96], strides = [1, 1]} : vector<2x128xf32> to vector<2x96xf32>
    %641 = arith.negf %640 : vector<2x96xf32>
    %642 = math.exp %641 : vector<2x96xf32>
    %cst_245 = arith.constant 1.000000e+00 : f32
    %643 = vector.broadcast %cst_245 : f32 to vector<2x96xf32>
    %644 = arith.addf %643, %642 : vector<2x96xf32>
    %645 = arith.divf %643, %644 : vector<2x96xf32>
    %646 = vector.extract_strided_slice %632 {offsets = [0, 96], sizes = [2, 32], strides = [1, 1]} : vector<2x128xf32> to vector<2x32xf32>
    %647 = math.tanh %646 : vector<2x32xf32>
    %648 = vector.extract_strided_slice %639 {offsets = [0, 0], sizes = [2, 96], strides = [1, 1]} : vector<2x128xf32> to vector<2x96xf32>
    %649 = arith.negf %648 : vector<2x96xf32>
    %650 = math.exp %649 : vector<2x96xf32>
    %cst_246 = arith.constant 1.000000e+00 : f32
    %651 = vector.broadcast %cst_246 : f32 to vector<2x96xf32>
    %652 = arith.addf %651, %650 : vector<2x96xf32>
    %653 = arith.divf %651, %652 : vector<2x96xf32>
    %654 = vector.extract_strided_slice %639 {offsets = [0, 96], sizes = [2, 32], strides = [1, 1]} : vector<2x128xf32> to vector<2x32xf32>
    %655 = math.tanh %654 : vector<2x32xf32>
    %656 = vector.extract_strided_slice %645 {offsets = [0, 32], sizes = [2, 32], strides = [1, 1]} : vector<2x96xf32> to vector<2x32xf32>
    %657 = arith.mulf %656, %605 : vector<2x32xf32>
    %658 = vector.extract_strided_slice %645 {offsets = [0, 0], sizes = [2, 32], strides = [1, 1]} : vector<2x96xf32> to vector<2x32xf32>
    %659 = arith.mulf %658, %647 : vector<2x32xf32>
    %660 = arith.addf %657, %659 : vector<2x32xf32>
    %661 = vector.extract_strided_slice %645 {offsets = [0, 64], sizes = [2, 32], strides = [1, 1]} : vector<2x96xf32> to vector<2x32xf32>
    %662 = math.tanh %660 : vector<2x32xf32>
    %663 = arith.mulf %661, %662 : vector<2x32xf32>
    %664 = vector.extract_strided_slice %653 {offsets = [0, 32], sizes = [2, 32], strides = [1, 1]} : vector<2x96xf32> to vector<2x32xf32>
    %665 = arith.mulf %664, %613 : vector<2x32xf32>
    %666 = vector.extract_strided_slice %653 {offsets = [0, 0], sizes = [2, 32], strides = [1, 1]} : vector<2x96xf32> to vector<2x32xf32>
    %667 = arith.mulf %666, %655 : vector<2x32xf32>
    %668 = arith.addf %665, %667 : vector<2x32xf32>
    %669 = vector.extract_strided_slice %653 {offsets = [0, 64], sizes = [2, 32], strides = [1, 1]} : vector<2x96xf32> to vector<2x32xf32>
    %670 = math.tanh %668 : vector<2x32xf32>
    %671 = arith.mulf %669, %670 : vector<2x32xf32>
    %672 = arith.index_cast %c3_i32_231 : i32 to index
    %c0_247 = arith.constant 0 : index
    %c0_248 = arith.constant 0 : index
    %673 = vector.load %arg11[%672, %c0_247, %c0_248] : memref<8x2x64xf32, #tpu.memory_space<vmem>>, vector<1x2x32xf32>
    %674 = vector.shape_cast %673 : vector<1x2x32xf32> to vector<2x32xf32>
    %675 = vector.shape_cast %663 : vector<2x32xf32> to vector<1x2x32xf32>
    tpu.vector_store %arg11[%672, %c0_247, %c0_248], %675 {strides = array<i32>} : memref<8x2x64xf32, #tpu.memory_space<vmem>>, vector<1x2x32xf32>,
    %676 = arith.index_cast %625 : i32 to index
    %c0_249 = arith.constant 0 : index
    %c32_250 = arith.constant 32 : index
    %677 = vector.load %arg11[%676, %c0_249, %c32_250] : memref<8x2x64xf32, #tpu.memory_space<vmem>>, vector<1x2x32xf32>
    %678 = vector.shape_cast %677 : vector<1x2x32xf32> to vector<2x32xf32>
    %679 = vector.shape_cast %671 : vector<2x32xf32> to vector<1x2x32xf32>
    tpu.vector_store %arg11[%676, %c0_249, %c32_250], %679 {strides = array<i32>} : memref<8x2x64xf32, #tpu.memory_space<vmem>>, vector<1x2x32xf32>,
    %c4_i32_251 = arith.constant 4 : i32
    %c7_i32_252 = arith.constant 7 : i32
    %680 = arith.subi %c7_i32_252, %c4_i32_251 : i32
    %681 = arith.index_cast %c4_i32_251 : i32 to index
    %c0_253 = arith.constant 0 : index
    %c0_254 = arith.constant 0 : index
    %682 = vector.load %arg10[%681, %c0_253, %c0_254] : memref<8x2x256xf32, #tpu.memory_space<vmem>>, vector<1x2x128xf32>
    %683 = vector.shape_cast %682 : vector<1x2x128xf32> to vector<2x128xf32>
    %c0_255 = arith.constant 0 : index
    %c0_256 = arith.constant 0 : index
    %c0_257 = arith.constant 0 : index
    %684 = vector.load %arg5[%c0_255, %c0_256, %c0_257] : memref<2x32x128xf32, #tpu.memory_space<vmem>>, vector<1x32x128xf32>
    %685 = vector.shape_cast %684 : vector<1x32x128xf32> to vector<32x128xf32>
    %cst_258 = arith.constant dense<0.000000e+00> : vector<2x128xf32>
    %686 = tpu.matmul %663, %685, %cst_258 {dimension_numbers = #tpu.dot_dimension_numbers<[1], [0], [0], [1], [0, 0, 1, 1], [], []>} : vector<2x32xf32>, vector<32x128xf32>, vector<2x128xf32> -> vector<2x128xf32>
    %687 = arith.addf %683, %686 : vector<2x128xf32>
    %688 = arith.index_cast %680 : i32 to index
    %c0_259 = arith.constant 0 : index
    %c128_260 = arith.constant 128 : index
    %689 = vector.load %arg10[%688, %c0_259, %c128_260] : memref<8x2x256xf32, #tpu.memory_space<vmem>>, vector<1x2x128xf32>
    %690 = vector.shape_cast %689 : vector<1x2x128xf32> to vector<2x128xf32>
    %c1_261 = arith.constant 1 : index
    %c0_262 = arith.constant 0 : index
    %c0_263 = arith.constant 0 : index
    %691 = vector.load %arg5[%c1_261, %c0_262, %c0_263] : memref<2x32x128xf32, #tpu.memory_space<vmem>>, vector<1x32x128xf32>
    %692 = vector.shape_cast %691 : vector<1x32x128xf32> to vector<32x128xf32>
    %cst_264 = arith.constant dense<0.000000e+00> : vector<2x128xf32>
    %693 = tpu.matmul %671, %692, %cst_264 {dimension_numbers = #tpu.dot_dimension_numbers<[1], [0], [0], [1], [0, 0, 1, 1], [], []>} : vector<2x32xf32>, vector<32x128xf32>, vector<2x128xf32> -> vector<2x128xf32>
    %694 = arith.addf %690, %693 : vector<2x128xf32>
    %695 = vector.extract_strided_slice %687 {offsets = [0, 0], sizes = [2, 96], strides = [1, 1]} : vector<2x128xf32> to vector<2x96xf32>
    %696 = arith.negf %695 : vector<2x96xf32>
    %697 = math.exp %696 : vector<2x96xf32>
    %cst_265 = arith.constant 1.000000e+00 : f32
    %698 = vector.broadcast %cst_265 : f32 to vector<2x96xf32>
    %699 = arith.addf %698, %697 : vector<2x96xf32>
    %700 = arith.divf %698, %699 : vector<2x96xf32>
    %701 = vector.extract_strided_slice %687 {offsets = [0, 96], sizes = [2, 32], strides = [1, 1]} : vector<2x128xf32> to vector<2x32xf32>
    %702 = math.tanh %701 : vector<2x32xf32>
    %703 = vector.extract_strided_slice %694 {offsets = [0, 0], sizes = [2, 96], strides = [1, 1]} : vector<2x128xf32> to vector<2x96xf32>
    %704 = arith.negf %703 : vector<2x96xf32>
    %705 = math.exp %704 : vector<2x96xf32>
    %cst_266 = arith.constant 1.000000e+00 : f32
    %706 = vector.broadcast %cst_266 : f32 to vector<2x96xf32>
    %707 = arith.addf %706, %705 : vector<2x96xf32>
    %708 = arith.divf %706, %707 : vector<2x96xf32>
    %709 = vector.extract_strided_slice %694 {offsets = [0, 96], sizes = [2, 32], strides = [1, 1]} : vector<2x128xf32> to vector<2x32xf32>
    %710 = math.tanh %709 : vector<2x32xf32>
    %711 = vector.extract_strided_slice %700 {offsets = [0, 32], sizes = [2, 32], strides = [1, 1]} : vector<2x96xf32> to vector<2x32xf32>
    %712 = arith.mulf %711, %660 : vector<2x32xf32>
    %713 = vector.extract_strided_slice %700 {offsets = [0, 0], sizes = [2, 32], strides = [1, 1]} : vector<2x96xf32> to vector<2x32xf32>
    %714 = arith.mulf %713, %702 : vector<2x32xf32>
    %715 = arith.addf %712, %714 : vector<2x32xf32>
    %716 = vector.extract_strided_slice %700 {offsets = [0, 64], sizes = [2, 32], strides = [1, 1]} : vector<2x96xf32> to vector<2x32xf32>
    %717 = math.tanh %715 : vector<2x32xf32>
    %718 = arith.mulf %716, %717 : vector<2x32xf32>
    %719 = vector.extract_strided_slice %708 {offsets = [0, 32], sizes = [2, 32], strides = [1, 1]} : vector<2x96xf32> to vector<2x32xf32>
    %720 = arith.mulf %719, %668 : vector<2x32xf32>
    %721 = vector.extract_strided_slice %708 {offsets = [0, 0], sizes = [2, 32], strides = [1, 1]} : vector<2x96xf32> to vector<2x32xf32>
    %722 = arith.mulf %721, %710 : vector<2x32xf32>
    %723 = arith.addf %720, %722 : vector<2x32xf32>
    %724 = vector.extract_strided_slice %708 {offsets = [0, 64], sizes = [2, 32], strides = [1, 1]} : vector<2x96xf32> to vector<2x32xf32>
    %725 = math.tanh %723 : vector<2x32xf32>
    %726 = arith.mulf %724, %725 : vector<2x32xf32>
    %727 = arith.index_cast %c4_i32_251 : i32 to index
    %c0_267 = arith.constant 0 : index
    %c0_268 = arith.constant 0 : index
    %728 = vector.load %arg11[%727, %c0_267, %c0_268] : memref<8x2x64xf32, #tpu.memory_space<vmem>>, vector<1x2x32xf32>
    %729 = vector.shape_cast %728 : vector<1x2x32xf32> to vector<2x32xf32>
    %730 = vector.shape_cast %718 : vector<2x32xf32> to vector<1x2x32xf32>
    tpu.vector_store %arg11[%727, %c0_267, %c0_268], %730 {strides = array<i32>} : memref<8x2x64xf32, #tpu.memory_space<vmem>>, vector<1x2x32xf32>,
    %731 = arith.index_cast %680 : i32 to index
    %c0_269 = arith.constant 0 : index
    %c32_270 = arith.constant 32 : index
    %732 = vector.load %arg11[%731, %c0_269, %c32_270] : memref<8x2x64xf32, #tpu.memory_space<vmem>>, vector<1x2x32xf32>
    %733 = vector.shape_cast %732 : vector<1x2x32xf32> to vector<2x32xf32>
    %734 = vector.shape_cast %726 : vector<2x32xf32> to vector<1x2x32xf32>
    tpu.vector_store %arg11[%731, %c0_269, %c32_270], %734 {strides = array<i32>} : memref<8x2x64xf32, #tpu.memory_space<vmem>>, vector<1x2x32xf32>,
    %c5_i32_271 = arith.constant 5 : i32
    %c7_i32_272 = arith.constant 7 : i32
    %735 = arith.subi %c7_i32_272, %c5_i32_271 : i32
    %736 = arith.index_cast %c5_i32_271 : i32 to index
    %c0_273 = arith.constant 0 : index
    %c0_274 = arith.constant 0 : index
    %737 = vector.load %arg10[%736, %c0_273, %c0_274] : memref<8x2x256xf32, #tpu.memory_space<vmem>>, vector<1x2x128xf32>
    %738 = vector.shape_cast %737 : vector<1x2x128xf32> to vector<2x128xf32>
    %c0_275 = arith.constant 0 : index
    %c0_276 = arith.constant 0 : index
    %c0_277 = arith.constant 0 : index
    %739 = vector.load %arg5[%c0_275, %c0_276, %c0_277] : memref<2x32x128xf32, #tpu.memory_space<vmem>>, vector<1x32x128xf32>
    %740 = vector.shape_cast %739 : vector<1x32x128xf32> to vector<32x128xf32>
    %cst_278 = arith.constant dense<0.000000e+00> : vector<2x128xf32>
    %741 = tpu.matmul %718, %740, %cst_278 {dimension_numbers = #tpu.dot_dimension_numbers<[1], [0], [0], [1], [0, 0, 1, 1], [], []>} : vector<2x32xf32>, vector<32x128xf32>, vector<2x128xf32> -> vector<2x128xf32>
    %742 = arith.addf %738, %741 : vector<2x128xf32>
    %743 = arith.index_cast %735 : i32 to index
    %c0_279 = arith.constant 0 : index
    %c128_280 = arith.constant 128 : index
    %744 = vector.load %arg10[%743, %c0_279, %c128_280] : memref<8x2x256xf32, #tpu.memory_space<vmem>>, vector<1x2x128xf32>
    %745 = vector.shape_cast %744 : vector<1x2x128xf32> to vector<2x128xf32>
    %c1_281 = arith.constant 1 : index
    %c0_282 = arith.constant 0 : index
    %c0_283 = arith.constant 0 : index
    %746 = vector.load %arg5[%c1_281, %c0_282, %c0_283] : memref<2x32x128xf32, #tpu.memory_space<vmem>>, vector<1x32x128xf32>
    %747 = vector.shape_cast %746 : vector<1x32x128xf32> to vector<32x128xf32>
    %cst_284 = arith.constant dense<0.000000e+00> : vector<2x128xf32>
    %748 = tpu.matmul %726, %747, %cst_284 {dimension_numbers = #tpu.dot_dimension_numbers<[1], [0], [0], [1], [0, 0, 1, 1], [], []>} : vector<2x32xf32>, vector<32x128xf32>, vector<2x128xf32> -> vector<2x128xf32>
    %749 = arith.addf %745, %748 : vector<2x128xf32>
    %750 = vector.extract_strided_slice %742 {offsets = [0, 0], sizes = [2, 96], strides = [1, 1]} : vector<2x128xf32> to vector<2x96xf32>
    %751 = arith.negf %750 : vector<2x96xf32>
    %752 = math.exp %751 : vector<2x96xf32>
    %cst_285 = arith.constant 1.000000e+00 : f32
    %753 = vector.broadcast %cst_285 : f32 to vector<2x96xf32>
    %754 = arith.addf %753, %752 : vector<2x96xf32>
    %755 = arith.divf %753, %754 : vector<2x96xf32>
    %756 = vector.extract_strided_slice %742 {offsets = [0, 96], sizes = [2, 32], strides = [1, 1]} : vector<2x128xf32> to vector<2x32xf32>
    %757 = math.tanh %756 : vector<2x32xf32>
    %758 = vector.extract_strided_slice %749 {offsets = [0, 0], sizes = [2, 96], strides = [1, 1]} : vector<2x128xf32> to vector<2x96xf32>
    %759 = arith.negf %758 : vector<2x96xf32>
    %760 = math.exp %759 : vector<2x96xf32>
    %cst_286 = arith.constant 1.000000e+00 : f32
    %761 = vector.broadcast %cst_286 : f32 to vector<2x96xf32>
    %762 = arith.addf %761, %760 : vector<2x96xf32>
    %763 = arith.divf %761, %762 : vector<2x96xf32>
    %764 = vector.extract_strided_slice %749 {offsets = [0, 96], sizes = [2, 32], strides = [1, 1]} : vector<2x128xf32> to vector<2x32xf32>
    %765 = math.tanh %764 : vector<2x32xf32>
    %766 = vector.extract_strided_slice %755 {offsets = [0, 32], sizes = [2, 32], strides = [1, 1]} : vector<2x96xf32> to vector<2x32xf32>
    %767 = arith.mulf %766, %715 : vector<2x32xf32>
    %768 = vector.extract_strided_slice %755 {offsets = [0, 0], sizes = [2, 32], strides = [1, 1]} : vector<2x96xf32> to vector<2x32xf32>
    %769 = arith.mulf %768, %757 : vector<2x32xf32>
    %770 = arith.addf %767, %769 : vector<2x32xf32>
    %771 = vector.extract_strided_slice %755 {offsets = [0, 64], sizes = [2, 32], strides = [1, 1]} : vector<2x96xf32> to vector<2x32xf32>
    %772 = math.tanh %770 : vector<2x32xf32>
    %773 = arith.mulf %771, %772 : vector<2x32xf32>
    %774 = vector.extract_strided_slice %763 {offsets = [0, 32], sizes = [2, 32], strides = [1, 1]} : vector<2x96xf32> to vector<2x32xf32>
    %775 = arith.mulf %774, %723 : vector<2x32xf32>
    %776 = vector.extract_strided_slice %763 {offsets = [0, 0], sizes = [2, 32], strides = [1, 1]} : vector<2x96xf32> to vector<2x32xf32>
    %777 = arith.mulf %776, %765 : vector<2x32xf32>
    %778 = arith.addf %775, %777 : vector<2x32xf32>
    %779 = vector.extract_strided_slice %763 {offsets = [0, 64], sizes = [2, 32], strides = [1, 1]} : vector<2x96xf32> to vector<2x32xf32>
    %780 = math.tanh %778 : vector<2x32xf32>
    %781 = arith.mulf %779, %780 : vector<2x32xf32>
    %782 = arith.index_cast %c5_i32_271 : i32 to index
    %c0_287 = arith.constant 0 : index
    %c0_288 = arith.constant 0 : index
    %783 = vector.load %arg11[%782, %c0_287, %c0_288] : memref<8x2x64xf32, #tpu.memory_space<vmem>>, vector<1x2x32xf32>
    %784 = vector.shape_cast %783 : vector<1x2x32xf32> to vector<2x32xf32>
    %785 = vector.shape_cast %773 : vector<2x32xf32> to vector<1x2x32xf32>
    tpu.vector_store %arg11[%782, %c0_287, %c0_288], %785 {strides = array<i32>} : memref<8x2x64xf32, #tpu.memory_space<vmem>>, vector<1x2x32xf32>,
    %786 = arith.index_cast %735 : i32 to index
    %c0_289 = arith.constant 0 : index
    %c32_290 = arith.constant 32 : index
    %787 = vector.load %arg11[%786, %c0_289, %c32_290] : memref<8x2x64xf32, #tpu.memory_space<vmem>>, vector<1x2x32xf32>
    %788 = vector.shape_cast %787 : vector<1x2x32xf32> to vector<2x32xf32>
    %789 = vector.shape_cast %781 : vector<2x32xf32> to vector<1x2x32xf32>
    tpu.vector_store %arg11[%786, %c0_289, %c32_290], %789 {strides = array<i32>} : memref<8x2x64xf32, #tpu.memory_space<vmem>>, vector<1x2x32xf32>,
    %c6_i32_291 = arith.constant 6 : i32
    %c7_i32_292 = arith.constant 7 : i32
    %790 = arith.subi %c7_i32_292, %c6_i32_291 : i32
    %791 = arith.index_cast %c6_i32_291 : i32 to index
    %c0_293 = arith.constant 0 : index
    %c0_294 = arith.constant 0 : index
    %792 = vector.load %arg10[%791, %c0_293, %c0_294] : memref<8x2x256xf32, #tpu.memory_space<vmem>>, vector<1x2x128xf32>
    %793 = vector.shape_cast %792 : vector<1x2x128xf32> to vector<2x128xf32>
    %c0_295 = arith.constant 0 : index
    %c0_296 = arith.constant 0 : index
    %c0_297 = arith.constant 0 : index
    %794 = vector.load %arg5[%c0_295, %c0_296, %c0_297] : memref<2x32x128xf32, #tpu.memory_space<vmem>>, vector<1x32x128xf32>
    %795 = vector.shape_cast %794 : vector<1x32x128xf32> to vector<32x128xf32>
    %cst_298 = arith.constant dense<0.000000e+00> : vector<2x128xf32>
    %796 = tpu.matmul %773, %795, %cst_298 {dimension_numbers = #tpu.dot_dimension_numbers<[1], [0], [0], [1], [0, 0, 1, 1], [], []>} : vector<2x32xf32>, vector<32x128xf32>, vector<2x128xf32> -> vector<2x128xf32>
    %797 = arith.addf %793, %796 : vector<2x128xf32>
    %798 = arith.index_cast %790 : i32 to index
    %c0_299 = arith.constant 0 : index
    %c128_300 = arith.constant 128 : index
    %799 = vector.load %arg10[%798, %c0_299, %c128_300] : memref<8x2x256xf32, #tpu.memory_space<vmem>>, vector<1x2x128xf32>
    %800 = vector.shape_cast %799 : vector<1x2x128xf32> to vector<2x128xf32>
    %c1_301 = arith.constant 1 : index
    %c0_302 = arith.constant 0 : index
    %c0_303 = arith.constant 0 : index
    %801 = vector.load %arg5[%c1_301, %c0_302, %c0_303] : memref<2x32x128xf32, #tpu.memory_space<vmem>>, vector<1x32x128xf32>
    %802 = vector.shape_cast %801 : vector<1x32x128xf32> to vector<32x128xf32>
    %cst_304 = arith.constant dense<0.000000e+00> : vector<2x128xf32>
    %803 = tpu.matmul %781, %802, %cst_304 {dimension_numbers = #tpu.dot_dimension_numbers<[1], [0], [0], [1], [0, 0, 1, 1], [], []>} : vector<2x32xf32>, vector<32x128xf32>, vector<2x128xf32> -> vector<2x128xf32>
    %804 = arith.addf %800, %803 : vector<2x128xf32>
    %805 = vector.extract_strided_slice %797 {offsets = [0, 0], sizes = [2, 96], strides = [1, 1]} : vector<2x128xf32> to vector<2x96xf32>
    %806 = arith.negf %805 : vector<2x96xf32>
    %807 = math.exp %806 : vector<2x96xf32>
    %cst_305 = arith.constant 1.000000e+00 : f32
    %808 = vector.broadcast %cst_305 : f32 to vector<2x96xf32>
    %809 = arith.addf %808, %807 : vector<2x96xf32>
    %810 = arith.divf %808, %809 : vector<2x96xf32>
    %811 = vector.extract_strided_slice %797 {offsets = [0, 96], sizes = [2, 32], strides = [1, 1]} : vector<2x128xf32> to vector<2x32xf32>
    %812 = math.tanh %811 : vector<2x32xf32>
    %813 = vector.extract_strided_slice %804 {offsets = [0, 0], sizes = [2, 96], strides = [1, 1]} : vector<2x128xf32> to vector<2x96xf32>
    %814 = arith.negf %813 : vector<2x96xf32>
    %815 = math.exp %814 : vector<2x96xf32>
    %cst_306 = arith.constant 1.000000e+00 : f32
    %816 = vector.broadcast %cst_306 : f32 to vector<2x96xf32>
    %817 = arith.addf %816, %815 : vector<2x96xf32>
    %818 = arith.divf %816, %817 : vector<2x96xf32>
    %819 = vector.extract_strided_slice %804 {offsets = [0, 96], sizes = [2, 32], strides = [1, 1]} : vector<2x128xf32> to vector<2x32xf32>
    %820 = math.tanh %819 : vector<2x32xf32>
    %821 = vector.extract_strided_slice %810 {offsets = [0, 32], sizes = [2, 32], strides = [1, 1]} : vector<2x96xf32> to vector<2x32xf32>
    %822 = arith.mulf %821, %770 : vector<2x32xf32>
    %823 = vector.extract_strided_slice %810 {offsets = [0, 0], sizes = [2, 32], strides = [1, 1]} : vector<2x96xf32> to vector<2x32xf32>
    %824 = arith.mulf %823, %812 : vector<2x32xf32>
    %825 = arith.addf %822, %824 : vector<2x32xf32>
    %826 = vector.extract_strided_slice %810 {offsets = [0, 64], sizes = [2, 32], strides = [1, 1]} : vector<2x96xf32> to vector<2x32xf32>
    %827 = math.tanh %825 : vector<2x32xf32>
    %828 = arith.mulf %826, %827 : vector<2x32xf32>
    %829 = vector.extract_strided_slice %818 {offsets = [0, 32], sizes = [2, 32], strides = [1, 1]} : vector<2x96xf32> to vector<2x32xf32>
    %830 = arith.mulf %829, %778 : vector<2x32xf32>
    %831 = vector.extract_strided_slice %818 {offsets = [0, 0], sizes = [2, 32], strides = [1, 1]} : vector<2x96xf32> to vector<2x32xf32>
    %832 = arith.mulf %831, %820 : vector<2x32xf32>
    %833 = arith.addf %830, %832 : vector<2x32xf32>
    %834 = vector.extract_strided_slice %818 {offsets = [0, 64], sizes = [2, 32], strides = [1, 1]} : vector<2x96xf32> to vector<2x32xf32>
    %835 = math.tanh %833 : vector<2x32xf32>
    %836 = arith.mulf %834, %835 : vector<2x32xf32>
    %837 = arith.index_cast %c6_i32_291 : i32 to index
    %c0_307 = arith.constant 0 : index
    %c0_308 = arith.constant 0 : index
    %838 = vector.load %arg11[%837, %c0_307, %c0_308] : memref<8x2x64xf32, #tpu.memory_space<vmem>>, vector<1x2x32xf32>
    %839 = vector.shape_cast %838 : vector<1x2x32xf32> to vector<2x32xf32>
    %840 = vector.shape_cast %828 : vector<2x32xf32> to vector<1x2x32xf32>
    tpu.vector_store %arg11[%837, %c0_307, %c0_308], %840 {strides = array<i32>} : memref<8x2x64xf32, #tpu.memory_space<vmem>>, vector<1x2x32xf32>,
    %841 = arith.index_cast %790 : i32 to index
    %c0_309 = arith.constant 0 : index
    %c32_310 = arith.constant 32 : index
    %842 = vector.load %arg11[%841, %c0_309, %c32_310] : memref<8x2x64xf32, #tpu.memory_space<vmem>>, vector<1x2x32xf32>
    %843 = vector.shape_cast %842 : vector<1x2x32xf32> to vector<2x32xf32>
    %844 = vector.shape_cast %836 : vector<2x32xf32> to vector<1x2x32xf32>
    tpu.vector_store %arg11[%841, %c0_309, %c32_310], %844 {strides = array<i32>} : memref<8x2x64xf32, #tpu.memory_space<vmem>>, vector<1x2x32xf32>,
    %c7_i32_311 = arith.constant 7 : i32
    %c7_i32_312 = arith.constant 7 : i32
    %845 = arith.subi %c7_i32_312, %c7_i32_311 : i32
    %846 = arith.index_cast %c7_i32_311 : i32 to index
    %c0_313 = arith.constant 0 : index
    %c0_314 = arith.constant 0 : index
    %847 = vector.load %arg10[%846, %c0_313, %c0_314] : memref<8x2x256xf32, #tpu.memory_space<vmem>>, vector<1x2x128xf32>
    %848 = vector.shape_cast %847 : vector<1x2x128xf32> to vector<2x128xf32>
    %c0_315 = arith.constant 0 : index
    %c0_316 = arith.constant 0 : index
    %c0_317 = arith.constant 0 : index
    %849 = vector.load %arg5[%c0_315, %c0_316, %c0_317] : memref<2x32x128xf32, #tpu.memory_space<vmem>>, vector<1x32x128xf32>
    %850 = vector.shape_cast %849 : vector<1x32x128xf32> to vector<32x128xf32>
    %cst_318 = arith.constant dense<0.000000e+00> : vector<2x128xf32>
    %851 = tpu.matmul %828, %850, %cst_318 {dimension_numbers = #tpu.dot_dimension_numbers<[1], [0], [0], [1], [0, 0, 1, 1], [], []>} : vector<2x32xf32>, vector<32x128xf32>, vector<2x128xf32> -> vector<2x128xf32>
    %852 = arith.addf %848, %851 : vector<2x128xf32>
    %853 = arith.index_cast %845 : i32 to index
    %c0_319 = arith.constant 0 : index
    %c128_320 = arith.constant 128 : index
    %854 = vector.load %arg10[%853, %c0_319, %c128_320] : memref<8x2x256xf32, #tpu.memory_space<vmem>>, vector<1x2x128xf32>
    %855 = vector.shape_cast %854 : vector<1x2x128xf32> to vector<2x128xf32>
    %c1_321 = arith.constant 1 : index
    %c0_322 = arith.constant 0 : index
    %c0_323 = arith.constant 0 : index
    %856 = vector.load %arg5[%c1_321, %c0_322, %c0_323] : memref<2x32x128xf32, #tpu.memory_space<vmem>>, vector<1x32x128xf32>
    %857 = vector.shape_cast %856 : vector<1x32x128xf32> to vector<32x128xf32>
    %cst_324 = arith.constant dense<0.000000e+00> : vector<2x128xf32>
    %858 = tpu.matmul %836, %857, %cst_324 {dimension_numbers = #tpu.dot_dimension_numbers<[1], [0], [0], [1], [0, 0, 1, 1], [], []>} : vector<2x32xf32>, vector<32x128xf32>, vector<2x128xf32> -> vector<2x128xf32>
    %859 = arith.addf %855, %858 : vector<2x128xf32>
    %860 = vector.extract_strided_slice %852 {offsets = [0, 0], sizes = [2, 96], strides = [1, 1]} : vector<2x128xf32> to vector<2x96xf32>
    %861 = arith.negf %860 : vector<2x96xf32>
    %862 = math.exp %861 : vector<2x96xf32>
    %cst_325 = arith.constant 1.000000e+00 : f32
    %863 = vector.broadcast %cst_325 : f32 to vector<2x96xf32>
    %864 = arith.addf %863, %862 : vector<2x96xf32>
    %865 = arith.divf %863, %864 : vector<2x96xf32>
    %866 = vector.extract_strided_slice %852 {offsets = [0, 96], sizes = [2, 32], strides = [1, 1]} : vector<2x128xf32> to vector<2x32xf32>
    %867 = math.tanh %866 : vector<2x32xf32>
    %868 = vector.extract_strided_slice %859 {offsets = [0, 0], sizes = [2, 96], strides = [1, 1]} : vector<2x128xf32> to vector<2x96xf32>
    %869 = arith.negf %868 : vector<2x96xf32>
    %870 = math.exp %869 : vector<2x96xf32>
    %cst_326 = arith.constant 1.000000e+00 : f32
    %871 = vector.broadcast %cst_326 : f32 to vector<2x96xf32>
    %872 = arith.addf %871, %870 : vector<2x96xf32>
    %873 = arith.divf %871, %872 : vector<2x96xf32>
    %874 = vector.extract_strided_slice %859 {offsets = [0, 96], sizes = [2, 32], strides = [1, 1]} : vector<2x128xf32> to vector<2x32xf32>
    %875 = math.tanh %874 : vector<2x32xf32>
    %876 = vector.extract_strided_slice %865 {offsets = [0, 32], sizes = [2, 32], strides = [1, 1]} : vector<2x96xf32> to vector<2x32xf32>
    %877 = arith.mulf %876, %825 : vector<2x32xf32>
    %878 = vector.extract_strided_slice %865 {offsets = [0, 0], sizes = [2, 32], strides = [1, 1]} : vector<2x96xf32> to vector<2x32xf32>
    %879 = arith.mulf %878, %867 : vector<2x32xf32>
    %880 = arith.addf %877, %879 : vector<2x32xf32>
    %881 = vector.extract_strided_slice %865 {offsets = [0, 64], sizes = [2, 32], strides = [1, 1]} : vector<2x96xf32> to vector<2x32xf32>
    %882 = math.tanh %880 : vector<2x32xf32>
    %883 = arith.mulf %881, %882 : vector<2x32xf32>
    %884 = vector.extract_strided_slice %873 {offsets = [0, 32], sizes = [2, 32], strides = [1, 1]} : vector<2x96xf32> to vector<2x32xf32>
    %885 = arith.mulf %884, %833 : vector<2x32xf32>
    %886 = vector.extract_strided_slice %873 {offsets = [0, 0], sizes = [2, 32], strides = [1, 1]} : vector<2x96xf32> to vector<2x32xf32>
    %887 = arith.mulf %886, %875 : vector<2x32xf32>
    %888 = arith.addf %885, %887 : vector<2x32xf32>
    %889 = vector.extract_strided_slice %873 {offsets = [0, 64], sizes = [2, 32], strides = [1, 1]} : vector<2x96xf32> to vector<2x32xf32>
    %890 = math.tanh %888 : vector<2x32xf32>
    %891 = arith.mulf %889, %890 : vector<2x32xf32>
    %892 = arith.index_cast %c7_i32_311 : i32 to index
    %c0_327 = arith.constant 0 : index
    %c0_328 = arith.constant 0 : index
    %893 = vector.load %arg11[%892, %c0_327, %c0_328] : memref<8x2x64xf32, #tpu.memory_space<vmem>>, vector<1x2x32xf32>
    %894 = vector.shape_cast %893 : vector<1x2x32xf32> to vector<2x32xf32>
    %895 = vector.shape_cast %883 : vector<2x32xf32> to vector<1x2x32xf32>
    tpu.vector_store %arg11[%892, %c0_327, %c0_328], %895 {strides = array<i32>} : memref<8x2x64xf32, #tpu.memory_space<vmem>>, vector<1x2x32xf32>,
    %896 = arith.index_cast %845 : i32 to index
    %c0_329 = arith.constant 0 : index
    %c32_330 = arith.constant 32 : index
    %897 = vector.load %arg11[%896, %c0_329, %c32_330] : memref<8x2x64xf32, #tpu.memory_space<vmem>>, vector<1x2x32xf32>
    %898 = vector.shape_cast %897 : vector<1x2x32xf32> to vector<2x32xf32>
    %899 = vector.shape_cast %891 : vector<2x32xf32> to vector<1x2x32xf32>
    tpu.vector_store %arg11[%896, %c0_329, %c32_330], %899 {strides = array<i32>} : memref<8x2x64xf32, #tpu.memory_space<vmem>>, vector<1x2x32xf32>,
    %c8_i32_331 = arith.constant 8 : i32
    %c0_332 = arith.constant 0 : index
    %c0_333 = arith.constant 0 : index
    %c0_334 = arith.constant 0 : index
    %900 = vector.load %arg11[%c0_332, %c0_333, %c0_334] : memref<8x2x64xf32, #tpu.memory_space<vmem>>, vector<8x2x64xf32>
    %901 = vector.shape_cast %900 : vector<8x2x64xf32> to vector<16x64xf32>
    %c0_335 = arith.constant 0 : index
    %c0_336 = arith.constant 0 : index
    %902 = vector.load %arg7[%c0_335, %c0_336] : memref<64x8xf32, #tpu.memory_space<vmem>>, vector<64x8xf32>
    %cst_337 = arith.constant dense<0.000000e+00> : vector<16x8xf32>
    %903 = tpu.matmul %901, %902, %cst_337 {dimension_numbers = #tpu.dot_dimension_numbers<[1], [0], [0], [1], [0, 0, 1, 1], [], []>} : vector<16x64xf32>, vector<64x8xf32>, vector<16x8xf32> -> vector<16x8xf32>
    %c0_338 = arith.constant 0 : index
    %c0_339 = arith.constant 0 : index
    %904 = vector.load %arg8[%c0_338, %c0_339] : memref<1x8xf32, #tpu.memory_space<vmem>>, vector<1x8xf32>
    %905 = vector.broadcast %904 : vector<1x8xf32> to vector<16x8xf32>
    %906 = arith.addf %903, %905 : vector<16x8xf32>
    %cst_340 = arith.constant 0.000000e+00 : f32
    %907 = vector.broadcast %cst_340 : f32 to vector<16x8xf32>
    %908 = arith.cmpf oge, %906, %907 : vector<16x8xf32>
    %cst_341 = arith.constant 0.00999999977 : f32
    %909 = vector.broadcast %cst_341 : f32 to vector<16x8xf32>
    %910 = arith.mulf %909, %906 : vector<16x8xf32>
    %911 = arith.select %908, %906, %910 : vector<16x8xi1>, vector<16x8xf32>
    %c0_342 = arith.constant 0 : index
    %c0_343 = arith.constant 0 : index
    %912 = vector.load %arg9[%c0_342, %c0_343] : memref<16x8xf32, #tpu.memory_space<vmem>>, vector<16x8xf32>
    tpu.vector_store %arg9[%c0_342, %c0_343], %911 {strides = array<i32>} : memref<16x8xf32, #tpu.memory_space<vmem>>, vector<16x8xf32>,
    return
  }
}

</mosaic_0001>

<llo_original>
// kernel: birnn_forward.1
$region0: #{birnn_forward.1}
  #allocation0 [shape = 'u32[]', space=smem, size = 0x4, offset = 0x4, fixed_abs, tag = 'smem constant byte address 0x4 - core index']
  #allocation1 [shape = 'u32[72,128]{1,0:T(1,128)}', space=vmem, size = 0x9000, scoped, tag = 'internal scratch']
  #allocation2 [shape = 'f32[8,2,256]{2,1,0:T(2,128)}', space=vmem, size = 0x4000, scoped, tag = 'scratch operand']
  #allocation3 [shape = 'f32[8,2,64]{2,1,0:T(2,128)}', space=vmem, size = 0x2000, scoped, tag = 'scratch operand']
  %s0 = inlined_call_operand.vmem [shape: f32[8,2,16], index: 0, kind: input, shape index: {}]
  %s1 = inlined_call_operand.vmem [shape: f32[16,256], index: 1, kind: input, shape index: {}]
  %s2 = inlined_call_operand.vmem [shape: f32[2,32,128], index: 2, kind: input, shape index: {}]
  %s3 = inlined_call_operand.vmem [shape: f32[1,256], index: 3, kind: input, shape index: {}]
  %s4 = inlined_call_operand.hbm [shape: f32[64,256], index: 4, kind: input, shape index: {}]
  %s5 = inlined_call_operand.hbm [shape: f32[2,32,128], index: 5, kind: input, shape index: {}]
  %s6 = inlined_call_operand.hbm [shape: f32[1,256], index: 6, kind: input, shape index: {}]
  %s7 = inlined_call_operand.vmem [shape: f32[64,8], index: 7, kind: input, shape index: {}]
  %s8 = inlined_call_operand.vmem [shape: f32[1,8], index: 8, kind: input, shape index: {}]
  %s9 = inlined_call_operand.vmem [shape: f32[16,8], index: 9, kind: output, shape index: {}]
  %s10 = sld [smem:[#allocation0]]
  $region58: #{birnn_forward.1} parent=0
    _
  %s12 = ssub.s32 1, %s10
  %s13 = scalar_select 0, %s12, %s10
  $region1: #{birnn_forward.1} parent=0
    #allocation4 [shape = 'u8[65536]{0}', space=vmem, size = 0x10000, scoped, tag = 'input window, operand 4, single buffered']
    #allocation5 [shape = 's32[1]{0}', space=sflag, size = 0x4, scoped, tag = 'scoped memory for birnn_forward.1']
    #allocation6 [shape = 'u8[32768]{0}', space=vmem, size = 0x8000, scoped, tag = 'input window, operand 5, single buffered']
    #allocation7 [shape = 's32[1]{0}', space=sflag, size = 0x4, scoped, tag = 'scoped memory for birnn_forward.1']
    #allocation8 [shape = 'u8[1024]{0}', space=vmem, size = 0x400, scoped, tag = 'input window, operand 6, single buffered']
    %14 = vsyncpa [#allocation5], 0
    %15 = vsyncpa [#allocation7], 0
    // Predicated region
    $region2: #{birnn_forward.1} parent=1 // pred_check
      _
    $region3: #{birnn_forward.1} parent=1 // pred_check_branch
      %17 = sbr.rel (0) target = $region5
    $region4: #{birnn_forward.1} parent=1 // pred_region
      _
    $region5: #{birnn_forward.1} parent=1 // pred_fallthru
      _
    // Predicated region
    $region6: #{birnn_forward.1} parent=1 // pred_check
      _
    $region7: #{birnn_forward.1} parent=1 // pred_check_branch
      %19 = sbr.rel (0) target = $region9
    $region8: #{birnn_forward.1} parent=1 // pred_region
      _
    $region9: #{birnn_forward.1} parent=1 // pred_fallthru
      _
    // Predicated region
    $region10: #{birnn_forward.1} parent=1 // pred_check
      _
    $region11: #{birnn_forward.1} parent=1 // pred_check_branch
      %21 = sbr.rel (0) target = $region13
    $region12: #{birnn_forward.1} parent=1 // pred_region
      _
    $region13: #{birnn_forward.1} parent=1 // pred_fallthru
      _
    // Predicated region
    $region14: #{birnn_forward.1} parent=1 // pred_check
      _
    $region15: #{birnn_forward.1} parent=1 // pred_check_branch
      %23 = sbr.rel (0) target = $region17
    $region16: #{birnn_forward.1} parent=1 // pred_region
      _
    $region17: #{birnn_forward.1} parent=1 // pred_fallthru
      _
    // Predicated region
    $region18: #{birnn_forward.1} parent=1 // pred_check
      _
    $region19: #{birnn_forward.1} parent=1 // pred_check_branch
      %25 = sbr.rel (0) target = $region21
    $region20: #{birnn_forward.1} parent=1 // pred_region
      %27 = vsyncadd [#allocation5], 0
      %s28 = sshll.u32 %s4, 4
      %s29 = int_to_ptr.hbm [resolvable:$true] %s28
      %s30 = sshll.u32 [#allocation4], 4
      %s31 = int_to_ptr.vmem [resolvable:$true] %s30
      %36 = dma.hbm_to_vmem [thread:$0]  %s29, 2048, %s31, [#allocation5], 256, 256, 16
    $region21: #{birnn_forward.1} parent=1 // pred_fallthru
      _
    // Predicated region
    $region22: #{birnn_forward.1} parent=1 // pred_check
      _
    $region23: #{birnn_forward.1} parent=1 // pred_check_branch
      %38 = sbr.rel (0) target = $region25
    $region24: #{birnn_forward.1} parent=1 // pred_region
      %40 = vsyncadd [#allocation7], 0
      %s41 = sshll.u32 %s5, 4
      %s42 = int_to_ptr.hbm [resolvable:$true] %s41
      %s43 = sshll.u32 [#allocation6], 4
      %s44 = int_to_ptr.vmem [resolvable:$true] %s43
      %49 = dma.hbm_to_vmem [thread:$0]  %s42, 1024, %s44, [#allocation7], 128, 128, 8
    $region25: #{birnn_forward.1} parent=1 // pred_fallthru
      _
    // Predicated region
    $region26: #{birnn_forward.1} parent=1 // pred_check
      _
    $region27: #{birnn_forward.1} parent=1 // pred_check_branch
      %51 = sbr.rel (0) target = $region29
    $region28: #{birnn_forward.1} parent=1 // pred_region
      %53 = vsyncadd [#allocation7], 0
      %s55 = sshll.u32 %s6, 4
      %s56 = int_to_ptr.hbm [resolvable:$true] %s55
      %s57 = sshll.u32 [#allocation8], 4
      %s58 = int_to_ptr.vmem [resolvable:$true] %s57
      %60 = dma.hbm_to_vmem [thread:$0]  %s56, 32, %s58, [#allocation7]
    $region29: #{birnn_forward.1} parent=1 // pred_fallthru
      _
    // Predicated region
    $region30: #{birnn_forward.1} parent=1 // pred_check
      _
    $region31: #{birnn_forward.1} parent=1 // pred_check_branch
      %62 = sbr.rel (0) target = $region33
    $region32: #{birnn_forward.1} parent=1 // pred_region
      _
    $region33: #{birnn_forward.1} parent=1 // pred_fallthru
      _
    // Predicated region
    $region34: #{birnn_forward.1} parent=1 // pred_check
      _
    $region35: #{birnn_forward.1} parent=1 // pred_check_branch
      %64 = sbr.rel (0) target = $region37
    $region36: #{birnn_forward.1} parent=1 // pred_region
      _
    $region37: #{birnn_forward.1} parent=1 // pred_fallthru
      _
    // Predicated region
    $region38: #{birnn_forward.1} parent=1 // pred_check
      _
    $region39: #{birnn_forward.1} parent=1 // pred_check_branch
      %66 = sbr.rel (0) target = $region41
    $region40: #{birnn_forward.1} parent=1 // pred_region
      %68 = dma.done [#allocation5], 2048
    $region41: #{birnn_forward.1} parent=1 // pred_fallthru
      _
    // Predicated region
    $region42: #{birnn_forward.1} parent=1 // pred_check
      _
    $region43: #{birnn_forward.1} parent=1 // pred_check_branch
      %70 = sbr.rel (0) target = $region45
    $region44: #{birnn_forward.1} parent=1 // pred_region
      %72 = dma.done [#allocation7], 1024
    $region45: #{birnn_forward.1} parent=1 // pred_fallthru
      _
    // Predicated region
    $region46: #{birnn_forward.1} parent=1 // pred_check
      _
    $region47: #{birnn_forward.1} parent=1 // pred_check_branch
      %74 = sbr.rel (0) target = $region49
    $region48: #{birnn_forward.1} parent=1 // pred_region
      %76 = dma.done [#allocation7], 32
    $region49: #{birnn_forward.1} parent=1 // pred_fallthru
      _
    %v77 = vld [vmem:[%s0] sm:$0x3]
    %v78 = vld [vmem:[%s0 + $0x2] sm:$0x3]
    %v79 = vld [vmem:[%s0 + $0x4] sm:$0x3]
    %v80 = vld [vmem:[%s0 + $0x6] sm:$0x3]
    %v81 = vld [vmem:[%s0 + $0x8] sm:$0x3]
    %v82 = vld [vmem:[%s0 + $0xa] sm:$0x3]
    %v83 = vld [vmem:[%s0 + $0xc] sm:$0x3]
    %v84 = vld [vmem:[%s0 + $0xe] sm:$0x3]
    %v85 = vld [vmem:[%s1] sm:$0xff]
    %v86 = vld [vmem:[%s1 + $0x8] sm:$0xff]
    %v87 = vld [vmem:[%s1 + $0x10] sm:$0xff]
    %v88 = vld [vmem:[%s1 + $0x18] sm:$0xff]
    %v89 = vld [vmem:[%s3] sm:$0x3]
    %v91 = vperm.slane %v89, 0
    %v92 = vperm.slane %v89, 1
    %103 = vst [vmem:[#allocation1] ss:$4 sm:$0xff] %v77
    %s104 = scalar_lea.vmem [#allocation1], 1
    %105 = vst [vmem:[%s104] ss:$4 sm:$0xff] %v78
    %s106 = scalar_lea.vmem [#allocation1], 2
    %107 = vst [vmem:[%s106] ss:$4 sm:$0xff] %v79
    %s108 = scalar_lea.vmem [#allocation1], 3
    %109 = vst [vmem:[%s108] ss:$4 sm:$0xff] %v80
    %s110 = scalar_lea.vmem [#allocation1], 32
    %111 = vst [vmem:[%s110] ss:$4 sm:$0xff] %v81
    %s112 = scalar_lea.vmem [#allocation1], 33
    %113 = vst [vmem:[%s112] ss:$4 sm:$0xff] %v82
    %s114 = scalar_lea.vmem [#allocation1], 34
    %115 = vst [vmem:[%s114] ss:$4 sm:$0xff] %v83
    %s116 = scalar_lea.vmem [#allocation1], 35
    %117 = vst [vmem:[%s116] ss:$4 sm:$0xff] %v84
    %v118 = vld.sshfl [vmem:[#allocation1] sm:$0xff pattern:$0x73625140]
    %v119 = vld.sshfl [vmem:[#allocation1 + $0x20] sm:$0xff pattern:$0x73625140]
    %vm120 = vcmask 130048
    %v121 = vsel %vm120, %v118, 0
    %v123 = vsel %vm120, %v119, 0
    %125 = vmatpush.msra.mxu0 0.0
    %126 = vmatpush.msra.mxu0 0.0
    %127 = vmatpush.msra.mxu0 0.0
    %128 = vmatpush.msra.mxu0 0.0
    %129 = vmatpush.msra.mxu0 0.0
    %130 = vmatpush.msra.mxu0 0.0
    %131 = vmatpush.msra.mxu0 0.0
    %132 = vmatpush.msra.mxu0 0.0
    %133 = vmatpush.msra.mxu0 0.0
    %134 = vmatpush.msra.mxu0 0.0
    %135 = vmatpush.msra.mxu0 0.0
    %136 = vmatpush.msra.mxu0 0.0
    %137 = vmatpush.msra.mxu0 0.0
    %138 = vmatpush.msra.mxu0 0.0
    %139 = vmatpush.msra.mxu0 %v87
    %140 = vmatpush.msra.mxu0 %v85
    %141 = vmatmul.f32.gmra.mxu0 %v121
    %v142 = vpop.f32.mrf.mxu0
    %v143 = vadd.f32 %v91, %v142
    %144 = vmatmul.f32.gmra.mxu0 %v123
    %v145 = vpop.f32.mrf.mxu0
    %v146 = vadd.f32 %v91, %v145
    %147 = vdwg.mxu0
    %148 = vmatpush.msra.mxu0 0.0
    %149 = vmatpush.msra.mxu0 0.0
    %150 = vmatpush.msra.mxu0 0.0
    %151 = vmatpush.msra.mxu0 0.0
    %152 = vmatpush.msra.mxu0 0.0
    %153 = vmatpush.msra.mxu0 0.0
    %154 = vmatpush.msra.mxu0 0.0
    %155 = vmatpush.msra.mxu0 0.0
    %156 = vmatpush.msra.mxu0 0.0
    %157 = vmatpush.msra.mxu0 0.0
    %158 = vmatpush.msra.mxu0 0.0
    %159 = vmatpush.msra.mxu0 0.0
    %160 = vmatpush.msra.mxu0 0.0
    %161 = vmatpush.msra.mxu0 0.0
    %162 = vmatpush.msra.mxu0 %v88
    %163 = vmatpush.msra.mxu0 %v86
    %164 = vmatmul.f32.gmra.mxu0 %v121
    %v165 = vpop.f32.mrf.mxu0
    %v166 = vadd.f32 %v92, %v165
    %167 = vmatmul.f32.gmra.mxu0 %v123
    %v168 = vpop.f32.mrf.mxu0
    %v169 = vadd.f32 %v92, %v168
    %170 = vdwg.mxu0
    %v175 = vrot.slane %v166, 6
    %v176 = vrot.slane %v169, 6
    %vm177 = vcmask 1041408
    %v178 = vsel %vm177, %v143, %v175
    %vm179 = vcmask 1043458
    %v180 = vsel %vm179, %v143, %v175
    %v181 = vrot.slane %v180, 2
    %vm182 = vcmask 1045508
    %v183 = vsel %vm182, %v143, %v175
    %v184 = vrot.slane %v183, 4
    %vm185 = vcmask 1045504
    %v186 = vsel %vm185, %v175, %v143
    %v187 = vrot.slane %v186, 6
    %v188 = vsel %vm177, %v146, %v176
    %v189 = vsel %vm179, %v146, %v176
    %v190 = vrot.slane %v189, 2
    %v191 = vsel %vm182, %v146, %v176
    %v192 = vrot.slane %v191, 4
    %v193 = vsel %vm185, %v176, %v146
    %v194 = vrot.slane %v193, 6
    %203 = vst [vmem:[#allocation2] sm:$0xf] %v178
    %204 = vst [vmem:[#allocation2 + $0x4] sm:$0xf] %v181
    %205 = vst [vmem:[#allocation2 + $0x8] sm:$0xf] %v184
    %206 = vst [vmem:[#allocation2 + $0xc] sm:$0xf] %v187
    %207 = vst [vmem:[#allocation2 + $0x10] sm:$0xf] %v188
    %208 = vst [vmem:[#allocation2 + $0x14] sm:$0xf] %v190
    %209 = vst [vmem:[#allocation2 + $0x18] sm:$0xf] %v192
    %210 = vst [vmem:[#allocation2 + $0x1c] sm:$0xf] %v194
    %v211 = vld [vmem:[#allocation2] sm:$0x3]
    %v212 = vld [vmem:[%s2] sm:$0xff]
    %v213 = vld [vmem:[%s2 + $0x8] sm:$0xff]
    %v214 = vld [vmem:[%s2 + $0x10] sm:$0xff]
    %v215 = vld [vmem:[%s2 + $0x18] sm:$0xff]
    %vm216 = vcmask 261120
    %v218 = vsel %vm216, 0.0, 0
    %220 = vmatpush.msra.mxu0 0.0
    %221 = vmatpush.msra.mxu0 0.0
    %222 = vmatpush.msra.mxu0 0.0
    %223 = vmatpush.msra.mxu0 0.0
    %224 = vmatpush.msra.mxu0 0.0
    %225 = vmatpush.msra.mxu0 0.0
    %226 = vmatpush.msra.mxu0 0.0
    %227 = vmatpush.msra.mxu0 0.0
    %228 = vmatpush.msra.mxu0 0.0
    %229 = vmatpush.msra.mxu0 0.0
    %230 = vmatpush.msra.mxu0 0.0
    %231 = vmatpush.msra.mxu0 0.0
    %232 = vmatpush.msra.mxu0 %v215
    %233 = vmatpush.msra.mxu0 %v214
    %234 = vmatpush.msra.mxu0 %v213
    %235 = vmatpush.msra.mxu0 %v212
    %236 = vmatmul.f32.gmra.mxu0 %v218
    %v237 = vpop.f32.mrf.mxu0
    %v238 = vadd.f32 0.0, %v237
    %239 = vdwg.mxu0
    %v240 = vadd.f32 %v211, %v238
    %s241 = scalar_lea.vmem [#allocation2], 28
    %v242 = vld [vmem:[%s241 + $0x2] sm:$0x3]
    %s243 = scalar_lea.vmem %s2, 32
    %v244 = vld [vmem:[%s243] sm:$0xff]
    %v245 = vld [vmem:[%s243 + $0x8] sm:$0xff]
    %v246 = vld [vmem:[%s243 + $0x10] sm:$0xff]
    %v247 = vld [vmem:[%s243 + $0x18] sm:$0xff]
    %248 = vmatpush.msra.mxu0 0.0
    %249 = vmatpush.msra.mxu0 0.0
    %250 = vmatpush.msra.mxu0 0.0
    %251 = vmatpush.msra.mxu0 0.0
    %252 = vmatpush.msra.mxu0 0.0
    %253 = vmatpush.msra.mxu0 0.0
    %254 = vmatpush.msra.mxu0 0.0
    %255 = vmatpush.msra.mxu0 0.0
    %256 = vmatpush.msra.mxu0 0.0
    %257 = vmatpush.msra.mxu0 0.0
    %258 = vmatpush.msra.mxu0 0.0
    %259 = vmatpush.msra.mxu0 0.0
    %260 = vmatpush.msra.mxu0 %v247
    %261 = vmatpush.msra.mxu0 %v246
    %262 = vmatpush.msra.mxu0 %v245
    %263 = vmatpush.msra.mxu0 %v244
    %264 = vmatmul.f32.gmra.mxu0 %v218
    %v265 = vpop.f32.mrf.mxu0
    %v266 = vadd.f32 0.0, %v265
    %267 = vdwg.mxu0
    %v268 = vadd.f32 %v242, %v266
    %v269 = vxor.u32 %v240, 2147483648
    %v270 = vmul.f32 %v269, 1.442695
    %v271 = vpow.pop %v270
    %v272 = vadd.f32 %v271, 1.0
    %v273 = vrcp.pop %v272
    %v274 = vmul.f32 %v272, %v273
    %v275 = vsub.f32 1.0, %v274
    %v276 = vmul.f32 %v273, %v275
    %v277 = vadd.f32 %v273, %v276
    %vm278 = vweird.f32 %v272
    %vm279 = vweird.f32 %v273
    %vm280 = vmor %vm278, %vm279
    %v281 = vsel %vm280, %v273, %v277
    %v282 = vand.u32 2147483647, %v272
    %vm283 = vcmp.eq.f32.partialorder %v282, 8.507059e+37
    %v284 = vand.u32 %v272, 2147483648
    %v285 = vor.u32 1.1754944e-38, %v284
    %v286 = vsel %vm283, %v285, %v281
    %v287 = vmul.f32 1.0, %v286
    %v288 = vtanh.pop %v240
    %v289 = vxor.u32 %v268, 2147483648
    %v290 = vmul.f32 %v289, 1.442695
    %v291 = vpow.pop %v290
    %v292 = vadd.f32 %v291, 1.0
    %v293 = vrcp.pop %v292
    %v294 = vmul.f32 %v292, %v293
    %v295 = vsub.f32 1.0, %v294
    %v296 = vmul.f32 %v293, %v295
    %v297 = vadd.f32 %v293, %v296
    %vm298 = vweird.f32 %v292
    %vm299 = vweird.f32 %v293
    %vm300 = vmor %vm298, %vm299
    %v301 = vsel %vm300, %v293, %v297
    %v302 = vand.u32 2147483647, %v292
    %vm303 = vcmp.eq.f32.partialorder %v302, 8.507059e+37
    %v304 = vand.u32 %v292, 2147483648
    %v305 = vor.u32 1.1754944e-38, %v304
    %v306 = vsel %vm303, %v305, %v301
    %v307 = vmul.f32 1.0, %v306
    %v308 = vtanh.pop %v268
    %v309 = vmul.f32 %v287, 0.0
    %311 = vrot.lane.b32.xlu0 %v288, 32
    %v312 = vpop.permute.xlu0 %311
    %v314 = vmul.f32 %v287, %v312
    %316 = vrot.lane.b32.xlu0 %v314, 32
    %v317 = vpop.permute.xlu0 %316
    %v319 = vadd.f32 %v309, %v317
    %v320 = vtanh.pop %v319
    %322 = vrot.lane.b32.xlu0 %v320, 32
    %v323 = vpop.permute.xlu0 %322
    %v325 = vmul.f32 %v287, %v323
    %v326 = vmul.f32 %v307, 0.0
    %328 = vrot.lane.b32.xlu0 %v308, 32
    %v329 = vpop.permute.xlu0 %328
    %v331 = vmul.f32 %v307, %v329
    %333 = vrot.lane.b32.xlu0 %v331, 32
    %v334 = vpop.permute.xlu0 %333
    %v336 = vadd.f32 %v326, %v334
    %v337 = vtanh.pop %v336
    %339 = vrot.lane.b32.xlu0 %v337, 32
    %v340 = vpop.permute.xlu0 %339
    %v342 = vmul.f32 %v307, %v340
    %344 = vst [vmem:[#allocation1] ss:$4 sm:$0xff] %v325
    %v345 = vld.sshfl [vmem:[#allocation1] sm:$0xff pattern:$0x73625140]
    %346 = vrot.lane.b32.xlu0 %v345, 64
    %v347 = vpop.permute.xlu0 %346
    %vm349 = vcmask 254976
    %350 = vst.msk [vmem:[#allocation3] sm:$0x3] %vm349, %v347
    %352 = vst [vmem:[#allocation1] ss:$4 sm:$0xff] %v342
    %v353 = vld.sshfl [vmem:[#allocation1] sm:$0xff pattern:$0x73625140]
    %354 = vrot.lane.b32.xlu0 %v353, 96
    %v355 = vpop.permute.xlu0 %354
    %s357 = scalar_lea.vmem [#allocation3], 14
    %vm358 = vcmask 517376
    %359 = vst.msk [vmem:[%s357] sm:$0x3] %vm358, %v355
    %s360 = scalar_lea.vmem [#allocation2], 4
    %v361 = vld [vmem:[%s360] sm:$0x3]
    %v362 = vld [vmem:[%s2] sm:$0xff]
    %v363 = vld [vmem:[%s2 + $0x8] sm:$0xff]
    %v364 = vld [vmem:[%s2 + $0x10] sm:$0xff]
    %v365 = vld [vmem:[%s2 + $0x18] sm:$0xff]
    %366 = vst [vmem:[#allocation1] ss:$4 sm:$0xff] %v325
    %v367 = vld.sshfl [vmem:[#allocation1] sm:$0xff pattern:$0x73625140]
    %368 = vrot.lane.b32.xlu0 %v367, 64
    %v369 = vpop.permute.xlu0 %368
    %v370 = vsel %vm216, %v369, 0
    %372 = vmatpush.msra.mxu0 0.0
    %373 = vmatpush.msra.mxu0 0.0
    %374 = vmatpush.msra.mxu0 0.0
    %375 = vmatpush.msra.mxu0 0.0
    %376 = vmatpush.msra.mxu0 0.0
    %377 = vmatpush.msra.mxu0 0.0
    %378 = vmatpush.msra.mxu0 0.0
    %379 = vmatpush.msra.mxu0 0.0
    %380 = vmatpush.msra.mxu0 0.0
    %381 = vmatpush.msra.mxu0 0.0
    %382 = vmatpush.msra.mxu0 0.0
    %383 = vmatpush.msra.mxu0 0.0
    %384 = vmatpush.msra.mxu0 %v365
    %385 = vmatpush.msra.mxu0 %v364
    %386 = vmatpush.msra.mxu0 %v363
    %387 = vmatpush.msra.mxu0 %v362
    %388 = vmatmul.f32.gmra.mxu0 %v370
    %v389 = vpop.f32.mrf.mxu0
    %v390 = vadd.f32 0.0, %v389
    %391 = vdwg.mxu0
    %v392 = vadd.f32 %v361, %v390
    %s393 = scalar_lea.vmem [#allocation2], 24
    %v394 = vld [vmem:[%s393 + $0x2] sm:$0x3]
    %v395 = vld [vmem:[%s243] sm:$0xff]
    %v396 = vld [vmem:[%s243 + $0x8] sm:$0xff]
    %v397 = vld [vmem:[%s243 + $0x10] sm:$0xff]
    %v398 = vld [vmem:[%s243 + $0x18] sm:$0xff]
    %399 = vst [vmem:[#allocation1] ss:$4 sm:$0xff] %v342
    %v400 = vld.sshfl [vmem:[#allocation1] sm:$0xff pattern:$0x73625140]
    %401 = vrot.lane.b32.xlu0 %v400, 64
    %v402 = vpop.permute.xlu0 %401
    %v403 = vsel %vm216, %v402, 0
    %405 = vmatpush.msra.mxu0 0.0
    %406 = vmatpush.msra.mxu0 0.0
    %407 = vmatpush.msra.mxu0 0.0
    %408 = vmatpush.msra.mxu0 0.0
    %409 = vmatpush.msra.mxu0 0.0
    %410 = vmatpush.msra.mxu0 0.0
    %411 = vmatpush.msra.mxu0 0.0
    %412 = vmatpush.msra.mxu0 0.0
    %413 = vmatpush.msra.mxu0 0.0
    %414 = vmatpush.msra.mxu0 0.0
    %415 = vmatpush.msra.mxu0 0.0
    %416 = vmatpush.msra.mxu0 0.0
    %417 = vmatpush.msra.mxu0 %v398
    %418 = vmatpush.msra.mxu0 %v397
    %419 = vmatpush.msra.mxu0 %v396
    %420 = vmatpush.msra.mxu0 %v395
    %421 = vmatmul.f32.gmra.mxu0 %v403
    %v422 = vpop.f32.mrf.mxu0
    %v423 = vadd.f32 0.0, %v422
    %424 = vdwg.mxu0
    %v425 = vadd.f32 %v394, %v423
    %v426 = vxor.u32 %v392, 2147483648
    %v427 = vmul.f32 %v426, 1.442695
    %v428 = vpow.pop %v427
    %v429 = vadd.f32 %v428, 1.0
    %v430 = vrcp.pop %v429
    %v431 = vmul.f32 %v429, %v430
    %v432 = vsub.f32 1.0, %v431
    %v433 = vmul.f32 %v430, %v432
    %v434 = vadd.f32 %v430, %v433
    %vm435 = vweird.f32 %v429
    %vm436 = vweird.f32 %v430
    %vm437 = vmor %vm435, %vm436
    %v438 = vsel %vm437, %v430, %v434
    %v439 = vand.u32 2147483647, %v429
    %vm440 = vcmp.eq.f32.partialorder %v439, 8.507059e+37
    %v441 = vand.u32 %v429, 2147483648
    %v442 = vor.u32 1.1754944e-38, %v441
    %v443 = vsel %vm440, %v442, %v438
    %v444 = vmul.f32 1.0, %v443
    %v445 = vtanh.pop %v392
    %v446 = vxor.u32 %v425, 2147483648
    %v447 = vmul.f32 %v446, 1.442695
    %v448 = vpow.pop %v447
    %v449 = vadd.f32 %v448, 1.0
    %v450 = vrcp.pop %v449
    %v451 = vmul.f32 %v449, %v450
    %v452 = vsub.f32 1.0, %v451
    %v453 = vmul.f32 %v450, %v452
    %v454 = vadd.f32 %v450, %v453
    %vm455 = vweird.f32 %v449
    %vm456 = vweird.f32 %v450
    %vm457 = vmor %vm455, %vm456
    %v458 = vsel %vm457, %v450, %v454
    %v459 = vand.u32 2147483647, %v449
    %vm460 = vcmp.eq.f32.partialorder %v459, 8.507059e+37
    %v461 = vand.u32 %v449, 2147483648
    %v462 = vor.u32 1.1754944e-38, %v461
    %v463 = vsel %vm460, %v462, %v458
    %v464 = vmul.f32 1.0, %v463
    %v465 = vtanh.pop %v425
    %v466 = vmul.f32 %v444, %v319
    %468 = vrot.lane.b32.xlu0 %v445, 32
    %v469 = vpop.permute.xlu0 %468
    %v471 = vmul.f32 %v444, %v469
    %473 = vrot.lane.b32.xlu0 %v471, 32
    %v474 = vpop.permute.xlu0 %473
    %v476 = vadd.f32 %v466, %v474
    %v477 = vtanh.pop %v476
    %479 = vrot.lane.b32.xlu0 %v477, 32
    %v480 = vpop.permute.xlu0 %479
    %v482 = vmul.f32 %v444, %v480
    %v483 = vmul.f32 %v464, %v336
    %485 = vrot.lane.b32.xlu0 %v465, 32
    %v486 = vpop.permute.xlu0 %485
    %v488 = vmul.f32 %v464, %v486
    %490 = vrot.lane.b32.xlu0 %v488, 32
    %v491 = vpop.permute.xlu0 %490
    %v493 = vadd.f32 %v483, %v491
    %v494 = vtanh.pop %v493
    %496 = vrot.lane.b32.xlu0 %v494, 32
    %v497 = vpop.permute.xlu0 %496
    %v499 = vmul.f32 %v464, %v497
    %501 = vst [vmem:[#allocation1] ss:$4 sm:$0xff] %v482
    %v502 = vld.sshfl [vmem:[#allocation1] sm:$0xff pattern:$0x73625140]
    %503 = vrot.lane.b32.xlu0 %v502, 64
    %v504 = vpop.permute.xlu0 %503
    %s506 = scalar_lea.vmem [#allocation3], 2
    %507 = vst.msk [vmem:[%s506] sm:$0x3] %vm349, %v504
    %509 = vst [vmem:[#allocation1] ss:$4 sm:$0xff] %v499
    %v510 = vld.sshfl [vmem:[#allocation1] sm:$0xff pattern:$0x73625140]
    %511 = vrot.lane.b32.xlu0 %v510, 96
    %v512 = vpop.permute.xlu0 %511
    %s514 = scalar_lea.vmem [#allocation3], 12
    %515 = vst.msk [vmem:[%s514] sm:$0x3] %vm358, %v512
    %s516 = scalar_lea.vmem [#allocation2], 8
    %v517 = vld [vmem:[%s516] sm:$0x3]
    %v518 = vld [vmem:[%s2] sm:$0xff]
    %v519 = vld [vmem:[%s2 + $0x8] sm:$0xff]
    %v520 = vld [vmem:[%s2 + $0x10] sm:$0xff]
    %v521 = vld [vmem:[%s2 + $0x18] sm:$0xff]
    %522 = vst [vmem:[#allocation1] ss:$4 sm:$0xff] %v482
    %v523 = vld.sshfl [vmem:[#allocation1] sm:$0xff pattern:$0x73625140]
    %524 = vrot.lane.b32.xlu0 %v523, 64
    %v525 = vpop.permute.xlu0 %524
    %v526 = vsel %vm216, %v525, 0
    %528 = vmatpush.msra.mxu0 0.0
    %529 = vmatpush.msra.mxu0 0.0
    %530 = vmatpush.msra.mxu0 0.0
    %531 = vmatpush.msra.mxu0 0.0
    %532 = vmatpush.msra.mxu0 0.0
    %533 = vmatpush.msra.mxu0 0.0
    %534 = vmatpush.msra.mxu0 0.0
    %535 = vmatpush.msra.mxu0 0.0
    %536 = vmatpush.msra.mxu0 0.0
    %537 = vmatpush.msra.mxu0 0.0
    %538 = vmatpush.msra.mxu0 0.0
    %539 = vmatpush.msra.mxu0 0.0
    %540 = vmatpush.msra.mxu0 %v521
    %541 = vmatpush.msra.mxu0 %v520
    %542 = vmatpush.msra.mxu0 %v519
    %543 = vmatpush.msra.mxu0 %v518
    %544 = vmatmul.f32.gmra.mxu0 %v526
    %v545 = vpop.f32.mrf.mxu0
    %v546 = vadd.f32 0.0, %v545
    %547 = vdwg.mxu0
    %v548 = vadd.f32 %v517, %v546
    %s549 = scalar_lea.vmem [#allocation2], 20
    %v550 = vld [vmem:[%s549 + $0x2] sm:$0x3]
    %v551 = vld [vmem:[%s243] sm:$0xff]
    %v552 = vld [vmem:[%s243 + $0x8] sm:$0xff]
    %v553 = vld [vmem:[%s243 + $0x10] sm:$0xff]
    %v554 = vld [vmem:[%s243 + $0x18] sm:$0xff]
    %555 = vst [vmem:[#allocation1] ss:$4 sm:$0xff] %v499
    %v556 = vld.sshfl [vmem:[#allocation1] sm:$0xff pattern:$0x73625140]
    %557 = vrot.lane.b32.xlu0 %v556, 64
    %v558 = vpop.permute.xlu0 %557
    %v559 = vsel %vm216, %v558, 0
    %561 = vmatpush.msra.mxu0 0.0
    %562 = vmatpush.msra.mxu0 0.0
    %563 = vmatpush.msra.mxu0 0.0
    %564 = vmatpush.msra.mxu0 0.0
    %565 = vmatpush.msra.mxu0 0.0
    %566 = vmatpush.msra.mxu0 0.0
    %567 = vmatpush.msra.mxu0 0.0
    %568 = vmatpush.msra.mxu0 0.0
    %569 = vmatpush.msra.mxu0 0.0
    %570 = vmatpush.msra.mxu0 0.0
    %571 = vmatpush.msra.mxu0 0.0
    %572 = vmatpush.msra.mxu0 0.0
    %573 = vmatpush.msra.mxu0 %v554
    %574 = vmatpush.msra.mxu0 %v553
    %575 = vmatpush.msra.mxu0 %v552
    %576 = vmatpush.msra.mxu0 %v551
    %577 = vmatmul.f32.gmra.mxu0 %v559
    %v578 = vpop.f32.mrf.mxu0
    %v579 = vadd.f32 0.0, %v578
    %580 = vdwg.mxu0
    %v581 = vadd.f32 %v550, %v579
    %v582 = vxor.u32 %v548, 2147483648
    %v583 = vmul.f32 %v582, 1.442695
    %v584 = vpow.pop %v583
    %v585 = vadd.f32 %v584, 1.0
    %v586 = vrcp.pop %v585
    %v587 = vmul.f32 %v585, %v586
    %v588 = vsub.f32 1.0, %v587
    %v589 = vmul.f32 %v586, %v588
    %v590 = vadd.f32 %v586, %v589
    %vm591 = vweird.f32 %v585
    %vm592 = vweird.f32 %v586
    %vm593 = vmor %vm591, %vm592
    %v594 = vsel %vm593, %v586, %v590
    %v595 = vand.u32 2147483647, %v585
    %vm596 = vcmp.eq.f32.partialorder %v595, 8.507059e+37
    %v597 = vand.u32 %v585, 2147483648
    %v598 = vor.u32 1.1754944e-38, %v597
    %v599 = vsel %vm596, %v598, %v594
    %v600 = vmul.f32 1.0, %v599
    %v601 = vtanh.pop %v548
    %v602 = vxor.u32 %v581, 2147483648
    %v603 = vmul.f32 %v602, 1.442695
    %v604 = vpow.pop %v603
    %v605 = vadd.f32 %v604, 1.0
    %v606 = vrcp.pop %v605
    %v607 = vmul.f32 %v605, %v606
    %v608 = vsub.f32 1.0, %v607
    %v609 = vmul.f32 %v606, %v608
    %v610 = vadd.f32 %v606, %v609
    %vm611 = vweird.f32 %v605
    %vm612 = vweird.f32 %v606
    %vm613 = vmor %vm611, %vm612
    %v614 = vsel %vm613, %v606, %v610
    %v615 = vand.u32 2147483647, %v605
    %vm616 = vcmp.eq.f32.partialorder %v615, 8.507059e+37
    %v617 = vand.u32 %v605, 2147483648
    %v618 = vor.u32 1.1754944e-38, %v617
    %v619 = vsel %vm616, %v618, %v614
    %v620 = vmul.f32 1.0, %v619
    %v621 = vtanh.pop %v581
    %v622 = vmul.f32 %v600, %v476
    %624 = vrot.lane.b32.xlu0 %v601, 32
    %v625 = vpop.permute.xlu0 %624
    %v627 = vmul.f32 %v600, %v625
    %629 = vrot.lane.b32.xlu0 %v627, 32
    %v630 = vpop.permute.xlu0 %629
    %v632 = vadd.f32 %v622, %v630
    %v633 = vtanh.pop %v632
    %635 = vrot.lane.b32.xlu0 %v633, 32
    %v636 = vpop.permute.xlu0 %635
    %v638 = vmul.f32 %v600, %v636
    %v639 = vmul.f32 %v620, %v493
    %641 = vrot.lane.b32.xlu0 %v621, 32
    %v642 = vpop.permute.xlu0 %641
    %v644 = vmul.f32 %v620, %v642
    %646 = vrot.lane.b32.xlu0 %v644, 32
    %v647 = vpop.permute.xlu0 %646
    %v649 = vadd.f32 %v639, %v647
    %v650 = vtanh.pop %v649
    %652 = vrot.lane.b32.xlu0 %v650, 32
    %v653 = vpop.permute.xlu0 %652
    %v655 = vmul.f32 %v620, %v653
    %657 = vst [vmem:[#allocation1] ss:$4 sm:$0xff] %v638
    %v658 = vld.sshfl [vmem:[#allocation1] sm:$0xff pattern:$0x73625140]
    %659 = vrot.lane.b32.xlu0 %v658, 64
    %v660 = vpop.permute.xlu0 %659
    %s662 = scalar_lea.vmem [#allocation3], 4
    %663 = vst.msk [vmem:[%s662] sm:$0x3] %vm349, %v660
    %665 = vst [vmem:[#allocation1] ss:$4 sm:$0xff] %v655
    %v666 = vld.sshfl [vmem:[#allocation1] sm:$0xff pattern:$0x73625140]
    %667 = vrot.lane.b32.xlu0 %v666, 96
    %v668 = vpop.permute.xlu0 %667
    %s670 = scalar_lea.vmem [#allocation3], 10
    %671 = vst.msk [vmem:[%s670] sm:$0x3] %vm358, %v668
    %s672 = scalar_lea.vmem [#allocation2], 12
    %v673 = vld [vmem:[%s672] sm:$0x3]
    %v674 = vld [vmem:[%s2] sm:$0xff]
    %v675 = vld [vmem:[%s2 + $0x8] sm:$0xff]
    %v676 = vld [vmem:[%s2 + $0x10] sm:$0xff]
    %v677 = vld [vmem:[%s2 + $0x18] sm:$0xff]
    %678 = vst [vmem:[#allocation1] ss:$4 sm:$0xff] %v638
    %v679 = vld.sshfl [vmem:[#allocation1] sm:$0xff pattern:$0x73625140]
    %680 = vrot.lane.b32.xlu0 %v679, 64
    %v681 = vpop.permute.xlu0 %680
    %v682 = vsel %vm216, %v681, 0
    %684 = vmatpush.msra.mxu0 0.0
    %685 = vmatpush.msra.mxu0 0.0
    %686 = vmatpush.msra.mxu0 0.0
    %687 = vmatpush.msra.mxu0 0.0
    %688 = vmatpush.msra.mxu0 0.0
    %689 = vmatpush.msra.mxu0 0.0
    %690 = vmatpush.msra.mxu0 0.0
    %691 = vmatpush.msra.mxu0 0.0
    %692 = vmatpush.msra.mxu0 0.0
    %693 = vmatpush.msra.mxu0 0.0
    %694 = vmatpush.msra.mxu0 0.0
    %695 = vmatpush.msra.mxu0 0.0
    %696 = vmatpush.msra.mxu0 %v677
    %697 = vmatpush.msra.mxu0 %v676
    %698 = vmatpush.msra.mxu0 %v675
    %699 = vmatpush.msra.mxu0 %v674
    %700 = vmatmul.f32.gmra.mxu0 %v682
    %v701 = vpop.f32.mrf.mxu0
    %v702 = vadd.f32 0.0, %v701
    %703 = vdwg.mxu0
    %v704 = vadd.f32 %v673, %v702
    %s705 = scalar_lea.vmem [#allocation2], 16
    %v706 = vld [vmem:[%s705 + $0x2] sm:$0x3]
    %v707 = vld [vmem:[%s243] sm:$0xff]
    %v708 = vld [vmem:[%s243 + $0x8] sm:$0xff]
    %v709 = vld [vmem:[%s243 + $0x10] sm:$0xff]
    %v710 = vld [vmem:[%s243 + $0x18] sm:$0xff]
    %711 = vst [vmem:[#allocation1] ss:$4 sm:$0xff] %v655
    %v712 = vld.sshfl [vmem:[#allocation1] sm:$0xff pattern:$0x73625140]
    %713 = vrot.lane.b32.xlu0 %v712, 64
    %v714 = vpop.permute.xlu0 %713
    %v715 = vsel %vm216, %v714, 0
    %717 = vmatpush.msra.mxu0 0.0
    %718 = vmatpush.msra.mxu0 0.0
    %719 = vmatpush.msra.mxu0 0.0
    %720 = vmatpush.msra.mxu0 0.0
    %721 = vmatpush.msra.mxu0 0.0
    %722 = vmatpush.msra.mxu0 0.0
    %723 = vmatpush.msra.mxu0 0.0
    %724 = vmatpush.msra.mxu0 0.0
    %725 = vmatpush.msra.mxu0 0.0
    %726 = vmatpush.msra.mxu0 0.0
    %727 = vmatpush.msra.mxu0 0.0
    %728 = vmatpush.msra.mxu0 0.0
    %729 = vmatpush.msra.mxu0 %v710
    %730 = vmatpush.msra.mxu0 %v709
    %731 = vmatpush.msra.mxu0 %v708
    %732 = vmatpush.msra.mxu0 %v707
    %733 = vmatmul.f32.gmra.mxu0 %v715
    %v734 = vpop.f32.mrf.mxu0
    %v735 = vadd.f32 0.0, %v734
    %736 = vdwg.mxu0
    %v737 = vadd.f32 %v706, %v735
    %v738 = vxor.u32 %v704, 2147483648
    %v739 = vmul.f32 %v738, 1.442695
    %v740 = vpow.pop %v739
    %v741 = vadd.f32 %v740, 1.0
    %v742 = vrcp.pop %v741
    %v743 = vmul.f32 %v741, %v742
    %v744 = vsub.f32 1.0, %v743
    %v745 = vmul.f32 %v742, %v744
    %v746 = vadd.f32 %v742, %v745
    %vm747 = vweird.f32 %v741
    %vm748 = vweird.f32 %v742
    %vm749 = vmor %vm747, %vm748
    %v750 = vsel %vm749, %v742, %v746
    %v751 = vand.u32 2147483647, %v741
    %vm752 = vcmp.eq.f32.partialorder %v751, 8.507059e+37
    %v753 = vand.u32 %v741, 2147483648
    %v754 = vor.u32 1.1754944e-38, %v753
    %v755 = vsel %vm752, %v754, %v750
    %v756 = vmul.f32 1.0, %v755
    %v757 = vtanh.pop %v704
    %v758 = vxor.u32 %v737, 2147483648
    %v759 = vmul.f32 %v758, 1.442695
    %v760 = vpow.pop %v759
    %v761 = vadd.f32 %v760, 1.0
    %v762 = vrcp.pop %v761
    %v763 = vmul.f32 %v761, %v762
    %v764 = vsub.f32 1.0, %v763
    %v765 = vmul.f32 %v762, %v764
    %v766 = vadd.f32 %v762, %v765
    %vm767 = vweird.f32 %v761
    %vm768 = vweird.f32 %v762
    %vm769 = vmor %vm767, %vm768
    %v770 = vsel %vm769, %v762, %v766
    %v771 = vand.u32 2147483647, %v761
    %vm772 = vcmp.eq.f32.partialorder %v771, 8.507059e+37
    %v773 = vand.u32 %v761, 2147483648
    %v774 = vor.u32 1.1754944e-38, %v773
    %v775 = vsel %vm772, %v774, %v770
    %v776 = vmul.f32 1.0, %v775
    %v777 = vtanh.pop %v737
    %v778 = vmul.f32 %v756, %v632
    %780 = vrot.lane.b32.xlu0 %v757, 32
    %v781 = vpop.permute.xlu0 %780
    %v783 = vmul.f32 %v756, %v781
    %785 = vrot.lane.b32.xlu0 %v783, 32
    %v786 = vpop.permute.xlu0 %785
    %v788 = vadd.f32 %v778, %v786
    %v789 = vtanh.pop %v788
    %791 = vrot.lane.b32.xlu0 %v789, 32
    %v792 = vpop.permute.xlu0 %791
    %v794 = vmul.f32 %v756, %v792
    %v795 = vmul.f32 %v776, %v649
    %797 = vrot.lane.b32.xlu0 %v777, 32
    %v798 = vpop.permute.xlu0 %797
    %v800 = vmul.f32 %v776, %v798
    %802 = vrot.lane.b32.xlu0 %v800, 32
    %v803 = vpop.permute.xlu0 %802
    %v805 = vadd.f32 %v795, %v803
    %v806 = vtanh.pop %v805
    %808 = vrot.lane.b32.xlu0 %v806, 32
    %v809 = vpop.permute.xlu0 %808
    %v811 = vmul.f32 %v776, %v809
    %813 = vst [vmem:[#allocation1] ss:$4 sm:$0xff] %v794
    %v814 = vld.sshfl [vmem:[#allocation1] sm:$0xff pattern:$0x73625140]
    %815 = vrot.lane.b32.xlu0 %v814, 64
    %v816 = vpop.permute.xlu0 %815
    %s818 = scalar_lea.vmem [#allocation3], 6
    %819 = vst.msk [vmem:[%s818] sm:$0x3] %vm349, %v816
    %821 = vst [vmem:[#allocation1] ss:$4 sm:$0xff] %v811
    %v822 = vld.sshfl [vmem:[#allocation1] sm:$0xff pattern:$0x73625140]
    %823 = vrot.lane.b32.xlu0 %v822, 96
    %v824 = vpop.permute.xlu0 %823
    %s826 = scalar_lea.vmem [#allocation3], 8
    %827 = vst.msk [vmem:[%s826] sm:$0x3] %vm358, %v824
    %v828 = vld [vmem:[%s705] sm:$0x3]
    %v829 = vld [vmem:[%s2] sm:$0xff]
    %v830 = vld [vmem:[%s2 + $0x8] sm:$0xff]
    %v831 = vld [vmem:[%s2 + $0x10] sm:$0xff]
    %v832 = vld [vmem:[%s2 + $0x18] sm:$0xff]
    %833 = vst [vmem:[#allocation1] ss:$4 sm:$0xff] %v794
    %v834 = vld.sshfl [vmem:[#allocation1] sm:$0xff pattern:$0x73625140]
    %835 = vrot.lane.b32.xlu0 %v834, 64
    %v836 = vpop.permute.xlu0 %835
    %v837 = vsel %vm216, %v836, 0
    %839 = vmatpush.msra.mxu0 0.0
    %840 = vmatpush.msra.mxu0 0.0
    %841 = vmatpush.msra.mxu0 0.0
    %842 = vmatpush.msra.mxu0 0.0
    %843 = vmatpush.msra.mxu0 0.0
    %844 = vmatpush.msra.mxu0 0.0
    %845 = vmatpush.msra.mxu0 0.0
    %846 = vmatpush.msra.mxu0 0.0
    %847 = vmatpush.msra.mxu0 0.0
    %848 = vmatpush.msra.mxu0 0.0
    %849 = vmatpush.msra.mxu0 0.0
    %850 = vmatpush.msra.mxu0 0.0
    %851 = vmatpush.msra.mxu0 %v832
    %852 = vmatpush.msra.mxu0 %v831
    %853 = vmatpush.msra.mxu0 %v830
    %854 = vmatpush.msra.mxu0 %v829
    %855 = vmatmul.f32.gmra.mxu0 %v837
    %v856 = vpop.f32.mrf.mxu0
    %v857 = vadd.f32 0.0, %v856
    %858 = vdwg.mxu0
    %v859 = vadd.f32 %v828, %v857
    %v860 = vld [vmem:[%s672 + $0x2] sm:$0x3]
    %v861 = vld [vmem:[%s243] sm:$0xff]
    %v862 = vld [vmem:[%s243 + $0x8] sm:$0xff]
    %v863 = vld [vmem:[%s243 + $0x10] sm:$0xff]
    %v864 = vld [vmem:[%s243 + $0x18] sm:$0xff]
    %865 = vst [vmem:[#allocation1] ss:$4 sm:$0xff] %v811
    %v866 = vld.sshfl [vmem:[#allocation1] sm:$0xff pattern:$0x73625140]
    %867 = vrot.lane.b32.xlu0 %v866, 64
    %v868 = vpop.permute.xlu0 %867
    %v869 = vsel %vm216, %v868, 0
    %871 = vmatpush.msra.mxu0 0.0
    %872 = vmatpush.msra.mxu0 0.0
    %873 = vmatpush.msra.mxu0 0.0
    %874 = vmatpush.msra.mxu0 0.0
    %875 = vmatpush.msra.mxu0 0.0
    %876 = vmatpush.msra.mxu0 0.0
    %877 = vmatpush.msra.mxu0 0.0
    %878 = vmatpush.msra.mxu0 0.0
    %879 = vmatpush.msra.mxu0 0.0
    %880 = vmatpush.msra.mxu0 0.0
    %881 = vmatpush.msra.mxu0 0.0
    %882 = vmatpush.msra.mxu0 0.0
    %883 = vmatpush.msra.mxu0 %v864
    %884 = vmatpush.msra.mxu0 %v863
    %885 = vmatpush.msra.mxu0 %v862
    %886 = vmatpush.msra.mxu0 %v861
    %887 = vmatmul.f32.gmra.mxu0 %v869
    %v888 = vpop.f32.mrf.mxu0
    %v889 = vadd.f32 0.0, %v888
    %890 = vdwg.mxu0
    %v891 = vadd.f32 %v860, %v889
    %v892 = vxor.u32 %v859, 2147483648
    %v893 = vmul.f32 %v892, 1.442695
    %v894 = vpow.pop %v893
    %v895 = vadd.f32 %v894, 1.0
    %v896 = vrcp.pop %v895
    %v897 = vmul.f32 %v895, %v896
    %v898 = vsub.f32 1.0, %v897
    %v899 = vmul.f32 %v896, %v898
    %v900 = vadd.f32 %v896, %v899
    %vm901 = vweird.f32 %v895
    %vm902 = vweird.f32 %v896
    %vm903 = vmor %vm901, %vm902
    %v904 = vsel %vm903, %v896, %v900
    %v905 = vand.u32 2147483647, %v895
    %vm906 = vcmp.eq.f32.partialorder %v905, 8.507059e+37
    %v907 = vand.u32 %v895, 2147483648
    %v908 = vor.u32 1.1754944e-38, %v907
    %v909 = vsel %vm906, %v908, %v904
    %v910 = vmul.f32 1.0, %v909
    %v911 = vtanh.pop %v859
    %v912 = vxor.u32 %v891, 2147483648
    %v913 = vmul.f32 %v912, 1.442695
    %v914 = vpow.pop %v913
    %v915 = vadd.f32 %v914, 1.0
    %v916 = vrcp.pop %v915
    %v917 = vmul.f32 %v915, %v916
    %v918 = vsub.f32 1.0, %v917
    %v919 = vmul.f32 %v916, %v918
    %v920 = vadd.f32 %v916, %v919
    %vm921 = vweird.f32 %v915
    %vm922 = vweird.f32 %v916
    %vm923 = vmor %vm921, %vm922
    %v924 = vsel %vm923, %v916, %v920
    %v925 = vand.u32 2147483647, %v915
    %vm926 = vcmp.eq.f32.partialorder %v925, 8.507059e+37
    %v927 = vand.u32 %v915, 2147483648
    %v928 = vor.u32 1.1754944e-38, %v927
    %v929 = vsel %vm926, %v928, %v924
    %v930 = vmul.f32 1.0, %v929
    %v931 = vtanh.pop %v891
    %v932 = vmul.f32 %v910, %v788
    %934 = vrot.lane.b32.xlu0 %v911, 32
    %v935 = vpop.permute.xlu0 %934
    %v937 = vmul.f32 %v910, %v935
    %939 = vrot.lane.b32.xlu0 %v937, 32
    %v940 = vpop.permute.xlu0 %939
    %v942 = vadd.f32 %v932, %v940
    %v943 = vtanh.pop %v942
    %945 = vrot.lane.b32.xlu0 %v943, 32
    %v946 = vpop.permute.xlu0 %945
    %v948 = vmul.f32 %v910, %v946
    %v949 = vmul.f32 %v930, %v805
    %951 = vrot.lane.b32.xlu0 %v931, 32
    %v952 = vpop.permute.xlu0 %951
    %v954 = vmul.f32 %v930, %v952
    %956 = vrot.lane.b32.xlu0 %v954, 32
    %v957 = vpop.permute.xlu0 %956
    %v959 = vadd.f32 %v949, %v957
    %v960 = vtanh.pop %v959
    %962 = vrot.lane.b32.xlu0 %v960, 32
    %v963 = vpop.permute.xlu0 %962
    %v965 = vmul.f32 %v930, %v963
    %967 = vst [vmem:[#allocation1] ss:$4 sm:$0xff] %v948
    %v968 = vld.sshfl [vmem:[#allocation1] sm:$0xff pattern:$0x73625140]
    %969 = vrot.lane.b32.xlu0 %v968, 64
    %v970 = vpop.permute.xlu0 %969
    %972 = vst.msk [vmem:[%s826] sm:$0x3] %vm349, %v970
    %974 = vst [vmem:[#allocation1] ss:$4 sm:$0xff] %v965
    %v975 = vld.sshfl [vmem:[#allocation1] sm:$0xff pattern:$0x73625140]
    %976 = vrot.lane.b32.xlu0 %v975, 96
    %v977 = vpop.permute.xlu0 %976
    %979 = vst.msk [vmem:[%s818] sm:$0x3] %vm358, %v977
    %v980 = vld [vmem:[%s549] sm:$0x3]
    %v981 = vld [vmem:[%s2] sm:$0xff]
    %v982 = vld [vmem:[%s2 + $0x8] sm:$0xff]
    %v983 = vld [vmem:[%s2 + $0x10] sm:$0xff]
    %v984 = vld [vmem:[%s2 + $0x18] sm:$0xff]
    %985 = vst [vmem:[#allocation1] ss:$4 sm:$0xff] %v948
    %v986 = vld.sshfl [vmem:[#allocation1] sm:$0xff pattern:$0x73625140]
    %987 = vrot.lane.b32.xlu0 %v986, 64
    %v988 = vpop.permute.xlu0 %987
    %v989 = vsel %vm216, %v988, 0
    %991 = vmatpush.msra.mxu0 0.0
    %992 = vmatpush.msra.mxu0 0.0
    %993 = vmatpush.msra.mxu0 0.0
    %994 = vmatpush.msra.mxu0 0.0
    %995 = vmatpush.msra.mxu0 0.0
    %996 = vmatpush.msra.mxu0 0.0
    %997 = vmatpush.msra.mxu0 0.0
    %998 = vmatpush.msra.mxu0 0.0
    %999 = vmatpush.msra.mxu0 0.0
    %1000 = vmatpush.msra.mxu0 0.0
    %1001 = vmatpush.msra.mxu0 0.0
    %1002 = vmatpush.msra.mxu0 0.0
    %1003 = vmatpush.msra.mxu0 %v984
    %1004 = vmatpush.msra.mxu0 %v983
    %1005 = vmatpush.msra.mxu0 %v982
    %1006 = vmatpush.msra.mxu0 %v981
    %1007 = vmatmul.f32.gmra.mxu0 %v989
    %v1008 = vpop.f32.mrf.mxu0
    %v1009 = vadd.f32 0.0, %v1008
    %1010 = vdwg.mxu0
    %v1011 = vadd.f32 %v980, %v1009
    %v1012 = vld [vmem:[%s516 + $0x2] sm:$0x3]
    %v1013 = vld [vmem:[%s243] sm:$0xff]
    %v1014 = vld [vmem:[%s243 + $0x8] sm:$0xff]
    %v1015 = vld [vmem:[%s243 + $0x10] sm:$0xff]
    %v1016 = vld [vmem:[%s243 + $0x18] sm:$0xff]
    %1017 = vst [vmem:[#allocation1] ss:$4 sm:$0xff] %v965
    %v1018 = vld.sshfl [vmem:[#allocation1] sm:$0xff pattern:$0x73625140]
    %1019 = vrot.lane.b32.xlu0 %v1018, 64
    %v1020 = vpop.permute.xlu0 %1019
    %v1021 = vsel %vm216, %v1020, 0
    %1023 = vmatpush.msra.mxu0 0.0
    %1024 = vmatpush.msra.mxu0 0.0
    %1025 = vmatpush.msra.mxu0 0.0
    %1026 = vmatpush.msra.mxu0 0.0
    %1027 = vmatpush.msra.mxu0 0.0
    %1028 = vmatpush.msra.mxu0 0.0
    %1029 = vmatpush.msra.mxu0 0.0
    %1030 = vmatpush.msra.mxu0 0.0
    %1031 = vmatpush.msra.mxu0 0.0
    %1032 = vmatpush.msra.mxu0 0.0
    %1033 = vmatpush.msra.mxu0 0.0
    %1034 = vmatpush.msra.mxu0 0.0
    %1035 = vmatpush.msra.mxu0 %v1016
    %1036 = vmatpush.msra.mxu0 %v1015
    %1037 = vmatpush.msra.mxu0 %v1014
    %1038 = vmatpush.msra.mxu0 %v1013
    %1039 = vmatmul.f32.gmra.mxu0 %v1021
    %v1040 = vpop.f32.mrf.mxu0
    %v1041 = vadd.f32 0.0, %v1040
    %1042 = vdwg.mxu0
    %v1043 = vadd.f32 %v1012, %v1041
    %v1044 = vxor.u32 %v1011, 2147483648
    %v1045 = vmul.f32 %v1044, 1.442695
    %v1046 = vpow.pop %v1045
    %v1047 = vadd.f32 %v1046, 1.0
    %v1048 = vrcp.pop %v1047
    %v1049 = vmul.f32 %v1047, %v1048
    %v1050 = vsub.f32 1.0, %v1049
    %v1051 = vmul.f32 %v1048, %v1050
    %v1052 = vadd.f32 %v1048, %v1051
    %vm1053 = vweird.f32 %v1047
    %vm1054 = vweird.f32 %v1048
    %vm1055 = vmor %vm1053, %vm1054
    %v1056 = vsel %vm1055, %v1048, %v1052
    %v1057 = vand.u32 2147483647, %v1047
    %vm1058 = vcmp.eq.f32.partialorder %v1057, 8.507059e+37
    %v1059 = vand.u32 %v1047, 2147483648
    %v1060 = vor.u32 1.1754944e-38, %v1059
    %v1061 = vsel %vm1058, %v1060, %v1056
    %v1062 = vmul.f32 1.0, %v1061
    %v1063 = vtanh.pop %v1011
    %v1064 = vxor.u32 %v1043, 2147483648
    %v1065 = vmul.f32 %v1064, 1.442695
    %v1066 = vpow.pop %v1065
    %v1067 = vadd.f32 %v1066, 1.0
    %v1068 = vrcp.pop %v1067
    %v1069 = vmul.f32 %v1067, %v1068
    %v1070 = vsub.f32 1.0, %v1069
    %v1071 = vmul.f32 %v1068, %v1070
    %v1072 = vadd.f32 %v1068, %v1071
    %vm1073 = vweird.f32 %v1067
    %vm1074 = vweird.f32 %v1068
    %vm1075 = vmor %vm1073, %vm1074
    %v1076 = vsel %vm1075, %v1068, %v1072
    %v1077 = vand.u32 2147483647, %v1067
    %vm1078 = vcmp.eq.f32.partialorder %v1077, 8.507059e+37
    %v1079 = vand.u32 %v1067, 2147483648
    %v1080 = vor.u32 1.1754944e-38, %v1079
    %v1081 = vsel %vm1078, %v1080, %v1076
    %v1082 = vmul.f32 1.0, %v1081
    %v1083 = vtanh.pop %v1043
    %v1084 = vmul.f32 %v1062, %v942
    %1086 = vrot.lane.b32.xlu0 %v1063, 32
    %v1087 = vpop.permute.xlu0 %1086
    %v1089 = vmul.f32 %v1062, %v1087
    %1091 = vrot.lane.b32.xlu0 %v1089, 32
    %v1092 = vpop.permute.xlu0 %1091
    %v1094 = vadd.f32 %v1084, %v1092
    %v1095 = vtanh.pop %v1094
    %1097 = vrot.lane.b32.xlu0 %v1095, 32
    %v1098 = vpop.permute.xlu0 %1097
    %v1100 = vmul.f32 %v1062, %v1098
    %v1101 = vmul.f32 %v1082, %v959
    %1103 = vrot.lane.b32.xlu0 %v1083, 32
    %v1104 = vpop.permute.xlu0 %1103
    %v1106 = vmul.f32 %v1082, %v1104
    %1108 = vrot.lane.b32.xlu0 %v1106, 32
    %v1109 = vpop.permute.xlu0 %1108
    %v1111 = vadd.f32 %v1101, %v1109
    %v1112 = vtanh.pop %v1111
    %1114 = vrot.lane.b32.xlu0 %v1112, 32
    %v1115 = vpop.permute.xlu0 %1114
    %v1117 = vmul.f32 %v1082, %v1115
    %1119 = vst [vmem:[#allocation1] ss:$4 sm:$0xff] %v1100
    %v1120 = vld.sshfl [vmem:[#allocation1] sm:$0xff pattern:$0x73625140]
    %1121 = vrot.lane.b32.xlu0 %v1120, 64
    %v1122 = vpop.permute.xlu0 %1121
    %1124 = vst.msk [vmem:[%s670] sm:$0x3] %vm349, %v1122
    %1126 = vst [vmem:[#allocation1] ss:$4 sm:$0xff] %v1117
    %v1127 = vld.sshfl [vmem:[#allocation1] sm:$0xff pattern:$0x73625140]
    %1128 = vrot.lane.b32.xlu0 %v1127, 96
    %v1129 = vpop.permute.xlu0 %1128
    %1131 = vst.msk [vmem:[%s662] sm:$0x3] %vm358, %v1129
    %v1132 = vld [vmem:[%s393] sm:$0x3]
    %v1133 = vld [vmem:[%s2] sm:$0xff]
    %v1134 = vld [vmem:[%s2 + $0x8] sm:$0xff]
    %v1135 = vld [vmem:[%s2 + $0x10] sm:$0xff]
    %v1136 = vld [vmem:[%s2 + $0x18] sm:$0xff]
    %1137 = vst [vmem:[#allocation1] ss:$4 sm:$0xff] %v1100
    %v1138 = vld.sshfl [vmem:[#allocation1] sm:$0xff pattern:$0x73625140]
    %1139 = vrot.lane.b32.xlu0 %v1138, 64
    %v1140 = vpop.permute.xlu0 %1139
    %v1141 = vsel %vm216, %v1140, 0
    %1143 = vmatpush.msra.mxu0 0.0
    %1144 = vmatpush.msra.mxu0 0.0
    %1145 = vmatpush.msra.mxu0 0.0
    %1146 = vmatpush.msra.mxu0 0.0
    %1147 = vmatpush.msra.mxu0 0.0
    %1148 = vmatpush.msra.mxu0 0.0
    %1149 = vmatpush.msra.mxu0 0.0
    %1150 = vmatpush.msra.mxu0 0.0
    %1151 = vmatpush.msra.mxu0 0.0
    %1152 = vmatpush.msra.mxu0 0.0
    %1153 = vmatpush.msra.mxu0 0.0
    %1154 = vmatpush.msra.mxu0 0.0
    %1155 = vmatpush.msra.mxu0 %v1136
    %1156 = vmatpush.msra.mxu0 %v1135
    %1157 = vmatpush.msra.mxu0 %v1134
    %1158 = vmatpush.msra.mxu0 %v1133
    %1159 = vmatmul.f32.gmra.mxu0 %v1141
    %v1160 = vpop.f32.mrf.mxu0
    %v1161 = vadd.f32 0.0, %v1160
    %1162 = vdwg.mxu0
    %v1163 = vadd.f32 %v1132, %v1161
    %v1164 = vld [vmem:[%s360 + $0x2] sm:$0x3]
    %v1165 = vld [vmem:[%s243] sm:$0xff]
    %v1166 = vld [vmem:[%s243 + $0x8] sm:$0xff]
    %v1167 = vld [vmem:[%s243 + $0x10] sm:$0xff]
    %v1168 = vld [vmem:[%s243 + $0x18] sm:$0xff]
    %1169 = vst [vmem:[#allocation1] ss:$4 sm:$0xff] %v1117
    %v1170 = vld.sshfl [vmem:[#allocation1] sm:$0xff pattern:$0x73625140]
    %1171 = vrot.lane.b32.xlu0 %v1170, 64
    %v1172 = vpop.permute.xlu0 %1171
    %v1173 = vsel %vm216, %v1172, 0
    %1175 = vmatpush.msra.mxu0 0.0
    %1176 = vmatpush.msra.mxu0 0.0
    %1177 = vmatpush.msra.mxu0 0.0
    %1178 = vmatpush.msra.mxu0 0.0
    %1179 = vmatpush.msra.mxu0 0.0
    %1180 = vmatpush.msra.mxu0 0.0
    %1181 = vmatpush.msra.mxu0 0.0
    %1182 = vmatpush.msra.mxu0 0.0
    %1183 = vmatpush.msra.mxu0 0.0
    %1184 = vmatpush.msra.mxu0 0.0
    %1185 = vmatpush.msra.mxu0 0.0
    %1186 = vmatpush.msra.mxu0 0.0
    %1187 = vmatpush.msra.mxu0 %v1168
    %1188 = vmatpush.msra.mxu0 %v1167
    %1189 = vmatpush.msra.mxu0 %v1166
    %1190 = vmatpush.msra.mxu0 %v1165
    %1191 = vmatmul.f32.gmra.mxu0 %v1173
    %v1192 = vpop.f32.mrf.mxu0
    %v1193 = vadd.f32 0.0, %v1192
    %1194 = vdwg.mxu0
    %v1195 = vadd.f32 %v1164, %v1193
    %v1196 = vxor.u32 %v1163, 2147483648
    %v1197 = vmul.f32 %v1196, 1.442695
    %v1198 = vpow.pop %v1197
    %v1199 = vadd.f32 %v1198, 1.0
    %v1200 = vrcp.pop %v1199
    %v1201 = vmul.f32 %v1199, %v1200
    %v1202 = vsub.f32 1.0, %v1201
    %v1203 = vmul.f32 %v1200, %v1202
    %v1204 = vadd.f32 %v1200, %v1203
    %vm1205 = vweird.f32 %v1199
    %vm1206 = vweird.f32 %v1200
    %vm1207 = vmor %vm1205, %vm1206
    %v1208 = vsel %vm1207, %v1200, %v1204
    %v1209 = vand.u32 2147483647, %v1199
    %vm1210 = vcmp.eq.f32.partialorder %v1209, 8.507059e+37
    %v1211 = vand.u32 %v1199, 2147483648
    %v1212 = vor.u32 1.1754944e-38, %v1211
    %v1213 = vsel %vm1210, %v1212, %v1208
    %v1214 = vmul.f32 1.0, %v1213
    %v1215 = vtanh.pop %v1163
    %v1216 = vxor.u32 %v1195, 2147483648
    %v1217 = vmul.f32 %v1216, 1.442695
    %v1218 = vpow.pop %v1217
    %v1219 = vadd.f32 %v1218, 1.0
    %v1220 = vrcp.pop %v1219
    %v1221 = vmul.f32 %v1219, %v1220
    %v1222 = vsub.f32 1.0, %v1221
    %v1223 = vmul.f32 %v1220, %v1222
    %v1224 = vadd.f32 %v1220, %v1223
    %vm1225 = vweird.f32 %v1219
    %vm1226 = vweird.f32 %v1220
    %vm1227 = vmor %vm1225, %vm1226
    %v1228 = vsel %vm1227, %v1220, %v1224
    %v1229 = vand.u32 2147483647, %v1219
    %vm1230 = vcmp.eq.f32.partialorder %v1229, 8.507059e+37
    %v1231 = vand.u32 %v1219, 2147483648
    %v1232 = vor.u32 1.1754944e-38, %v1231
    %v1233 = vsel %vm1230, %v1232, %v1228
    %v1234 = vmul.f32 1.0, %v1233
    %v1235 = vtanh.pop %v1195
    %v1236 = vmul.f32 %v1214, %v1094
    %1238 = vrot.lane.b32.xlu0 %v1215, 32
    %v1239 = vpop.permute.xlu0 %1238
    %v1241 = vmul.f32 %v1214, %v1239
    %1243 = vrot.lane.b32.xlu0 %v1241, 32
    %v1244 = vpop.permute.xlu0 %1243
    %v1246 = vadd.f32 %v1236, %v1244
    %v1247 = vtanh.pop %v1246
    %1249 = vrot.lane.b32.xlu0 %v1247, 32
    %v1250 = vpop.permute.xlu0 %1249
    %v1252 = vmul.f32 %v1214, %v1250
    %v1253 = vmul.f32 %v1234, %v1111
    %1255 = vrot.lane.b32.xlu0 %v1235, 32
    %v1256 = vpop.permute.xlu0 %1255
    %v1258 = vmul.f32 %v1234, %v1256
    %1260 = vrot.lane.b32.xlu0 %v1258, 32
    %v1261 = vpop.permute.xlu0 %1260
    %v1263 = vadd.f32 %v1253, %v1261
    %v1264 = vtanh.pop %v1263
    %1266 = vrot.lane.b32.xlu0 %v1264, 32
    %v1267 = vpop.permute.xlu0 %1266
    %v1269 = vmul.f32 %v1234, %v1267
    %1271 = vst [vmem:[#allocation1] ss:$4 sm:$0xff] %v1252
    %v1272 = vld.sshfl [vmem:[#allocation1] sm:$0xff pattern:$0x73625140]
    %1273 = vrot.lane.b32.xlu0 %v1272, 64
    %v1274 = vpop.permute.xlu0 %1273
    %1276 = vst.msk [vmem:[%s514] sm:$0x3] %vm349, %v1274
    %1278 = vst [vmem:[#allocation1] ss:$4 sm:$0xff] %v1269
    %v1279 = vld.sshfl [vmem:[#allocation1] sm:$0xff pattern:$0x73625140]
    %1280 = vrot.lane.b32.xlu0 %v1279, 96
    %v1281 = vpop.permute.xlu0 %1280
    %1283 = vst.msk [vmem:[%s506] sm:$0x3] %vm358, %v1281
    %v1284 = vld [vmem:[%s241] sm:$0x3]
    %v1285 = vld [vmem:[%s2] sm:$0xff]
    %v1286 = vld [vmem:[%s2 + $0x8] sm:$0xff]
    %v1287 = vld [vmem:[%s2 + $0x10] sm:$0xff]
    %v1288 = vld [vmem:[%s2 + $0x18] sm:$0xff]
    %1289 = vst [vmem:[#allocation1] ss:$4 sm:$0xff] %v1252
    %v1290 = vld.sshfl [vmem:[#allocation1] sm:$0xff pattern:$0x73625140]
    %1291 = vrot.lane.b32.xlu0 %v1290, 64
    %v1292 = vpop.permute.xlu0 %1291
    %v1293 = vsel %vm216, %v1292, 0
    %1295 = vmatpush.msra.mxu0 0.0
    %1296 = vmatpush.msra.mxu0 0.0
    %1297 = vmatpush.msra.mxu0 0.0
    %1298 = vmatpush.msra.mxu0 0.0
    %1299 = vmatpush.msra.mxu0 0.0
    %1300 = vmatpush.msra.mxu0 0.0
    %1301 = vmatpush.msra.mxu0 0.0
    %1302 = vmatpush.msra.mxu0 0.0
    %1303 = vmatpush.msra.mxu0 0.0
    %1304 = vmatpush.msra.mxu0 0.0
    %1305 = vmatpush.msra.mxu0 0.0
    %1306 = vmatpush.msra.mxu0 0.0
    %1307 = vmatpush.msra.mxu0 %v1288
    %1308 = vmatpush.msra.mxu0 %v1287
    %1309 = vmatpush.msra.mxu0 %v1286
    %1310 = vmatpush.msra.mxu0 %v1285
    %1311 = vmatmul.f32.gmra.mxu0 %v1293
    %v1312 = vpop.f32.mrf.mxu0
    %v1313 = vadd.f32 0.0, %v1312
    %1314 = vdwg.mxu0
    %v1315 = vadd.f32 %v1284, %v1313
    %v1316 = vld [vmem:[#allocation2 + $0x2] sm:$0x3]
    %v1317 = vld [vmem:[%s243] sm:$0xff]
    %v1318 = vld [vmem:[%s243 + $0x8] sm:$0xff]
    %v1319 = vld [vmem:[%s243 + $0x10] sm:$0xff]
    %v1320 = vld [vmem:[%s243 + $0x18] sm:$0xff]
    %1321 = vst [vmem:[#allocation1] ss:$4 sm:$0xff] %v1269
    %v1322 = vld.sshfl [vmem:[#allocation1] sm:$0xff pattern:$0x73625140]
    %1323 = vrot.lane.b32.xlu0 %v1322, 64
    %v1324 = vpop.permute.xlu0 %1323
    %v1325 = vsel %vm216, %v1324, 0
    %1327 = vmatpush.msra.mxu0 0.0
    %1328 = vmatpush.msra.mxu0 0.0
    %1329 = vmatpush.msra.mxu0 0.0
    %1330 = vmatpush.msra.mxu0 0.0
    %1331 = vmatpush.msra.mxu0 0.0
    %1332 = vmatpush.msra.mxu0 0.0
    %1333 = vmatpush.msra.mxu0 0.0
    %1334 = vmatpush.msra.mxu0 0.0
    %1335 = vmatpush.msra.mxu0 0.0
    %1336 = vmatpush.msra.mxu0 0.0
    %1337 = vmatpush.msra.mxu0 0.0
    %1338 = vmatpush.msra.mxu0 0.0
    %1339 = vmatpush.msra.mxu0 %v1320
    %1340 = vmatpush.msra.mxu0 %v1319
    %1341 = vmatpush.msra.mxu0 %v1318
    %1342 = vmatpush.msra.mxu0 %v1317
    %1343 = vmatmul.f32.gmra.mxu0 %v1325
    %v1344 = vpop.f32.mrf.mxu0
    %v1345 = vadd.f32 0.0, %v1344
    %1346 = vdwg.mxu0
    %v1347 = vadd.f32 %v1316, %v1345
    %v1348 = vxor.u32 %v1315, 2147483648
    %v1349 = vmul.f32 %v1348, 1.442695
    %v1350 = vpow.pop %v1349
    %v1351 = vadd.f32 %v1350, 1.0
    %v1352 = vrcp.pop %v1351
    %v1353 = vmul.f32 %v1351, %v1352
    %v1354 = vsub.f32 1.0, %v1353
    %v1355 = vmul.f32 %v1352, %v1354
    %v1356 = vadd.f32 %v1352, %v1355
    %vm1357 = vweird.f32 %v1351
    %vm1358 = vweird.f32 %v1352
    %vm1359 = vmor %vm1357, %vm1358
    %v1360 = vsel %vm1359, %v1352, %v1356
    %v1361 = vand.u32 2147483647, %v1351
    %vm1362 = vcmp.eq.f32.partialorder %v1361, 8.507059e+37
    %v1363 = vand.u32 %v1351, 2147483648
    %v1364 = vor.u32 1.1754944e-38, %v1363
    %v1365 = vsel %vm1362, %v1364, %v1360
    %v1366 = vmul.f32 1.0, %v1365
    %v1367 = vtanh.pop %v1315
    %v1368 = vxor.u32 %v1347, 2147483648
    %v1369 = vmul.f32 %v1368, 1.442695
    %v1370 = vpow.pop %v1369
    %v1371 = vadd.f32 %v1370, 1.0
    %v1372 = vrcp.pop %v1371
    %v1373 = vmul.f32 %v1371, %v1372
    %v1374 = vsub.f32 1.0, %v1373
    %v1375 = vmul.f32 %v1372, %v1374
    %v1376 = vadd.f32 %v1372, %v1375
    %vm1377 = vweird.f32 %v1371
    %vm1378 = vweird.f32 %v1372
    %vm1379 = vmor %vm1377, %vm1378
    %v1380 = vsel %vm1379, %v1372, %v1376
    %v1381 = vand.u32 2147483647, %v1371
    %vm1382 = vcmp.eq.f32.partialorder %v1381, 8.507059e+37
    %v1383 = vand.u32 %v1371, 2147483648
    %v1384 = vor.u32 1.1754944e-38, %v1383
    %v1385 = vsel %vm1382, %v1384, %v1380
    %v1386 = vmul.f32 1.0, %v1385
    %v1387 = vtanh.pop %v1347
    %v1388 = vmul.f32 %v1366, %v1246
    %1390 = vrot.lane.b32.xlu0 %v1367, 32
    %v1391 = vpop.permute.xlu0 %1390
    %v1393 = vmul.f32 %v1366, %v1391
    %1395 = vrot.lane.b32.xlu0 %v1393, 32
    %v1396 = vpop.permute.xlu0 %1395
    %v1398 = vadd.f32 %v1388, %v1396
    %v1399 = vtanh.pop %v1398
    %1401 = vrot.lane.b32.xlu0 %v1399, 32
    %v1402 = vpop.permute.xlu0 %1401
    %v1404 = vmul.f32 %v1366, %v1402
    %v1405 = vmul.f32 %v1386, %v1263
    %1407 = vrot.lane.b32.xlu0 %v1387, 32
    %v1408 = vpop.permute.xlu0 %1407
    %v1410 = vmul.f32 %v1386, %v1408
    %1412 = vrot.lane.b32.xlu0 %v1410, 32
    %v1413 = vpop.permute.xlu0 %1412
    %v1415 = vadd.f32 %v1405, %v1413
    %v1416 = vtanh.pop %v1415
    %1418 = vrot.lane.b32.xlu0 %v1416, 32
    %v1419 = vpop.permute.xlu0 %1418
    %v1421 = vmul.f32 %v1386, %v1419
    %1423 = vst [vmem:[#allocation1] ss:$4 sm:$0xff] %v1404
    %v1424 = vld.sshfl [vmem:[#allocation1] sm:$0xff pattern:$0x73625140]
    %1425 = vrot.lane.b32.xlu0 %v1424, 64
    %v1426 = vpop.permute.xlu0 %1425
    %1428 = vst.msk [vmem:[%s357] sm:$0x3] %vm349, %v1426
    %1430 = vst [vmem:[#allocation1] ss:$4 sm:$0xff] %v1421
    %v1431 = vld.sshfl [vmem:[#allocation1] sm:$0xff pattern:$0x73625140]
    %1432 = vrot.lane.b32.xlu0 %v1431, 96
    %v1433 = vpop.permute.xlu0 %1432
    %1435 = vst.msk [vmem:[#allocation3] sm:$0x3] %vm358, %v1433
    %v1436 = vld [vmem:[#allocation3] sm:$0x3]
    %v1437 = vld [vmem:[#allocation3 + $0x2] sm:$0x3]
    %v1438 = vld [vmem:[#allocation3 + $0x4] sm:$0x3]
    %v1439 = vld [vmem:[#allocation3 + $0x6] sm:$0x3]
    %v1440 = vld [vmem:[#allocation3 + $0x8] sm:$0x3]
    %v1441 = vld [vmem:[#allocation3 + $0xa] sm:$0x3]
    %v1442 = vld [vmem:[#allocation3 + $0xc] sm:$0x3]
    %v1443 = vld [vmem:[#allocation3 + $0xe] sm:$0x3]
    %v1444 = vld [vmem:[#allocation4] sm:$0xff]
    %v1445 = vld [vmem:[#allocation4 + $0x8] sm:$0xff]
    %v1446 = vld [vmem:[#allocation4 + $0x10] sm:$0xff]
    %v1447 = vld [vmem:[#allocation4 + $0x18] sm:$0xff]
    %v1448 = vld [vmem:[#allocation4 + $0x20] sm:$0xff]
    %v1449 = vld [vmem:[#allocation4 + $0x28] sm:$0xff]
    %v1450 = vld [vmem:[#allocation4 + $0x30] sm:$0xff]
    %v1451 = vld [vmem:[#allocation4 + $0x38] sm:$0xff]
    %v1452 = vld [vmem:[#allocation4 + $0x40] sm:$0xff]
    %v1453 = vld [vmem:[#allocation4 + $0x48] sm:$0xff]
    %v1454 = vld [vmem:[#allocation4 + $0x50] sm:$0xff]
    %v1455 = vld [vmem:[#allocation4 + $0x58] sm:$0xff]
    %v1456 = vld [vmem:[#allocation4 + $0x60] sm:$0xff]
    %v1457 = vld [vmem:[#allocation4 + $0x68] sm:$0xff]
    %v1458 = vld [vmem:[#allocation4 + $0x70] sm:$0xff]
    %v1459 = vld [vmem:[#allocation4 + $0x78] sm:$0xff]
    %v1460 = vld [vmem:[#allocation8] sm:$0x3]
    %v1462 = vperm.slane %v1460, 0
    %v1463 = vperm.slane %v1460, 1
    %1474 = vst [vmem:[#allocation1] ss:$4 sm:$0xff] %v1436
    %s1475 = scalar_lea.vmem [#allocation1], 1
    %1476 = vst [vmem:[%s1475] ss:$4 sm:$0xff] %v1437
    %s1477 = scalar_lea.vmem [#allocation1], 2
    %1478 = vst [vmem:[%s1477] ss:$4 sm:$0xff] %v1438
    %s1479 = scalar_lea.vmem [#allocation1], 3
    %1480 = vst [vmem:[%s1479] ss:$4 sm:$0xff] %v1439
    %s1481 = scalar_lea.vmem [#allocation1], 32
    %1482 = vst [vmem:[%s1481] ss:$4 sm:$0xff] %v1440
    %s1483 = scalar_lea.vmem [#allocation1], 33
    %1484 = vst [vmem:[%s1483] ss:$4 sm:$0xff] %v1441
    %s1485 = scalar_lea.vmem [#allocation1], 34
    %1486 = vst [vmem:[%s1485] ss:$4 sm:$0xff] %v1442
    %s1487 = scalar_lea.vmem [#allocation1], 35
    %1488 = vst [vmem:[%s1487] ss:$4 sm:$0xff] %v1443
    %v1489 = vld.sshfl [vmem:[#allocation1] sm:$0xff pattern:$0x73625140]
    %v1490 = vld.sshfl [vmem:[#allocation1 + $0x20] sm:$0xff pattern:$0x73625140]
    %vm1491 = vcmask 523264
    %v1492 = vsel %vm1491, %v1489, 0
    %v1494 = vsel %vm1491, %v1490, 0
    %1496 = vmatpush.msra.mxu0 0.0
    %1497 = vmatpush.msra.mxu0 0.0
    %1498 = vmatpush.msra.mxu0 0.0
    %1499 = vmatpush.msra.mxu0 0.0
    %1500 = vmatpush.msra.mxu0 0.0
    %1501 = vmatpush.msra.mxu0 0.0
    %1502 = vmatpush.msra.mxu0 0.0
    %1503 = vmatpush.msra.mxu0 0.0
    %1504 = vmatpush.msra.mxu0 %v1458
    %1505 = vmatpush.msra.mxu0 %v1456
    %1506 = vmatpush.msra.mxu0 %v1454
    %1507 = vmatpush.msra.mxu0 %v1452
    %1508 = vmatpush.msra.mxu0 %v1450
    %1509 = vmatpush.msra.mxu0 %v1448
    %1510 = vmatpush.msra.mxu0 %v1446
    %1511 = vmatpush.msra.mxu0 %v1444
    %1512 = vmatmul.f32.gmra.mxu0 %v1492
    %v1513 = vpop.f32.mrf.mxu0
    %v1514 = vadd.f32 %v1462, %v1513
    %1515 = vmatmul.f32.gmra.mxu0 %v1494
    %v1516 = vpop.f32.mrf.mxu0
    %v1517 = vadd.f32 %v1462, %v1516
    %1518 = vdwg.mxu0
    %1519 = vmatpush.msra.mxu0 0.0
    %1520 = vmatpush.msra.mxu0 0.0
    %1521 = vmatpush.msra.mxu0 0.0
    %1522 = vmatpush.msra.mxu0 0.0
    %1523 = vmatpush.msra.mxu0 0.0
    %1524 = vmatpush.msra.mxu0 0.0
    %1525 = vmatpush.msra.mxu0 0.0
    %1526 = vmatpush.msra.mxu0 0.0
    %1527 = vmatpush.msra.mxu0 %v1459
    %1528 = vmatpush.msra.mxu0 %v1457
    %1529 = vmatpush.msra.mxu0 %v1455
    %1530 = vmatpush.msra.mxu0 %v1453
    %1531 = vmatpush.msra.mxu0 %v1451
    %1532 = vmatpush.msra.mxu0 %v1449
    %1533 = vmatpush.msra.mxu0 %v1447
    %1534 = vmatpush.msra.mxu0 %v1445
    %1535 = vmatmul.f32.gmra.mxu0 %v1492
    %v1536 = vpop.f32.mrf.mxu0
    %v1537 = vadd.f32 %v1463, %v1536
    %1538 = vmatmul.f32.gmra.mxu0 %v1494
    %v1539 = vpop.f32.mrf.mxu0
    %v1540 = vadd.f32 %v1463, %v1539
    %1541 = vdwg.mxu0
    %v1546 = vrot.slane %v1537, 6
    %v1547 = vrot.slane %v1540, 6
    %v1548 = vsel %vm177, %v1514, %v1546
    %v1549 = vsel %vm179, %v1514, %v1546
    %v1550 = vrot.slane %v1549, 2
    %v1551 = vsel %vm182, %v1514, %v1546
    %v1552 = vrot.slane %v1551, 4
    %v1553 = vsel %vm185, %v1546, %v1514
    %v1554 = vrot.slane %v1553, 6
    %v1555 = vsel %vm177, %v1517, %v1547
    %v1556 = vsel %vm179, %v1517, %v1547
    %v1557 = vrot.slane %v1556, 2
    %v1558 = vsel %vm182, %v1517, %v1547
    %v1559 = vrot.slane %v1558, 4
    %v1560 = vsel %vm185, %v1547, %v1517
    %v1561 = vrot.slane %v1560, 6
    %1570 = vst [vmem:[#allocation2] sm:$0xf] %v1548
    %1571 = vst [vmem:[#allocation2 + $0x4] sm:$0xf] %v1550
    %1572 = vst [vmem:[#allocation2 + $0x8] sm:$0xf] %v1552
    %1573 = vst [vmem:[#allocation2 + $0xc] sm:$0xf] %v1554
    %1574 = vst [vmem:[#allocation2 + $0x10] sm:$0xf] %v1555
    %1575 = vst [vmem:[#allocation2 + $0x14] sm:$0xf] %v1557
    %1576 = vst [vmem:[#allocation2 + $0x18] sm:$0xf] %v1559
    %1577 = vst [vmem:[#allocation2 + $0x1c] sm:$0xf] %v1561
    %v1578 = vld [vmem:[#allocation2] sm:$0x3]
    %v1579 = vld [vmem:[#allocation6] sm:$0xff]
    %v1580 = vld [vmem:[#allocation6 + $0x8] sm:$0xff]
    %v1581 = vld [vmem:[#allocation6 + $0x10] sm:$0xff]
    %v1582 = vld [vmem:[#allocation6 + $0x18] sm:$0xff]
    %1583 = vmatpush.msra.mxu0 0.0
    %1584 = vmatpush.msra.mxu0 0.0
    %1585 = vmatpush.msra.mxu0 0.0
    %1586 = vmatpush.msra.mxu0 0.0
    %1587 = vmatpush.msra.mxu0 0.0
    %1588 = vmatpush.msra.mxu0 0.0
    %1589 = vmatpush.msra.mxu0 0.0
    %1590 = vmatpush.msra.mxu0 0.0
    %1591 = vmatpush.msra.mxu0 0.0
    %1592 = vmatpush.msra.mxu0 0.0
    %1593 = vmatpush.msra.mxu0 0.0
    %1594 = vmatpush.msra.mxu0 0.0
    %1595 = vmatpush.msra.mxu0 %v1582
    %1596 = vmatpush.msra.mxu0 %v1581
    %1597 = vmatpush.msra.mxu0 %v1580
    %1598 = vmatpush.msra.mxu0 %v1579
    %1599 = vmatmul.f32.gmra.mxu0 %v218
    %v1600 = vpop.f32.mrf.mxu0
    %v1601 = vadd.f32 0.0, %v1600
    %1602 = vdwg.mxu0
    %v1603 = vadd.f32 %v1578, %v1601
    %v1604 = vld [vmem:[%s241 + $0x2] sm:$0x3]
    %s1605 = scalar_lea.vmem [#allocation6], 32
    %v1606 = vld [vmem:[%s1605] sm:$0xff]
    %v1607 = vld [vmem:[%s1605 + $0x8] sm:$0xff]
    %v1608 = vld [vmem:[%s1605 + $0x10] sm:$0xff]
    %v1609 = vld [vmem:[%s1605 + $0x18] sm:$0xff]
    %1610 = vmatpush.msra.mxu0 0.0
    %1611 = vmatpush.msra.mxu0 0.0
    %1612 = vmatpush.msra.mxu0 0.0
    %1613 = vmatpush.msra.mxu0 0.0
    %1614 = vmatpush.msra.mxu0 0.0
    %1615 = vmatpush.msra.mxu0 0.0
    %1616 = vmatpush.msra.mxu0 0.0
    %1617 = vmatpush.msra.mxu0 0.0
    %1618 = vmatpush.msra.mxu0 0.0
    %1619 = vmatpush.msra.mxu0 0.0
    %1620 = vmatpush.msra.mxu0 0.0
    %1621 = vmatpush.msra.mxu0 0.0
    %1622 = vmatpush.msra.mxu0 %v1609
    %1623 = vmatpush.msra.mxu0 %v1608
    %1624 = vmatpush.msra.mxu0 %v1607
    %1625 = vmatpush.msra.mxu0 %v1606
    %1626 = vmatmul.f32.gmra.mxu0 %v218
    %v1627 = vpop.f32.mrf.mxu0
    %v1628 = vadd.f32 0.0, %v1627
    %1629 = vdwg.mxu0
    %v1630 = vadd.f32 %v1604, %v1628
    %v1631 = vxor.u32 %v1603, 2147483648
    %v1632 = vmul.f32 %v1631, 1.442695
    %v1633 = vpow.pop %v1632
    %v1634 = vadd.f32 %v1633, 1.0
    %v1635 = vrcp.pop %v1634
    %v1636 = vmul.f32 %v1634, %v1635
    %v1637 = vsub.f32 1.0, %v1636
    %v1638 = vmul.f32 %v1635, %v1637
    %v1639 = vadd.f32 %v1635, %v1638
    %vm1640 = vweird.f32 %v1634
    %vm1641 = vweird.f32 %v1635
    %vm1642 = vmor %vm1640, %vm1641
    %v1643 = vsel %vm1642, %v1635, %v1639
    %v1644 = vand.u32 2147483647, %v1634
    %vm1645 = vcmp.eq.f32.partialorder %v1644, 8.507059e+37
    %v1646 = vand.u32 %v1634, 2147483648
    %v1647 = vor.u32 1.1754944e-38, %v1646
    %v1648 = vsel %vm1645, %v1647, %v1643
    %v1649 = vmul.f32 1.0, %v1648
    %v1650 = vtanh.pop %v1603
    %v1651 = vxor.u32 %v1630, 2147483648
    %v1652 = vmul.f32 %v1651, 1.442695
    %v1653 = vpow.pop %v1652
    %v1654 = vadd.f32 %v1653, 1.0
    %v1655 = vrcp.pop %v1654
    %v1656 = vmul.f32 %v1654, %v1655
    %v1657 = vsub.f32 1.0, %v1656
    %v1658 = vmul.f32 %v1655, %v1657
    %v1659 = vadd.f32 %v1655, %v1658
    %vm1660 = vweird.f32 %v1654
    %vm1661 = vweird.f32 %v1655
    %vm1662 = vmor %vm1660, %vm1661
    %v1663 = vsel %vm1662, %v1655, %v1659
    %v1664 = vand.u32 2147483647, %v1654
    %vm1665 = vcmp.eq.f32.partialorder %v1664, 8.507059e+37
    %v1666 = vand.u32 %v1654, 2147483648
    %v1667 = vor.u32 1.1754944e-38, %v1666
    %v1668 = vsel %vm1665, %v1667, %v1663
    %v1669 = vmul.f32 1.0, %v1668
    %v1670 = vtanh.pop %v1630
    %v1671 = vmul.f32 %v1649, 0.0
    %1673 = vrot.lane.b32.xlu0 %v1650, 32
    %v1674 = vpop.permute.xlu0 %1673
    %v1676 = vmul.f32 %v1649, %v1674
    %1678 = vrot.lane.b32.xlu0 %v1676, 32
    %v1679 = vpop.permute.xlu0 %1678
    %v1681 = vadd.f32 %v1671, %v1679
    %v1682 = vtanh.pop %v1681
    %1684 = vrot.lane.b32.xlu0 %v1682, 32
    %v1685 = vpop.permute.xlu0 %1684
    %v1687 = vmul.f32 %v1649, %v1685
    %v1688 = vmul.f32 %v1669, 0.0
    %1690 = vrot.lane.b32.xlu0 %v1670, 32
    %v1691 = vpop.permute.xlu0 %1690
    %v1693 = vmul.f32 %v1669, %v1691
    %1695 = vrot.lane.b32.xlu0 %v1693, 32
    %v1696 = vpop.permute.xlu0 %1695
    %v1698 = vadd.f32 %v1688, %v1696
    %v1699 = vtanh.pop %v1698
    %1701 = vrot.lane.b32.xlu0 %v1699, 32
    %v1702 = vpop.permute.xlu0 %1701
    %v1704 = vmul.f32 %v1669, %v1702
    %1706 = vst [vmem:[#allocation1] ss:$4 sm:$0xff] %v1687
    %v1707 = vld.sshfl [vmem:[#allocation1] sm:$0xff pattern:$0x73625140]
    %1708 = vrot.lane.b32.xlu0 %v1707, 64
    %v1709 = vpop.permute.xlu0 %1708
    %1711 = vst.msk [vmem:[#allocation3] sm:$0x3] %vm349, %v1709
    %1713 = vst [vmem:[#allocation1] ss:$4 sm:$0xff] %v1704
    %v1714 = vld.sshfl [vmem:[#allocation1] sm:$0xff pattern:$0x73625140]
    %1715 = vrot.lane.b32.xlu0 %v1714, 96
    %v1716 = vpop.permute.xlu0 %1715
    %1718 = vst.msk [vmem:[%s357] sm:$0x3] %vm358, %v1716
    %v1719 = vld [vmem:[%s360] sm:$0x3]
    %v1720 = vld [vmem:[#allocation6] sm:$0xff]
    %v1721 = vld [vmem:[#allocation6 + $0x8] sm:$0xff]
    %v1722 = vld [vmem:[#allocation6 + $0x10] sm:$0xff]
    %v1723 = vld [vmem:[#allocation6 + $0x18] sm:$0xff]
    %1724 = vst [vmem:[#allocation1] ss:$4 sm:$0xff] %v1687
    %v1725 = vld.sshfl [vmem:[#allocation1] sm:$0xff pattern:$0x73625140]
    %1726 = vrot.lane.b32.xlu0 %v1725, 64
    %v1727 = vpop.permute.xlu0 %1726
    %v1728 = vsel %vm216, %v1727, 0
    %1730 = vmatpush.msra.mxu0 0.0
    %1731 = vmatpush.msra.mxu0 0.0
    %1732 = vmatpush.msra.mxu0 0.0
    %1733 = vmatpush.msra.mxu0 0.0
    %1734 = vmatpush.msra.mxu0 0.0
    %1735 = vmatpush.msra.mxu0 0.0
    %1736 = vmatpush.msra.mxu0 0.0
    %1737 = vmatpush.msra.mxu0 0.0
    %1738 = vmatpush.msra.mxu0 0.0
    %1739 = vmatpush.msra.mxu0 0.0
    %1740 = vmatpush.msra.mxu0 0.0
    %1741 = vmatpush.msra.mxu0 0.0
    %1742 = vmatpush.msra.mxu0 %v1723
    %1743 = vmatpush.msra.mxu0 %v1722
    %1744 = vmatpush.msra.mxu0 %v1721
    %1745 = vmatpush.msra.mxu0 %v1720
    %1746 = vmatmul.f32.gmra.mxu0 %v1728
    %v1747 = vpop.f32.mrf.mxu0
    %v1748 = vadd.f32 0.0, %v1747
    %1749 = vdwg.mxu0
    %v1750 = vadd.f32 %v1719, %v1748
    %v1751 = vld [vmem:[%s393 + $0x2] sm:$0x3]
    %v1752 = vld [vmem:[%s1605] sm:$0xff]
    %v1753 = vld [vmem:[%s1605 + $0x8] sm:$0xff]
    %v1754 = vld [vmem:[%s1605 + $0x10] sm:$0xff]
    %v1755 = vld [vmem:[%s1605 + $0x18] sm:$0xff]
    %1756 = vst [vmem:[#allocation1] ss:$4 sm:$0xff] %v1704
    %v1757 = vld.sshfl [vmem:[#allocation1] sm:$0xff pattern:$0x73625140]
    %1758 = vrot.lane.b32.xlu0 %v1757, 64
    %v1759 = vpop.permute.xlu0 %1758
    %v1760 = vsel %vm216, %v1759, 0
    %1762 = vmatpush.msra.mxu0 0.0
    %1763 = vmatpush.msra.mxu0 0.0
    %1764 = vmatpush.msra.mxu0 0.0
    %1765 = vmatpush.msra.mxu0 0.0
    %1766 = vmatpush.msra.mxu0 0.0
    %1767 = vmatpush.msra.mxu0 0.0
    %1768 = vmatpush.msra.mxu0 0.0
    %1769 = vmatpush.msra.mxu0 0.0
    %1770 = vmatpush.msra.mxu0 0.0
    %1771 = vmatpush.msra.mxu0 0.0
    %1772 = vmatpush.msra.mxu0 0.0
    %1773 = vmatpush.msra.mxu0 0.0
    %1774 = vmatpush.msra.mxu0 %v1755
    %1775 = vmatpush.msra.mxu0 %v1754
    %1776 = vmatpush.msra.mxu0 %v1753
    %1777 = vmatpush.msra.mxu0 %v1752
    %1778 = vmatmul.f32.gmra.mxu0 %v1760
    %v1779 = vpop.f32.mrf.mxu0
    %v1780 = vadd.f32 0.0, %v1779
    %1781 = vdwg.mxu0
    %v1782 = vadd.f32 %v1751, %v1780
    %v1783 = vxor.u32 %v1750, 2147483648
    %v1784 = vmul.f32 %v1783, 1.442695
    %v1785 = vpow.pop %v1784
    %v1786 = vadd.f32 %v1785, 1.0
    %v1787 = vrcp.pop %v1786
    %v1788 = vmul.f32 %v1786, %v1787
    %v1789 = vsub.f32 1.0, %v1788
    %v1790 = vmul.f32 %v1787, %v1789
    %v1791 = vadd.f32 %v1787, %v1790
    %vm1792 = vweird.f32 %v1786
    %vm1793 = vweird.f32 %v1787
    %vm1794 = vmor %vm1792, %vm1793
    %v1795 = vsel %vm1794, %v1787, %v1791
    %v1796 = vand.u32 2147483647, %v1786
    %vm1797 = vcmp.eq.f32.partialorder %v1796, 8.507059e+37
    %v1798 = vand.u32 %v1786, 2147483648
    %v1799 = vor.u32 1.1754944e-38, %v1798
    %v1800 = vsel %vm1797, %v1799, %v1795
    %v1801 = vmul.f32 1.0, %v1800
    %v1802 = vtanh.pop %v1750
    %v1803 = vxor.u32 %v1782, 2147483648
    %v1804 = vmul.f32 %v1803, 1.442695
    %v1805 = vpow.pop %v1804
    %v1806 = vadd.f32 %v1805, 1.0
    %v1807 = vrcp.pop %v1806
    %v1808 = vmul.f32 %v1806, %v1807
    %v1809 = vsub.f32 1.0, %v1808
    %v1810 = vmul.f32 %v1807, %v1809
    %v1811 = vadd.f32 %v1807, %v1810
    %vm1812 = vweird.f32 %v1806
    %vm1813 = vweird.f32 %v1807
    %vm1814 = vmor %vm1812, %vm1813
    %v1815 = vsel %vm1814, %v1807, %v1811
    %v1816 = vand.u32 2147483647, %v1806
    %vm1817 = vcmp.eq.f32.partialorder %v1816, 8.507059e+37
    %v1818 = vand.u32 %v1806, 2147483648
    %v1819 = vor.u32 1.1754944e-38, %v1818
    %v1820 = vsel %vm1817, %v1819, %v1815
    %v1821 = vmul.f32 1.0, %v1820
    %v1822 = vtanh.pop %v1782
    %v1823 = vmul.f32 %v1801, %v1681
    %1825 = vrot.lane.b32.xlu0 %v1802, 32
    %v1826 = vpop.permute.xlu0 %1825
    %v1828 = vmul.f32 %v1801, %v1826
    %1830 = vrot.lane.b32.xlu0 %v1828, 32
    %v1831 = vpop.permute.xlu0 %1830
    %v1833 = vadd.f32 %v1823, %v1831
    %v1834 = vtanh.pop %v1833
    %1836 = vrot.lane.b32.xlu0 %v1834, 32
    %v1837 = vpop.permute.xlu0 %1836
    %v1839 = vmul.f32 %v1801, %v1837
    %v1840 = vmul.f32 %v1821, %v1698
    %1842 = vrot.lane.b32.xlu0 %v1822, 32
    %v1843 = vpop.permute.xlu0 %1842
    %v1845 = vmul.f32 %v1821, %v1843
    %1847 = vrot.lane.b32.xlu0 %v1845, 32
    %v1848 = vpop.permute.xlu0 %1847
    %v1850 = vadd.f32 %v1840, %v1848
    %v1851 = vtanh.pop %v1850
    %1853 = vrot.lane.b32.xlu0 %v1851, 32
    %v1854 = vpop.permute.xlu0 %1853
    %v1856 = vmul.f32 %v1821, %v1854
    %1858 = vst [vmem:[#allocation1] ss:$4 sm:$0xff] %v1839
    %v1859 = vld.sshfl [vmem:[#allocation1] sm:$0xff pattern:$0x73625140]
    %1860 = vrot.lane.b32.xlu0 %v1859, 64
    %v1861 = vpop.permute.xlu0 %1860
    %1863 = vst.msk [vmem:[%s506] sm:$0x3] %vm349, %v1861
    %1865 = vst [vmem:[#allocation1] ss:$4 sm:$0xff] %v1856
    %v1866 = vld.sshfl [vmem:[#allocation1] sm:$0xff pattern:$0x73625140]
    %1867 = vrot.lane.b32.xlu0 %v1866, 96
    %v1868 = vpop.permute.xlu0 %1867
    %1870 = vst.msk [vmem:[%s514] sm:$0x3] %vm358, %v1868
    %v1871 = vld [vmem:[%s516] sm:$0x3]
    %v1872 = vld [vmem:[#allocation6] sm:$0xff]
    %v1873 = vld [vmem:[#allocation6 + $0x8] sm:$0xff]
    %v1874 = vld [vmem:[#allocation6 + $0x10] sm:$0xff]
    %v1875 = vld [vmem:[#allocation6 + $0x18] sm:$0xff]
    %1876 = vst [vmem:[#allocation1] ss:$4 sm:$0xff] %v1839
    %v1877 = vld.sshfl [vmem:[#allocation1] sm:$0xff pattern:$0x73625140]
    %1878 = vrot.lane.b32.xlu0 %v1877, 64
    %v1879 = vpop.permute.xlu0 %1878
    %v1880 = vsel %vm216, %v1879, 0
    %1882 = vmatpush.msra.mxu0 0.0
    %1883 = vmatpush.msra.mxu0 0.0
    %1884 = vmatpush.msra.mxu0 0.0
    %1885 = vmatpush.msra.mxu0 0.0
    %1886 = vmatpush.msra.mxu0 0.0
    %1887 = vmatpush.msra.mxu0 0.0
    %1888 = vmatpush.msra.mxu0 0.0
    %1889 = vmatpush.msra.mxu0 0.0
    %1890 = vmatpush.msra.mxu0 0.0
    %1891 = vmatpush.msra.mxu0 0.0
    %1892 = vmatpush.msra.mxu0 0.0
    %1893 = vmatpush.msra.mxu0 0.0
    %1894 = vmatpush.msra.mxu0 %v1875
    %1895 = vmatpush.msra.mxu0 %v1874
    %1896 = vmatpush.msra.mxu0 %v1873
    %1897 = vmatpush.msra.mxu0 %v1872
    %1898 = vmatmul.f32.gmra.mxu0 %v1880
    %v1899 = vpop.f32.mrf.mxu0
    %v1900 = vadd.f32 0.0, %v1899
    %1901 = vdwg.mxu0
    %v1902 = vadd.f32 %v1871, %v1900
    %v1903 = vld [vmem:[%s549 + $0x2] sm:$0x3]
    %v1904 = vld [vmem:[%s1605] sm:$0xff]
    %v1905 = vld [vmem:[%s1605 + $0x8] sm:$0xff]
    %v1906 = vld [vmem:[%s1605 + $0x10] sm:$0xff]
    %v1907 = vld [vmem:[%s1605 + $0x18] sm:$0xff]
    %1908 = vst [vmem:[#allocation1] ss:$4 sm:$0xff] %v1856
    %v1909 = vld.sshfl [vmem:[#allocation1] sm:$0xff pattern:$0x73625140]
    %1910 = vrot.lane.b32.xlu0 %v1909, 64
    %v1911 = vpop.permute.xlu0 %1910
    %v1912 = vsel %vm216, %v1911, 0
    %1914 = vmatpush.msra.mxu0 0.0
    %1915 = vmatpush.msra.mxu0 0.0
    %1916 = vmatpush.msra.mxu0 0.0
    %1917 = vmatpush.msra.mxu0 0.0
    %1918 = vmatpush.msra.mxu0 0.0
    %1919 = vmatpush.msra.mxu0 0.0
    %1920 = vmatpush.msra.mxu0 0.0
    %1921 = vmatpush.msra.mxu0 0.0
    %1922 = vmatpush.msra.mxu0 0.0
    %1923 = vmatpush.msra.mxu0 0.0
    %1924 = vmatpush.msra.mxu0 0.0
    %1925 = vmatpush.msra.mxu0 0.0
    %1926 = vmatpush.msra.mxu0 %v1907
    %1927 = vmatpush.msra.mxu0 %v1906
    %1928 = vmatpush.msra.mxu0 %v1905
    %1929 = vmatpush.msra.mxu0 %v1904
    %1930 = vmatmul.f32.gmra.mxu0 %v1912
    %v1931 = vpop.f32.mrf.mxu0
    %v1932 = vadd.f32 0.0, %v1931
    %1933 = vdwg.mxu0
    %v1934 = vadd.f32 %v1903, %v1932
    %v1935 = vxor.u32 %v1902, 2147483648
    %v1936 = vmul.f32 %v1935, 1.442695
    %v1937 = vpow.pop %v1936
    %v1938 = vadd.f32 %v1937, 1.0
    %v1939 = vrcp.pop %v1938
    %v1940 = vmul.f32 %v1938, %v1939
    %v1941 = vsub.f32 1.0, %v1940
    %v1942 = vmul.f32 %v1939, %v1941
    %v1943 = vadd.f32 %v1939, %v1942
    %vm1944 = vweird.f32 %v1938
    %vm1945 = vweird.f32 %v1939
    %vm1946 = vmor %vm1944, %vm1945
    %v1947 = vsel %vm1946, %v1939, %v1943
    %v1948 = vand.u32 2147483647, %v1938
    %vm1949 = vcmp.eq.f32.partialorder %v1948, 8.507059e+37
    %v1950 = vand.u32 %v1938, 2147483648
    %v1951 = vor.u32 1.1754944e-38, %v1950
    %v1952 = vsel %vm1949, %v1951, %v1947
    %v1953 = vmul.f32 1.0, %v1952
    %v1954 = vtanh.pop %v1902
    %v1955 = vxor.u32 %v1934, 2147483648
    %v1956 = vmul.f32 %v1955, 1.442695
    %v1957 = vpow.pop %v1956
    %v1958 = vadd.f32 %v1957, 1.0
    %v1959 = vrcp.pop %v1958
    %v1960 = vmul.f32 %v1958, %v1959
    %v1961 = vsub.f32 1.0, %v1960
    %v1962 = vmul.f32 %v1959, %v1961
    %v1963 = vadd.f32 %v1959, %v1962
    %vm1964 = vweird.f32 %v1958
    %vm1965 = vweird.f32 %v1959
    %vm1966 = vmor %vm1964, %vm1965
    %v1967 = vsel %vm1966, %v1959, %v1963
    %v1968 = vand.u32 2147483647, %v1958
    %vm1969 = vcmp.eq.f32.partialorder %v1968, 8.507059e+37
    %v1970 = vand.u32 %v1958, 2147483648
    %v1971 = vor.u32 1.1754944e-38, %v1970
    %v1972 = vsel %vm1969, %v1971, %v1967
    %v1973 = vmul.f32 1.0, %v1972
    %v1974 = vtanh.pop %v1934
    %v1975 = vmul.f32 %v1953, %v1833
    %1977 = vrot.lane.b32.xlu0 %v1954, 32
    %v1978 = vpop.permute.xlu0 %1977
    %v1980 = vmul.f32 %v1953, %v1978
    %1982 = vrot.lane.b32.xlu0 %v1980, 32
    %v1983 = vpop.permute.xlu0 %1982
    %v1985 = vadd.f32 %v1975, %v1983
    %v1986 = vtanh.pop %v1985
    %1988 = vrot.lane.b32.xlu0 %v1986, 32
    %v1989 = vpop.permute.xlu0 %1988
    %v1991 = vmul.f32 %v1953, %v1989
    %v1992 = vmul.f32 %v1973, %v1850
    %1994 = vrot.lane.b32.xlu0 %v1974, 32
    %v1995 = vpop.permute.xlu0 %1994
    %v1997 = vmul.f32 %v1973, %v1995
    %1999 = vrot.lane.b32.xlu0 %v1997, 32
    %v2000 = vpop.permute.xlu0 %1999
    %v2002 = vadd.f32 %v1992, %v2000
    %v2003 = vtanh.pop %v2002
    %2005 = vrot.lane.b32.xlu0 %v2003, 32
    %v2006 = vpop.permute.xlu0 %2005
    %v2008 = vmul.f32 %v1973, %v2006
    %2010 = vst [vmem:[#allocation1] ss:$4 sm:$0xff] %v1991
    %v2011 = vld.sshfl [vmem:[#allocation1] sm:$0xff pattern:$0x73625140]
    %2012 = vrot.lane.b32.xlu0 %v2011, 64
    %v2013 = vpop.permute.xlu0 %2012
    %2015 = vst.msk [vmem:[%s662] sm:$0x3] %vm349, %v2013
    %2017 = vst [vmem:[#allocation1] ss:$4 sm:$0xff] %v2008
    %v2018 = vld.sshfl [vmem:[#allocation1] sm:$0xff pattern:$0x73625140]
    %2019 = vrot.lane.b32.xlu0 %v2018, 96
    %v2020 = vpop.permute.xlu0 %2019
    %2022 = vst.msk [vmem:[%s670] sm:$0x3] %vm358, %v2020
    %v2023 = vld [vmem:[%s672] sm:$0x3]
    %v2024 = vld [vmem:[#allocation6] sm:$0xff]
    %v2025 = vld [vmem:[#allocation6 + $0x8] sm:$0xff]
    %v2026 = vld [vmem:[#allocation6 + $0x10] sm:$0xff]
    %v2027 = vld [vmem:[#allocation6 + $0x18] sm:$0xff]
    %2028 = vst [vmem:[#allocation1] ss:$4 sm:$0xff] %v1991
    %v2029 = vld.sshfl [vmem:[#allocation1] sm:$0xff pattern:$0x73625140]
    %2030 = vrot.lane.b32.xlu0 %v2029, 64
    %v2031 = vpop.permute.xlu0 %2030
    %v2032 = vsel %vm216, %v2031, 0
    %2034 = vmatpush.msra.mxu0 0.0
    %2035 = vmatpush.msra.mxu0 0.0
    %2036 = vmatpush.msra.mxu0 0.0
    %2037 = vmatpush.msra.mxu0 0.0
    %2038 = vmatpush.msra.mxu0 0.0
    %2039 = vmatpush.msra.mxu0 0.0
    %2040 = vmatpush.msra.mxu0 0.0
    %2041 = vmatpush.msra.mxu0 0.0
    %2042 = vmatpush.msra.mxu0 0.0
    %2043 = vmatpush.msra.mxu0 0.0
    %2044 = vmatpush.msra.mxu0 0.0
    %2045 = vmatpush.msra.mxu0 0.0
    %2046 = vmatpush.msra.mxu0 %v2027
    %2047 = vmatpush.msra.mxu0 %v2026
    %2048 = vmatpush.msra.mxu0 %v2025
    %2049 = vmatpush.msra.mxu0 %v2024
    %2050 = vmatmul.f32.gmra.mxu0 %v2032
    %v2051 = vpop.f32.mrf.mxu0
    %v2052 = vadd.f32 0.0, %v2051
    %2053 = vdwg.mxu0
    %v2054 = vadd.f32 %v2023, %v2052
    %v2055 = vld [vmem:[%s705 + $0x2] sm:$0x3]
    %v2056 = vld [vmem:[%s1605] sm:$0xff]
    %v2057 = vld [vmem:[%s1605 + $0x8] sm:$0xff]
    %v2058 = vld [vmem:[%s1605 + $0x10] sm:$0xff]
    %v2059 = vld [vmem:[%s1605 + $0x18] sm:$0xff]
    %2060 = vst [vmem:[#allocation1] ss:$4 sm:$0xff] %v2008
    %v2061 = vld.sshfl [vmem:[#allocation1] sm:$0xff pattern:$0x73625140]
    %2062 = vrot.lane.b32.xlu0 %v2061, 64
    %v2063 = vpop.permute.xlu0 %2062
    %v2064 = vsel %vm216, %v2063, 0
    %2066 = vmatpush.msra.mxu0 0.0
    %2067 = vmatpush.msra.mxu0 0.0
    %2068 = vmatpush.msra.mxu0 0.0
    %2069 = vmatpush.msra.mxu0 0.0
    %2070 = vmatpush.msra.mxu0 0.0
    %2071 = vmatpush.msra.mxu0 0.0
    %2072 = vmatpush.msra.mxu0 0.0
    %2073 = vmatpush.msra.mxu0 0.0
    %2074 = vmatpush.msra.mxu0 0.0
    %2075 = vmatpush.msra.mxu0 0.0
    %2076 = vmatpush.msra.mxu0 0.0
    %2077 = vmatpush.msra.mxu0 0.0
    %2078 = vmatpush.msra.mxu0 %v2059
    %2079 = vmatpush.msra.mxu0 %v2058
    %2080 = vmatpush.msra.mxu0 %v2057
    %2081 = vmatpush.msra.mxu0 %v2056
    %2082 = vmatmul.f32.gmra.mxu0 %v2064
    %v2083 = vpop.f32.mrf.mxu0
    %v2084 = vadd.f32 0.0, %v2083
    %2085 = vdwg.mxu0
    %v2086 = vadd.f32 %v2055, %v2084
    %v2087 = vxor.u32 %v2054, 2147483648
    %v2088 = vmul.f32 %v2087, 1.442695
    %v2089 = vpow.pop %v2088
    %v2090 = vadd.f32 %v2089, 1.0
    %v2091 = vrcp.pop %v2090
    %v2092 = vmul.f32 %v2090, %v2091
    %v2093 = vsub.f32 1.0, %v2092
    %v2094 = vmul.f32 %v2091, %v2093
    %v2095 = vadd.f32 %v2091, %v2094
    %vm2096 = vweird.f32 %v2090
    %vm2097 = vweird.f32 %v2091
    %vm2098 = vmor %vm2096, %vm2097
    %v2099 = vsel %vm2098, %v2091, %v2095
    %v2100 = vand.u32 2147483647, %v2090
    %vm2101 = vcmp.eq.f32.partialorder %v2100, 8.507059e+37
    %v2102 = vand.u32 %v2090, 2147483648
    %v2103 = vor.u32 1.1754944e-38, %v2102
    %v2104 = vsel %vm2101, %v2103, %v2099
    %v2105 = vmul.f32 1.0, %v2104
    %v2106 = vtanh.pop %v2054
    %v2107 = vxor.u32 %v2086, 2147483648
    %v2108 = vmul.f32 %v2107, 1.442695
    %v2109 = vpow.pop %v2108
    %v2110 = vadd.f32 %v2109, 1.0
    %v2111 = vrcp.pop %v2110
    %v2112 = vmul.f32 %v2110, %v2111
    %v2113 = vsub.f32 1.0, %v2112
    %v2114 = vmul.f32 %v2111, %v2113
    %v2115 = vadd.f32 %v2111, %v2114
    %vm2116 = vweird.f32 %v2110
    %vm2117 = vweird.f32 %v2111
    %vm2118 = vmor %vm2116, %vm2117
    %v2119 = vsel %vm2118, %v2111, %v2115
    %v2120 = vand.u32 2147483647, %v2110
    %vm2121 = vcmp.eq.f32.partialorder %v2120, 8.507059e+37
    %v2122 = vand.u32 %v2110, 2147483648
    %v2123 = vor.u32 1.1754944e-38, %v2122
    %v2124 = vsel %vm2121, %v2123, %v2119
    %v2125 = vmul.f32 1.0, %v2124
    %v2126 = vtanh.pop %v2086
    %v2127 = vmul.f32 %v2105, %v1985
    %2129 = vrot.lane.b32.xlu0 %v2106, 32
    %v2130 = vpop.permute.xlu0 %2129
    %v2132 = vmul.f32 %v2105, %v2130
    %2134 = vrot.lane.b32.xlu0 %v2132, 32
    %v2135 = vpop.permute.xlu0 %2134
    %v2137 = vadd.f32 %v2127, %v2135
    %v2138 = vtanh.pop %v2137
    %2140 = vrot.lane.b32.xlu0 %v2138, 32
    %v2141 = vpop.permute.xlu0 %2140
    %v2143 = vmul.f32 %v2105, %v2141
    %v2144 = vmul.f32 %v2125, %v2002
    %2146 = vrot.lane.b32.xlu0 %v2126, 32
    %v2147 = vpop.permute.xlu0 %2146
    %v2149 = vmul.f32 %v2125, %v2147
    %2151 = vrot.lane.b32.xlu0 %v2149, 32
    %v2152 = vpop.permute.xlu0 %2151
    %v2154 = vadd.f32 %v2144, %v2152
    %v2155 = vtanh.pop %v2154
    %2157 = vrot.lane.b32.xlu0 %v2155, 32
    %v2158 = vpop.permute.xlu0 %2157
    %v2160 = vmul.f32 %v2125, %v2158
    %2162 = vst [vmem:[#allocation1] ss:$4 sm:$0xff] %v2143
    %v2163 = vld.sshfl [vmem:[#allocation1] sm:$0xff pattern:$0x73625140]
    %2164 = vrot.lane.b32.xlu0 %v2163, 64
    %v2165 = vpop.permute.xlu0 %2164
    %2167 = vst.msk [vmem:[%s818] sm:$0x3] %vm349, %v2165
    %2169 = vst [vmem:[#allocation1] ss:$4 sm:$0xff] %v2160
    %v2170 = vld.sshfl [vmem:[#allocation1] sm:$0xff pattern:$0x73625140]
    %2171 = vrot.lane.b32.xlu0 %v2170, 96
    %v2172 = vpop.permute.xlu0 %2171
    %2174 = vst.msk [vmem:[%s826] sm:$0x3] %vm358, %v2172
    %v2175 = vld [vmem:[%s705] sm:$0x3]
    %v2176 = vld [vmem:[#allocation6] sm:$0xff]
    %v2177 = vld [vmem:[#allocation6 + $0x8] sm:$0xff]
    %v2178 = vld [vmem:[#allocation6 + $0x10] sm:$0xff]
    %v2179 = vld [vmem:[#allocation6 + $0x18] sm:$0xff]
    %2180 = vst [vmem:[#allocation1] ss:$4 sm:$0xff] %v2143
    %v2181 = vld.sshfl [vmem:[#allocation1] sm:$0xff pattern:$0x73625140]
    %2182 = vrot.lane.b32.xlu0 %v2181, 64
    %v2183 = vpop.permute.xlu0 %2182
    %v2184 = vsel %vm216, %v2183, 0
    %2186 = vmatpush.msra.mxu0 0.0
    %2187 = vmatpush.msra.mxu0 0.0
    %2188 = vmatpush.msra.mxu0 0.0
    %2189 = vmatpush.msra.mxu0 0.0
    %2190 = vmatpush.msra.mxu0 0.0
    %2191 = vmatpush.msra.mxu0 0.0
    %2192 = vmatpush.msra.mxu0 0.0
    %2193 = vmatpush.msra.mxu0 0.0
    %2194 = vmatpush.msra.mxu0 0.0
    %2195 = vmatpush.msra.mxu0 0.0
    %2196 = vmatpush.msra.mxu0 0.0
    %2197 = vmatpush.msra.mxu0 0.0
    %2198 = vmatpush.msra.mxu0 %v2179
    %2199 = vmatpush.msra.mxu0 %v2178
    %2200 = vmatpush.msra.mxu0 %v2177
    %2201 = vmatpush.msra.mxu0 %v2176
    %2202 = vmatmul.f32.gmra.mxu0 %v2184
    %v2203 = vpop.f32.mrf.mxu0
    %v2204 = vadd.f32 0.0, %v2203
    %2205 = vdwg.mxu0
    %v2206 = vadd.f32 %v2175, %v2204
    %v2207 = vld [vmem:[%s672 + $0x2] sm:$0x3]
    %v2208 = vld [vmem:[%s1605] sm:$0xff]
    %v2209 = vld [vmem:[%s1605 + $0x8] sm:$0xff]
    %v2210 = vld [vmem:[%s1605 + $0x10] sm:$0xff]
    %v2211 = vld [vmem:[%s1605 + $0x18] sm:$0xff]
    %2212 = vst [vmem:[#allocation1] ss:$4 sm:$0xff] %v2160
    %v2213 = vld.sshfl [vmem:[#allocation1] sm:$0xff pattern:$0x73625140]
    %2214 = vrot.lane.b32.xlu0 %v2213, 64
    %v2215 = vpop.permute.xlu0 %2214
    %v2216 = vsel %vm216, %v2215, 0
    %2218 = vmatpush.msra.mxu0 0.0
    %2219 = vmatpush.msra.mxu0 0.0
    %2220 = vmatpush.msra.mxu0 0.0
    %2221 = vmatpush.msra.mxu0 0.0
    %2222 = vmatpush.msra.mxu0 0.0
    %2223 = vmatpush.msra.mxu0 0.0
    %2224 = vmatpush.msra.mxu0 0.0
    %2225 = vmatpush.msra.mxu0 0.0
    %2226 = vmatpush.msra.mxu0 0.0
    %2227 = vmatpush.msra.mxu0 0.0
    %2228 = vmatpush.msra.mxu0 0.0
    %2229 = vmatpush.msra.mxu0 0.0
    %2230 = vmatpush.msra.mxu0 %v2211
    %2231 = vmatpush.msra.mxu0 %v2210
    %2232 = vmatpush.msra.mxu0 %v2209
    %2233 = vmatpush.msra.mxu0 %v2208
    %2234 = vmatmul.f32.gmra.mxu0 %v2216
    %v2235 = vpop.f32.mrf.mxu0
    %v2236 = vadd.f32 0.0, %v2235
    %2237 = vdwg.mxu0
    %v2238 = vadd.f32 %v2207, %v2236
    %v2239 = vxor.u32 %v2206, 2147483648
    %v2240 = vmul.f32 %v2239, 1.442695
    %v2241 = vpow.pop %v2240
    %v2242 = vadd.f32 %v2241, 1.0
    %v2243 = vrcp.pop %v2242
    %v2244 = vmul.f32 %v2242, %v2243
    %v2245 = vsub.f32 1.0, %v2244
    %v2246 = vmul.f32 %v2243, %v2245
    %v2247 = vadd.f32 %v2243, %v2246
    %vm2248 = vweird.f32 %v2242
    %vm2249 = vweird.f32 %v2243
    %vm2250 = vmor %vm2248, %vm2249
    %v2251 = vsel %vm2250, %v2243, %v2247
    %v2252 = vand.u32 2147483647, %v2242
    %vm2253 = vcmp.eq.f32.partialorder %v2252, 8.507059e+37
    %v2254 = vand.u32 %v2242, 2147483648
    %v2255 = vor.u32 1.1754944e-38, %v2254
    %v2256 = vsel %vm2253, %v2255, %v2251
    %v2257 = vmul.f32 1.0, %v2256
    %v2258 = vtanh.pop %v2206
    %v2259 = vxor.u32 %v2238, 2147483648
    %v2260 = vmul.f32 %v2259, 1.442695
    %v2261 = vpow.pop %v2260
    %v2262 = vadd.f32 %v2261, 1.0
    %v2263 = vrcp.pop %v2262
    %v2264 = vmul.f32 %v2262, %v2263
    %v2265 = vsub.f32 1.0, %v2264
    %v2266 = vmul.f32 %v2263, %v2265
    %v2267 = vadd.f32 %v2263, %v2266
    %vm2268 = vweird.f32 %v2262
    %vm2269 = vweird.f32 %v2263
    %vm2270 = vmor %vm2268, %vm2269
    %v2271 = vsel %vm2270, %v2263, %v2267
    %v2272 = vand.u32 2147483647, %v2262
    %vm2273 = vcmp.eq.f32.partialorder %v2272, 8.507059e+37
    %v2274 = vand.u32 %v2262, 2147483648
    %v2275 = vor.u32 1.1754944e-38, %v2274
    %v2276 = vsel %vm2273, %v2275, %v2271
    %v2277 = vmul.f32 1.0, %v2276
    %v2278 = vtanh.pop %v2238
    %v2279 = vmul.f32 %v2257, %v2137
    %2281 = vrot.lane.b32.xlu0 %v2258, 32
    %v2282 = vpop.permute.xlu0 %2281
    %v2284 = vmul.f32 %v2257, %v2282
    %2286 = vrot.lane.b32.xlu0 %v2284, 32
    %v2287 = vpop.permute.xlu0 %2286
    %v2289 = vadd.f32 %v2279, %v2287
    %v2290 = vtanh.pop %v2289
    %2292 = vrot.lane.b32.xlu0 %v2290, 32
    %v2293 = vpop.permute.xlu0 %2292
    %v2295 = vmul.f32 %v2257, %v2293
    %v2296 = vmul.f32 %v2277, %v2154
    %2298 = vrot.lane.b32.xlu0 %v2278, 32
    %v2299 = vpop.permute.xlu0 %2298
    %v2301 = vmul.f32 %v2277, %v2299
    %2303 = vrot.lane.b32.xlu0 %v2301, 32
    %v2304 = vpop.permute.xlu0 %2303
    %v2306 = vadd.f32 %v2296, %v2304
    %v2307 = vtanh.pop %v2306
    %2309 = vrot.lane.b32.xlu0 %v2307, 32
    %v2310 = vpop.permute.xlu0 %2309
    %v2312 = vmul.f32 %v2277, %v2310
    %2314 = vst [vmem:[#allocation1] ss:$4 sm:$0xff] %v2295
    %v2315 = vld.sshfl [vmem:[#allocation1] sm:$0xff pattern:$0x73625140]
    %2316 = vrot.lane.b32.xlu0 %v2315, 64
    %v2317 = vpop.permute.xlu0 %2316
    %2319 = vst.msk [vmem:[%s826] sm:$0x3] %vm349, %v2317
    %2321 = vst [vmem:[#allocation1] ss:$4 sm:$0xff] %v2312
    %v2322 = vld.sshfl [vmem:[#allocation1] sm:$0xff pattern:$0x73625140]
    %2323 = vrot.lane.b32.xlu0 %v2322, 96
    %v2324 = vpop.permute.xlu0 %2323
    %2326 = vst.msk [vmem:[%s818] sm:$0x3] %vm358, %v2324
    %v2327 = vld [vmem:[%s549] sm:$0x3]
    %v2328 = vld [vmem:[#allocation6] sm:$0xff]
    %v2329 = vld [vmem:[#allocation6 + $0x8] sm:$0xff]
    %v2330 = vld [vmem:[#allocation6 + $0x10] sm:$0xff]
    %v2331 = vld [vmem:[#allocation6 + $0x18] sm:$0xff]
    %2332 = vst [vmem:[#allocation1] ss:$4 sm:$0xff] %v2295
    %v2333 = vld.sshfl [vmem:[#allocation1] sm:$0xff pattern:$0x73625140]
    %2334 = vrot.lane.b32.xlu0 %v2333, 64
    %v2335 = vpop.permute.xlu0 %2334
    %v2336 = vsel %vm216, %v2335, 0
    %2338 = vmatpush.msra.mxu0 0.0
    %2339 = vmatpush.msra.mxu0 0.0
    %2340 = vmatpush.msra.mxu0 0.0
    %2341 = vmatpush.msra.mxu0 0.0
    %2342 = vmatpush.msra.mxu0 0.0
    %2343 = vmatpush.msra.mxu0 0.0
    %2344 = vmatpush.msra.mxu0 0.0
    %2345 = vmatpush.msra.mxu0 0.0
    %2346 = vmatpush.msra.mxu0 0.0
    %2347 = vmatpush.msra.mxu0 0.0
    %2348 = vmatpush.msra.mxu0 0.0
    %2349 = vmatpush.msra.mxu0 0.0
    %2350 = vmatpush.msra.mxu0 %v2331
    %2351 = vmatpush.msra.mxu0 %v2330
    %2352 = vmatpush.msra.mxu0 %v2329
    %2353 = vmatpush.msra.mxu0 %v2328
    %2354 = vmatmul.f32.gmra.mxu0 %v2336
    %v2355 = vpop.f32.mrf.mxu0
    %v2356 = vadd.f32 0.0, %v2355
    %2357 = vdwg.mxu0
    %v2358 = vadd.f32 %v2327, %v2356
    %v2359 = vld [vmem:[%s516 + $0x2] sm:$0x3]
    %v2360 = vld [vmem:[%s1605] sm:$0xff]
    %v2361 = vld [vmem:[%s1605 + $0x8] sm:$0xff]
    %v2362 = vld [vmem:[%s1605 + $0x10] sm:$0xff]
    %v2363 = vld [vmem:[%s1605 + $0x18] sm:$0xff]
    %2364 = vst [vmem:[#allocation1] ss:$4 sm:$0xff] %v2312
    %v2365 = vld.sshfl [vmem:[#allocation1] sm:$0xff pattern:$0x73625140]
    %2366 = vrot.lane.b32.xlu0 %v2365, 64
    %v2367 = vpop.permute.xlu0 %2366
    %v2368 = vsel %vm216, %v2367, 0
    %2370 = vmatpush.msra.mxu0 0.0
    %2371 = vmatpush.msra.mxu0 0.0
    %2372 = vmatpush.msra.mxu0 0.0
    %2373 = vmatpush.msra.mxu0 0.0
    %2374 = vmatpush.msra.mxu0 0.0
    %2375 = vmatpush.msra.mxu0 0.0
    %2376 = vmatpush.msra.mxu0 0.0
    %2377 = vmatpush.msra.mxu0 0.0
    %2378 = vmatpush.msra.mxu0 0.0
    %2379 = vmatpush.msra.mxu0 0.0
    %2380 = vmatpush.msra.mxu0 0.0
    %2381 = vmatpush.msra.mxu0 0.0
    %2382 = vmatpush.msra.mxu0 %v2363
    %2383 = vmatpush.msra.mxu0 %v2362
    %2384 = vmatpush.msra.mxu0 %v2361
    %2385 = vmatpush.msra.mxu0 %v2360
    %2386 = vmatmul.f32.gmra.mxu0 %v2368
    %v2387 = vpop.f32.mrf.mxu0
    %v2388 = vadd.f32 0.0, %v2387
    %2389 = vdwg.mxu0
    %v2390 = vadd.f32 %v2359, %v2388
    %v2391 = vxor.u32 %v2358, 2147483648
    %v2392 = vmul.f32 %v2391, 1.442695
    %v2393 = vpow.pop %v2392
    %v2394 = vadd.f32 %v2393, 1.0
    %v2395 = vrcp.pop %v2394
    %v2396 = vmul.f32 %v2394, %v2395
    %v2397 = vsub.f32 1.0, %v2396
    %v2398 = vmul.f32 %v2395, %v2397
    %v2399 = vadd.f32 %v2395, %v2398
    %vm2400 = vweird.f32 %v2394
    %vm2401 = vweird.f32 %v2395
    %vm2402 = vmor %vm2400, %vm2401
    %v2403 = vsel %vm2402, %v2395, %v2399
    %v2404 = vand.u32 2147483647, %v2394
    %vm2405 = vcmp.eq.f32.partialorder %v2404, 8.507059e+37
    %v2406 = vand.u32 %v2394, 2147483648
    %v2407 = vor.u32 1.1754944e-38, %v2406
    %v2408 = vsel %vm2405, %v2407, %v2403
    %v2409 = vmul.f32 1.0, %v2408
    %v2410 = vtanh.pop %v2358
    %v2411 = vxor.u32 %v2390, 2147483648
    %v2412 = vmul.f32 %v2411, 1.442695
    %v2413 = vpow.pop %v2412
    %v2414 = vadd.f32 %v2413, 1.0
    %v2415 = vrcp.pop %v2414
    %v2416 = vmul.f32 %v2414, %v2415
    %v2417 = vsub.f32 1.0, %v2416
    %v2418 = vmul.f32 %v2415, %v2417
    %v2419 = vadd.f32 %v2415, %v2418
    %vm2420 = vweird.f32 %v2414
    %vm2421 = vweird.f32 %v2415
    %vm2422 = vmor %vm2420, %vm2421
    %v2423 = vsel %vm2422, %v2415, %v2419
    %v2424 = vand.u32 2147483647, %v2414
    %vm2425 = vcmp.eq.f32.partialorder %v2424, 8.507059e+37
    %v2426 = vand.u32 %v2414, 2147483648
    %v2427 = vor.u32 1.1754944e-38, %v2426
    %v2428 = vsel %vm2425, %v2427, %v2423
    %v2429 = vmul.f32 1.0, %v2428
    %v2430 = vtanh.pop %v2390
    %v2431 = vmul.f32 %v2409, %v2289
    %2433 = vrot.lane.b32.xlu0 %v2410, 32
    %v2434 = vpop.permute.xlu0 %2433
    %v2436 = vmul.f32 %v2409, %v2434
    %2438 = vrot.lane.b32.xlu0 %v2436, 32
    %v2439 = vpop.permute.xlu0 %2438
    %v2441 = vadd.f32 %v2431, %v2439
    %v2442 = vtanh.pop %v2441
    %2444 = vrot.lane.b32.xlu0 %v2442, 32
    %v2445 = vpop.permute.xlu0 %2444
    %v2447 = vmul.f32 %v2409, %v2445
    %v2448 = vmul.f32 %v2429, %v2306
    %2450 = vrot.lane.b32.xlu0 %v2430, 32
    %v2451 = vpop.permute.xlu0 %2450
    %v2453 = vmul.f32 %v2429, %v2451
    %2455 = vrot.lane.b32.xlu0 %v2453, 32
    %v2456 = vpop.permute.xlu0 %2455
    %v2458 = vadd.f32 %v2448, %v2456
    %v2459 = vtanh.pop %v2458
    %2461 = vrot.lane.b32.xlu0 %v2459, 32
    %v2462 = vpop.permute.xlu0 %2461
    %v2464 = vmul.f32 %v2429, %v2462
    %2466 = vst [vmem:[#allocation1] ss:$4 sm:$0xff] %v2447
    %v2467 = vld.sshfl [vmem:[#allocation1] sm:$0xff pattern:$0x73625140]
    %2468 = vrot.lane.b32.xlu0 %v2467, 64
    %v2469 = vpop.permute.xlu0 %2468
    %2471 = vst.msk [vmem:[%s670] sm:$0x3] %vm349, %v2469
    %2473 = vst [vmem:[#allocation1] ss:$4 sm:$0xff] %v2464
    %v2474 = vld.sshfl [vmem:[#allocation1] sm:$0xff pattern:$0x73625140]
    %2475 = vrot.lane.b32.xlu0 %v2474, 96
    %v2476 = vpop.permute.xlu0 %2475
    %2478 = vst.msk [vmem:[%s662] sm:$0x3] %vm358, %v2476
    %v2479 = vld [vmem:[%s393] sm:$0x3]
    %v2480 = vld [vmem:[#allocation6] sm:$0xff]
    %v2481 = vld [vmem:[#allocation6 + $0x8] sm:$0xff]
    %v2482 = vld [vmem:[#allocation6 + $0x10] sm:$0xff]
    %v2483 = vld [vmem:[#allocation6 + $0x18] sm:$0xff]
    %2484 = vst [vmem:[#allocation1] ss:$4 sm:$0xff] %v2447
    %v2485 = vld.sshfl [vmem:[#allocation1] sm:$0xff pattern:$0x73625140]
    %2486 = vrot.lane.b32.xlu0 %v2485, 64
    %v2487 = vpop.permute.xlu0 %2486
    %v2488 = vsel %vm216, %v2487, 0
    %2490 = vmatpush.msra.mxu0 0.0
    %2491 = vmatpush.msra.mxu0 0.0
    %2492 = vmatpush.msra.mxu0 0.0
    %2493 = vmatpush.msra.mxu0 0.0
    %2494 = vmatpush.msra.mxu0 0.0
    %2495 = vmatpush.msra.mxu0 0.0
    %2496 = vmatpush.msra.mxu0 0.0
    %2497 = vmatpush.msra.mxu0 0.0
    %2498 = vmatpush.msra.mxu0 0.0
    %2499 = vmatpush.msra.mxu0 0.0
    %2500 = vmatpush.msra.mxu0 0.0
    %2501 = vmatpush.msra.mxu0 0.0
    %2502 = vmatpush.msra.mxu0 %v2483
    %2503 = vmatpush.msra.mxu0 %v2482
    %2504 = vmatpush.msra.mxu0 %v2481
    %2505 = vmatpush.msra.mxu0 %v2480
    %2506 = vmatmul.f32.gmra.mxu0 %v2488
    %v2507 = vpop.f32.mrf.mxu0
    %v2508 = vadd.f32 0.0, %v2507
    %2509 = vdwg.mxu0
    %v2510 = vadd.f32 %v2479, %v2508
    %v2511 = vld [vmem:[%s360 + $0x2] sm:$0x3]
    %v2512 = vld [vmem:[%s1605] sm:$0xff]
    %v2513 = vld [vmem:[%s1605 + $0x8] sm:$0xff]
    %v2514 = vld [vmem:[%s1605 + $0x10] sm:$0xff]
    %v2515 = vld [vmem:[%s1605 + $0x18] sm:$0xff]
    %2516 = vst [vmem:[#allocation1] ss:$4 sm:$0xff] %v2464
    %v2517 = vld.sshfl [vmem:[#allocation1] sm:$0xff pattern:$0x73625140]
    %2518 = vrot.lane.b32.xlu0 %v2517, 64
    %v2519 = vpop.permute.xlu0 %2518
    %v2520 = vsel %vm216, %v2519, 0
    %2522 = vmatpush.msra.mxu0 0.0
    %2523 = vmatpush.msra.mxu0 0.0
    %2524 = vmatpush.msra.mxu0 0.0
    %2525 = vmatpush.msra.mxu0 0.0
    %2526 = vmatpush.msra.mxu0 0.0
    %2527 = vmatpush.msra.mxu0 0.0
    %2528 = vmatpush.msra.mxu0 0.0
    %2529 = vmatpush.msra.mxu0 0.0
    %2530 = vmatpush.msra.mxu0 0.0
    %2531 = vmatpush.msra.mxu0 0.0
    %2532 = vmatpush.msra.mxu0 0.0
    %2533 = vmatpush.msra.mxu0 0.0
    %2534 = vmatpush.msra.mxu0 %v2515
    %2535 = vmatpush.msra.mxu0 %v2514
    %2536 = vmatpush.msra.mxu0 %v2513
    %2537 = vmatpush.msra.mxu0 %v2512
    %2538 = vmatmul.f32.gmra.mxu0 %v2520
    %v2539 = vpop.f32.mrf.mxu0
    %v2540 = vadd.f32 0.0, %v2539
    %2541 = vdwg.mxu0
    %v2542 = vadd.f32 %v2511, %v2540
    %v2543 = vxor.u32 %v2510, 2147483648
    %v2544 = vmul.f32 %v2543, 1.442695
    %v2545 = vpow.pop %v2544
    %v2546 = vadd.f32 %v2545, 1.0
    %v2547 = vrcp.pop %v2546
    %v2548 = vmul.f32 %v2546, %v2547
    %v2549 = vsub.f32 1.0, %v2548
    %v2550 = vmul.f32 %v2547, %v2549
    %v2551 = vadd.f32 %v2547, %v2550
    %vm2552 = vweird.f32 %v2546
    %vm2553 = vweird.f32 %v2547
    %vm2554 = vmor %vm2552, %vm2553
    %v2555 = vsel %vm2554, %v2547, %v2551
    %v2556 = vand.u32 2147483647, %v2546
    %vm2557 = vcmp.eq.f32.partialorder %v2556, 8.507059e+37
    %v2558 = vand.u32 %v2546, 2147483648
    %v2559 = vor.u32 1.1754944e-38, %v2558
    %v2560 = vsel %vm2557, %v2559, %v2555
    %v2561 = vmul.f32 1.0, %v2560
    %v2562 = vtanh.pop %v2510
    %v2563 = vxor.u32 %v2542, 2147483648
    %v2564 = vmul.f32 %v2563, 1.442695
    %v2565 = vpow.pop %v2564
    %v2566 = vadd.f32 %v2565, 1.0
    %v2567 = vrcp.pop %v2566
    %v2568 = vmul.f32 %v2566, %v2567
    %v2569 = vsub.f32 1.0, %v2568
    %v2570 = vmul.f32 %v2567, %v2569
    %v2571 = vadd.f32 %v2567, %v2570
    %vm2572 = vweird.f32 %v2566
    %vm2573 = vweird.f32 %v2567
    %vm2574 = vmor %vm2572, %vm2573
    %v2575 = vsel %vm2574, %v2567, %v2571
    %v2576 = vand.u32 2147483647, %v2566
    %vm2577 = vcmp.eq.f32.partialorder %v2576, 8.507059e+37
    %v2578 = vand.u32 %v2566, 2147483648
    %v2579 = vor.u32 1.1754944e-38, %v2578
    %v2580 = vsel %vm2577, %v2579, %v2575
    %v2581 = vmul.f32 1.0, %v2580
    %v2582 = vtanh.pop %v2542
    %v2583 = vmul.f32 %v2561, %v2441
    %2585 = vrot.lane.b32.xlu0 %v2562, 32
    %v2586 = vpop.permute.xlu0 %2585
    %v2588 = vmul.f32 %v2561, %v2586
    %2590 = vrot.lane.b32.xlu0 %v2588, 32
    %v2591 = vpop.permute.xlu0 %2590
    %v2593 = vadd.f32 %v2583, %v2591
    %v2594 = vtanh.pop %v2593
    %2596 = vrot.lane.b32.xlu0 %v2594, 32
    %v2597 = vpop.permute.xlu0 %2596
    %v2599 = vmul.f32 %v2561, %v2597
    %v2600 = vmul.f32 %v2581, %v2458
    %2602 = vrot.lane.b32.xlu0 %v2582, 32
    %v2603 = vpop.permute.xlu0 %2602
    %v2605 = vmul.f32 %v2581, %v2603
    %2607 = vrot.lane.b32.xlu0 %v2605, 32
    %v2608 = vpop.permute.xlu0 %2607
    %v2610 = vadd.f32 %v2600, %v2608
    %v2611 = vtanh.pop %v2610
    %2613 = vrot.lane.b32.xlu0 %v2611, 32
    %v2614 = vpop.permute.xlu0 %2613
    %v2616 = vmul.f32 %v2581, %v2614
    %2618 = vst [vmem:[#allocation1] ss:$4 sm:$0xff] %v2599
    %v2619 = vld.sshfl [vmem:[#allocation1] sm:$0xff pattern:$0x73625140]
    %2620 = vrot.lane.b32.xlu0 %v2619, 64
    %v2621 = vpop.permute.xlu0 %2620
    %2623 = vst.msk [vmem:[%s514] sm:$0x3] %vm349, %v2621
    %2625 = vst [vmem:[#allocation1] ss:$4 sm:$0xff] %v2616
    %v2626 = vld.sshfl [vmem:[#allocation1] sm:$0xff pattern:$0x73625140]
    %2627 = vrot.lane.b32.xlu0 %v2626, 96
    %v2628 = vpop.permute.xlu0 %2627
    %2630 = vst.msk [vmem:[%s506] sm:$0x3] %vm358, %v2628
    %v2631 = vld [vmem:[%s241] sm:$0x3]
    %v2632 = vld [vmem:[#allocation6] sm:$0xff]
    %v2633 = vld [vmem:[#allocation6 + $0x8] sm:$0xff]
    %v2634 = vld [vmem:[#allocation6 + $0x10] sm:$0xff]
    %v2635 = vld [vmem:[#allocation6 + $0x18] sm:$0xff]
    %2636 = vst [vmem:[#allocation1] ss:$4 sm:$0xff] %v2599
    %v2637 = vld.sshfl [vmem:[#allocation1] sm:$0xff pattern:$0x73625140]
    %2638 = vrot.lane.b32.xlu0 %v2637, 64
    %v2639 = vpop.permute.xlu0 %2638
    %v2640 = vsel %vm216, %v2639, 0
    %2642 = vmatpush.msra.mxu0 0.0
    %2643 = vmatpush.msra.mxu0 0.0
    %2644 = vmatpush.msra.mxu0 0.0
    %2645 = vmatpush.msra.mxu0 0.0
    %2646 = vmatpush.msra.mxu0 0.0
    %2647 = vmatpush.msra.mxu0 0.0
    %2648 = vmatpush.msra.mxu0 0.0
    %2649 = vmatpush.msra.mxu0 0.0
    %2650 = vmatpush.msra.mxu0 0.0
    %2651 = vmatpush.msra.mxu0 0.0
    %2652 = vmatpush.msra.mxu0 0.0
    %2653 = vmatpush.msra.mxu0 0.0
    %2654 = vmatpush.msra.mxu0 %v2635
    %2655 = vmatpush.msra.mxu0 %v2634
    %2656 = vmatpush.msra.mxu0 %v2633
    %2657 = vmatpush.msra.mxu0 %v2632
    %2658 = vmatmul.f32.gmra.mxu0 %v2640
    %v2659 = vpop.f32.mrf.mxu0
    %v2660 = vadd.f32 0.0, %v2659
    %2661 = vdwg.mxu0
    %v2662 = vadd.f32 %v2631, %v2660
    %v2663 = vld [vmem:[#allocation2 + $0x2] sm:$0x3]
    %v2664 = vld [vmem:[%s1605] sm:$0xff]
    %v2665 = vld [vmem:[%s1605 + $0x8] sm:$0xff]
    %v2666 = vld [vmem:[%s1605 + $0x10] sm:$0xff]
    %v2667 = vld [vmem:[%s1605 + $0x18] sm:$0xff]
    %2668 = vst [vmem:[#allocation1] ss:$4 sm:$0xff] %v2616
    %v2669 = vld.sshfl [vmem:[#allocation1] sm:$0xff pattern:$0x73625140]
    %2670 = vrot.lane.b32.xlu0 %v2669, 64
    %v2671 = vpop.permute.xlu0 %2670
    %v2672 = vsel %vm216, %v2671, 0
    %2674 = vmatpush.msra.mxu0 0.0
    %2675 = vmatpush.msra.mxu0 0.0
    %2676 = vmatpush.msra.mxu0 0.0
    %2677 = vmatpush.msra.mxu0 0.0
    %2678 = vmatpush.msra.mxu0 0.0
    %2679 = vmatpush.msra.mxu0 0.0
    %2680 = vmatpush.msra.mxu0 0.0
    %2681 = vmatpush.msra.mxu0 0.0
    %2682 = vmatpush.msra.mxu0 0.0
    %2683 = vmatpush.msra.mxu0 0.0
    %2684 = vmatpush.msra.mxu0 0.0
    %2685 = vmatpush.msra.mxu0 0.0
    %2686 = vmatpush.msra.mxu0 %v2667
    %2687 = vmatpush.msra.mxu0 %v2666
    %2688 = vmatpush.msra.mxu0 %v2665
    %2689 = vmatpush.msra.mxu0 %v2664
    %2690 = vmatmul.f32.gmra.mxu0 %v2672
    %v2691 = vpop.f32.mrf.mxu0
    %v2692 = vadd.f32 0.0, %v2691
    %2693 = vdwg.mxu0
    %v2694 = vadd.f32 %v2663, %v2692
    %v2695 = vxor.u32 %v2662, 2147483648
    %v2696 = vmul.f32 %v2695, 1.442695
    %v2697 = vpow.pop %v2696
    %v2698 = vadd.f32 %v2697, 1.0
    %v2699 = vrcp.pop %v2698
    %v2700 = vmul.f32 %v2698, %v2699
    %v2701 = vsub.f32 1.0, %v2700
    %v2702 = vmul.f32 %v2699, %v2701
    %v2703 = vadd.f32 %v2699, %v2702
    %vm2704 = vweird.f32 %v2698
    %vm2705 = vweird.f32 %v2699
    %vm2706 = vmor %vm2704, %vm2705
    %v2707 = vsel %vm2706, %v2699, %v2703
    %v2708 = vand.u32 2147483647, %v2698
    %vm2709 = vcmp.eq.f32.partialorder %v2708, 8.507059e+37
    %v2710 = vand.u32 %v2698, 2147483648
    %v2711 = vor.u32 1.1754944e-38, %v2710
    %v2712 = vsel %vm2709, %v2711, %v2707
    %v2713 = vmul.f32 1.0, %v2712
    %v2714 = vtanh.pop %v2662
    %v2715 = vxor.u32 %v2694, 2147483648
    %v2716 = vmul.f32 %v2715, 1.442695
    %v2717 = vpow.pop %v2716
    %v2718 = vadd.f32 %v2717, 1.0
    %v2719 = vrcp.pop %v2718
    %v2720 = vmul.f32 %v2718, %v2719
    %v2721 = vsub.f32 1.0, %v2720
    %v2722 = vmul.f32 %v2719, %v2721
    %v2723 = vadd.f32 %v2719, %v2722
    %vm2724 = vweird.f32 %v2718
    %vm2725 = vweird.f32 %v2719
    %vm2726 = vmor %vm2724, %vm2725
    %v2727 = vsel %vm2726, %v2719, %v2723
    %v2728 = vand.u32 2147483647, %v2718
    %vm2729 = vcmp.eq.f32.partialorder %v2728, 8.507059e+37
    %v2730 = vand.u32 %v2718, 2147483648
    %v2731 = vor.u32 1.1754944e-38, %v2730
    %v2732 = vsel %vm2729, %v2731, %v2727
    %v2733 = vmul.f32 1.0, %v2732
    %v2734 = vtanh.pop %v2694
    %v2735 = vmul.f32 %v2713, %v2593
    %2737 = vrot.lane.b32.xlu0 %v2714, 32
    %v2738 = vpop.permute.xlu0 %2737
    %v2740 = vmul.f32 %v2713, %v2738
    %2742 = vrot.lane.b32.xlu0 %v2740, 32
    %v2743 = vpop.permute.xlu0 %2742
    %v2745 = vadd.f32 %v2735, %v2743
    %v2746 = vtanh.pop %v2745
    %2748 = vrot.lane.b32.xlu0 %v2746, 32
    %v2749 = vpop.permute.xlu0 %2748
    %v2751 = vmul.f32 %v2713, %v2749
    %v2752 = vmul.f32 %v2733, %v2610
    %2754 = vrot.lane.b32.xlu0 %v2734, 32
    %v2755 = vpop.permute.xlu0 %2754
    %v2757 = vmul.f32 %v2733, %v2755
    %2759 = vrot.lane.b32.xlu0 %v2757, 32
    %v2760 = vpop.permute.xlu0 %2759
    %v2762 = vadd.f32 %v2752, %v2760
    %v2763 = vtanh.pop %v2762
    %2765 = vrot.lane.b32.xlu0 %v2763, 32
    %v2766 = vpop.permute.xlu0 %2765
    %v2768 = vmul.f32 %v2733, %v2766
    %2770 = vst [vmem:[#allocation1] ss:$4 sm:$0xff] %v2751
    %v2771 = vld.sshfl [vmem:[#allocation1] sm:$0xff pattern:$0x73625140]
    %2772 = vrot.lane.b32.xlu0 %v2771, 64
    %v2773 = vpop.permute.xlu0 %2772
    %2775 = vst.msk [vmem:[%s357] sm:$0x3] %vm349, %v2773
    %2777 = vst [vmem:[#allocation1] ss:$4 sm:$0xff] %v2768
    %v2778 = vld.sshfl [vmem:[#allocation1] sm:$0xff pattern:$0x73625140]
    %2779 = vrot.lane.b32.xlu0 %v2778, 96
    %v2780 = vpop.permute.xlu0 %2779
    %2782 = vst.msk [vmem:[#allocation3] sm:$0x3] %vm358, %v2780
    %v2783 = vld [vmem:[#allocation3] sm:$0x3]
    %v2784 = vld [vmem:[#allocation3 + $0x2] sm:$0x3]
    %v2785 = vld [vmem:[#allocation3 + $0x4] sm:$0x3]
    %v2786 = vld [vmem:[#allocation3 + $0x6] sm:$0x3]
    %v2787 = vld [vmem:[#allocation3 + $0x8] sm:$0x3]
    %v2788 = vld [vmem:[#allocation3 + $0xa] sm:$0x3]
    %v2789 = vld [vmem:[#allocation3 + $0xc] sm:$0x3]
    %v2790 = vld [vmem:[#allocation3 + $0xe] sm:$0x3]
    %v2791 = vld [vmem:[%s7] sm:$0xff]
    %v2792 = vld [vmem:[%s7 + $0x8] sm:$0xff]
    %v2793 = vld [vmem:[%s7 + $0x10] sm:$0xff]
    %v2794 = vld [vmem:[%s7 + $0x18] sm:$0xff]
    %v2795 = vld [vmem:[%s7 + $0x20] sm:$0xff]
    %v2796 = vld [vmem:[%s7 + $0x28] sm:$0xff]
    %v2797 = vld [vmem:[%s7 + $0x30] sm:$0xff]
    %v2798 = vld [vmem:[%s7 + $0x38] sm:$0xff]
    %v2799 = vld [vmem:[%s8] sm:$0x1]
    %v2801 = vperm.slane %v2799, 0
    %2811 = vst [vmem:[#allocation1] ss:$4 sm:$0xff] %v2783
    %s2812 = scalar_lea.vmem [#allocation1], 1
    %2813 = vst [vmem:[%s2812] ss:$4 sm:$0xff] %v2784
    %s2814 = scalar_lea.vmem [#allocation1], 2
    %2815 = vst [vmem:[%s2814] ss:$4 sm:$0xff] %v2785
    %s2816 = scalar_lea.vmem [#allocation1], 3
    %2817 = vst [vmem:[%s2816] ss:$4 sm:$0xff] %v2786
    %s2818 = scalar_lea.vmem [#allocation1], 32
    %2819 = vst [vmem:[%s2818] ss:$4 sm:$0xff] %v2787
    %s2820 = scalar_lea.vmem [#allocation1], 33
    %2821 = vst [vmem:[%s2820] ss:$4 sm:$0xff] %v2788
    %s2822 = scalar_lea.vmem [#allocation1], 34
    %2823 = vst [vmem:[%s2822] ss:$4 sm:$0xff] %v2789
    %s2824 = scalar_lea.vmem [#allocation1], 35
    %2825 = vst [vmem:[%s2824] ss:$4 sm:$0xff] %v2790
    %v2826 = vld.sshfl [vmem:[#allocation1] sm:$0xff pattern:$0x73625140]
    %v2827 = vld.sshfl [vmem:[#allocation1 + $0x20] sm:$0xff pattern:$0x73625140]
    %v2828 = vsel %vm1491, %v2826, 0
    %v2830 = vsel %vm1491, %v2827, 0
    %2832 = vmatpush.msra.mxu0 0.0
    %2833 = vmatpush.msra.mxu0 0.0
    %2834 = vmatpush.msra.mxu0 0.0
    %2835 = vmatpush.msra.mxu0 0.0
    %2836 = vmatpush.msra.mxu0 0.0
    %2837 = vmatpush.msra.mxu0 0.0
    %2838 = vmatpush.msra.mxu0 0.0
    %2839 = vmatpush.msra.mxu0 0.0
    %2840 = vmatpush.msra.mxu0 %v2798
    %2841 = vmatpush.msra.mxu0 %v2797
    %2842 = vmatpush.msra.mxu0 %v2796
    %2843 = vmatpush.msra.mxu0 %v2795
    %2844 = vmatpush.msra.mxu0 %v2794
    %2845 = vmatpush.msra.mxu0 %v2793
    %2846 = vmatpush.msra.mxu0 %v2792
    %2847 = vmatpush.msra.mxu0 %v2791
    %2848 = vmatmul.f32.gmra.mxu0 %v2828
    %v2849 = vpop.f32.mrf.mxu0
    %v2850 = vadd.f32 %v2801, %v2849
    %2851 = vmatmul.f32.gmra.mxu0 %v2830
    %v2852 = vpop.f32.mrf.mxu0
    %v2853 = vadd.f32 %v2801, %v2852
    %2854 = vdwg.mxu0
    %vm2855 = vcmp.ge.f32.partialorder %v2850, 0.0
    %vm2856 = vcmp.ge.f32.partialorder %v2853, 0.0
    %v2857 = vmul.f32 %v2850, 0.01
    %v2858 = vmul.f32 %v2853, 0.01
    %v2859 = vsel %vm2855, %v2850, %v2857
    %v2860 = vsel %vm2856, %v2853, %v2858
    %vm2861 = vcmask 64512
    %2862 = vst.msk [vmem:[%s9] sm:$0xff] %vm2861, %v2859
    %2863 = vst.msk [vmem:[%s9 + $0x8] sm:$0xff] %vm2861, %v2860
    // Predicated region
    $region50: #{birnn_forward.1} parent=1 // pred_check
      _
    $region51: #{birnn_forward.1} parent=1 // pred_check_branch
      %2865 = sbr.rel (0) target = $region53
    $region52: #{birnn_forward.1} parent=1 // pred_region
      _
    $region53: #{birnn_forward.1} parent=1 // pred_fallthru
      _
    // Predicated region
    $region54: #{birnn_forward.1} parent=1 // pred_check
      _
    $region55: #{birnn_forward.1} parent=1 // pred_check_branch
      %2867 = sbr.rel (0) target = $region57
    $region56: #{birnn_forward.1} parent=1 // pred_region
      _
    $region57: #{birnn_forward.1} parent=1 // pred_fallthru
      _
    %2868 = vsyncpa [#allocation5], 1
    %2869 = vsyncpa [#allocation7], 1

</llo_original>
